<compile_context>
chip_gen: v7x
topology: tpu7x:2x2x1
jax: 0.10.0
libtpu: 0.0.40
codegen_flags: <defaults>
</compile_context>

<pallas_src>
import jax
import jax.numpy as jnp
from jax.experimental import pallas as pl
from jax.experimental.pallas import tpu as pltpu


# ----------------------------------------------------------------------------
# Fused rollout kernel: one grid step == one P_GN time step.
# ----------------------------------------------------------------------------
def _p_gn_kernel(
    # per-step inputs (step-indexed blocks)
    gx_ref, ge_ref,
    # resident graph structure
    s_ref, r_ref, rt_ref, lap_ref,
    # initial hidden state (read only at step 0)
    h0x_ref, h0e_ref,
    # edge-block MLP: layer-1 weights split along the concat axis, biases, layer-2
    we_ge_ref, we_he_ref, we_sgx_ref, we_shx_ref, we_dgx_ref, we_dhx_ref,
    be1_ref, we2_ref, be2_ref,
    # node-block MLP: layer-1 weights split along the concat axis, biases, layer-2
    wn_gx_ref, wn_hx_ref, wn_agg_ref, bn1_ref, wn2_ref, bn2_ref,
    # SMEM scalar
    coeff_ref,
    # per-step outputs
    ox_ref, oe_ref, td_ref, sd_ref,
    # carried hidden state (VMEM scratch, persists across grid steps)
    hx_s, he_s):
  f32 = jnp.float32
  bf16 = jnp.bfloat16
  t = pl.program_id(0)

  # Initialize the carried hidden state from h_init at the first step.
  @pl.when(t == 0)
  def _():
    hx_s[...] = h0x_ref[...].astype(f32)
    he_s[...] = h0e_ref[...].astype(f32)

  hx = hx_s[...]                        # (N, Hn) f32  h_curr.x
  he = he_s[...]                        # (E, He) f32  h_curr.edge_attr
  hx_b = hx.astype(bf16)
  he_b = he.astype(bf16)
  gx = gx_ref[0]                        # (N, Fx) bf16 input_graph.x
  ge = ge_ref[0]                        # (E, Fe) bf16 input_graph.edge_attr
  S = s_ref[...]                        # (E, N)  bf16 one-hot senders
  R = r_ref[...]                        # (E, N)  bf16 one-hot receivers

  def mm(a, b):
    return jnp.dot(a, b, preferred_element_type=f32)

  # --- gathers (one-hot matmuls on the MXU) ---------------------------------
  # TODO(synk): for large graphs replace the dense one-hot gather/scatter with
  # scalar-prefetch index gathers (PrefetchScalarGridSpec + manual DMA).
  gx_src = mm(S, gx).astype(bf16)       # (E, Fx) = graph.x[senders]
  hx_src = mm(S, hx_b).astype(bf16)     # (E, Hn) = h.x[senders]
  gx_dst = mm(R, gx).astype(bf16)       # (E, Fx) = graph.x[receivers]
  hx_dst = mm(R, hx_b).astype(bf16)     # (E, Hn) = h.x[receivers]

  # --- edge block: e' = MLP([e_cat, x_src, x_dst]) as split matmuls ---------
  eh = (mm(ge, we_ge_ref[...]) + mm(he_b, we_he_ref[...])
        + mm(gx_src, we_sgx_ref[...]) + mm(hx_src, we_shx_ref[...])
        + mm(gx_dst, we_dgx_ref[...]) + mm(hx_dst, we_dhx_ref[...])
        + be1_ref[...])
  eh = jnp.maximum(eh, 0.0).astype(bf16)
  e_out = mm(eh, we2_ref[...]) + be2_ref[...]          # (E, He) f32

  # --- node block: x' = MLP([x_cat, sum_{e->n} e']) as split matmuls --------
  agg = mm(rt_ref[...], e_out.astype(bf16)).astype(bf16)   # (N, He) scatter-add
  nh = (mm(gx, wn_gx_ref[...]) + mm(hx_b, wn_hx_ref[...])
        + mm(agg, wn_agg_ref[...]) + bn1_ref[...])
  nh = jnp.maximum(nh, 0.0).astype(bf16)
  x_out = mm(nh, wn2_ref[...]) + bn2_ref[...]          # (N, Hn) f32

  # --- per-step outputs ------------------------------------------------------
  coeff = coeff_ref[0]
  ox_ref[0] = x_out                                    # h_next.x
  oe_ref[0] = e_out                                    # h_next.edge_attr
  td_ref[0] = x_out - hx                               # pde == 'diff'
  # spatial derivative = -coeff * L @ h_curr.x
  # TODO(synk): for large N compute this from the already-resident S/R
  # (deg*h - adjacency@h) instead of keeping a dense (N, N) Laplacian in VMEM.
  sd_ref[0] = (-coeff) * mm(lap_ref[...], hx_b)

  # --- carry the recurrence --------------------------------------------------
  hx_s[...] = x_out
  he_s[...] = e_out


# ----------------------------------------------------------------------------
# Wrapper: builds the single pallas_call covering the whole rollout.
# ----------------------------------------------------------------------------
def p_gn_rollout(gx_seq, ge_seq, S, R, laplacian, h0_x, h0_e, params, coeff):
  f32, bf16 = jnp.float32, jnp.bfloat16
  T, N, Fx = gx_seq.shape
  _, E, Fe = ge_seq.shape
  Hn = h0_x.shape[1]
  He = h0_e.shape[1]

  # bf16 operands for the MXU; biases stay f32.
  gx_seq = gx_seq.astype(bf16)
  ge_seq = ge_seq.astype(bf16)
  Sb = S.astype(bf16)
  Rb = R.astype(bf16)
  RTb = R.T.astype(bf16)           # precomputed transpose (avoids in-kernel XLU)
  lapb = laplacian.astype(bf16)
  h0x_b = h0_x.astype(bf16)
  h0e_b = h0_e.astype(bf16)

  # Split the concat-input weight matrices on the host so the kernel can use
  # split matmuls (no in-kernel concatenation / lane relayout copies).
  # Edge-MLP input column order: [ge(Fe), he(He), S@gx(Fx), S@hx(Hn), R@gx(Fx), R@hx(Hn)]
  we1 = params["we1"].astype(bf16)
  o1 = Fe
  o2 = o1 + He
  o3 = o2 + Fx
  o4 = o3 + Hn
  o5 = o4 + Fx
  w_e_ge, w_e_he = we1[:o1], we1[o1:o2]
  w_e_sgx, w_e_shx = we1[o2:o3], we1[o3:o4]
  w_e_dgx, w_e_dhx = we1[o4:o5], we1[o5:]
  # Node-MLP input column order: [gx(Fx), hx(Hn), agg(He)]
  wn1 = params["wn1"].astype(bf16)
  w_n_gx, w_n_hx, w_n_agg = wn1[:Fx], wn1[Fx:Fx + Hn], wn1[Fx + Hn:]
  we2 = params["we2"].astype(bf16)
  wn2 = params["wn2"].astype(bf16)
  be1 = params["be1"].astype(f32)
  be2 = params["be2"].astype(f32)
  bn1 = params["bn1"].astype(f32)
  bn2 = params["bn2"].astype(f32)

  coeff_arr = jnp.asarray([coeff], dtype=f32)

  resident_arrays = (
      Sb, Rb, RTb, lapb, h0x_b, h0e_b,
      w_e_ge, w_e_he, w_e_sgx, w_e_shx, w_e_dgx, w_e_dhx, be1, we2, be2,
      w_n_gx, w_n_hx, w_n_agg, bn1, wn2, bn2,
  )

  def _resident_spec(arr):
    zeros = (0,) * arr.ndim          # constant index_map -> stays VMEM-resident
    return pl.BlockSpec(arr.shape, lambda t, _z=zeros: _z)

  in_specs = (
      [pl.BlockSpec((1, N, Fx), lambda t: (t, 0, 0)),
       pl.BlockSpec((1, E, Fe), lambda t: (t, 0, 0))]
      + [_resident_spec(a) for a in resident_arrays]
      + [pl.BlockSpec(memory_space=pltpu.MemorySpace.SMEM)]
  )
  out_specs = (
      pl.BlockSpec((1, N, Hn), lambda t: (t, 0, 0)),
      pl.BlockSpec((1, E, He), lambda t: (t, 0, 0)),
      pl.BlockSpec((1, N, Hn), lambda t: (t, 0, 0)),
      pl.BlockSpec((1, N, Hn), lambda t: (t, 0, 0)),
  )
  out_shape = (
      jax.ShapeDtypeStruct((T, N, Hn), f32),   # h_next.x per step
      jax.ShapeDtypeStruct((T, E, He), f32),   # h_next.edge_attr per step
      jax.ShapeDtypeStruct((T, N, Hn), f32),   # time derivative ('diff')
      jax.ShapeDtypeStruct((T, N, Hn), f32),   # spatial derivative
  )
  grid_spec = pltpu.PrefetchScalarGridSpec(
      num_scalar_prefetch=0,
      grid=(T,),
      in_specs=in_specs,
      out_specs=out_specs,
      scratch_shapes=[pltpu.VMEM((N, Hn), f32),    # carried h.x
                      pltpu.VMEM((E, He), f32)],   # carried h.edge_attr
  )
  # TODO(synk): for graphs too large to keep whole arrays resident, add edge-
  # and node-tile grid axes (marked "parallel" for v7x's two TensorCores) and
  # set vmem_limit_bytes from the computed footprint.
  return pl.pallas_call(
      _p_gn_kernel,
      out_shape=out_shape,
      grid_spec=grid_spec,
      compiler_params=pltpu.CompilerParams(
          dimension_semantics=("arbitrary",)),     # step axis is a recurrence
  )(gx_seq, ge_seq, *resident_arrays, coeff_arr)


# ----------------------------------------------------------------------------
# P_GN.forward (pde='diff', no global block).
# ----------------------------------------------------------------------------
def p_gn_forward(input_graphs, laplacian, h_init, S, R, params,
                 coeff=0.1, pde='diff'):
  # TODO(synk): 'wave' / 'both' / 'random' pde branches (need h_prev) not wired.
  assert pde == 'diff'
  gx_seq = jnp.stack([g[0] for g in input_graphs])
  ge_seq = jnp.stack([g[1] for g in input_graphs])
  h0_x, h0_e = h_init
  out_x, out_e, tder, sder = p_gn_rollout(
      gx_seq, ge_seq, S, R, laplacian, h0_x, h0_e, params, coeff)
  T = len(input_graphs)
  outputs = [(out_x[t], out_e[t]) for t in range(T)]   # copy_geometric_data(h_curr)
  time_derivatives = [tder[t] for t in range(T)]
  spatial_derivatives = [sder[t] for t in range(T)]
  return outputs, time_derivatives, spatial_derivatives


# ----------------------------------------------------------------------------
# Pure-JAX reference with the same bf16-operand / f32-accumulate policy
# (concat form of the MLP inputs, to validate the split-matmul kernel).
# ----------------------------------------------------------------------------
def p_gn_reference(input_graphs, laplacian, h_init, S, R, params, coeff):
  f32, bf16 = jnp.float32, jnp.bfloat16
  Sb, Rb, lapb = S.astype(bf16), R.astype(bf16), laplacian.astype(bf16)
  we1, we2 = params["we1"].astype(bf16), params["we2"].astype(bf16)
  wn1, wn2 = params["wn1"].astype(bf16), params["wn2"].astype(bf16)
  be1, be2 = params["be1"].astype(f32), params["be2"].astype(f32)
  bn1, bn2 = params["bn1"].astype(f32), params["bn2"].astype(f32)
  hx = h_init[0].astype(bf16).astype(f32)
  he = h_init[1].astype(bf16).astype(f32)
  outs, tds, sds = [], [], []
  for gx, ge in input_graphs:
    gxb, geb = gx.astype(bf16), ge.astype(bf16)
    hxb, heb = hx.astype(bf16), he.astype(bf16)
    x_cat = jnp.concatenate([gxb, hxb], axis=-1)
    e_cat = jnp.concatenate([geb, heb], axis=-1)
    x_src = jnp.dot(Sb, x_cat, preferred_element_type=f32).astype(bf16)
    x_dst = jnp.dot(Rb, x_cat, preferred_element_type=f32).astype(bf16)
    e_in = jnp.concatenate([e_cat, x_src, x_dst], axis=-1)
    eh = jnp.maximum(
        jnp.dot(e_in, we1, preferred_element_type=f32) + be1, 0.0).astype(bf16)
    e_out = jnp.dot(eh, we2, preferred_element_type=f32) + be2
    agg = jnp.dot(Rb.T, e_out.astype(bf16),
                  preferred_element_type=f32).astype(bf16)
    n_in = jnp.concatenate([x_cat, agg], axis=-1)
    nh = jnp.maximum(
        jnp.dot(n_in, wn1, preferred_element_type=f32) + bn1, 0.0).astype(bf16)
    x_out = jnp.dot(nh, wn2, preferred_element_type=f32) + bn2
    tds.append(x_out - hx)
    sds.append(-coeff * jnp.dot(lapb, hxb, preferred_element_type=f32))
    outs.append((x_out, e_out))
    hx, he = x_out, e_out
  return outs, tds, sds


if __name__ == "__main__":
  key = jax.random.PRNGKey(0)

  # --- sizes: small graph, lane-dense (128-wide) hidden dims -----------------
  N, E = 16, 32            # nodes, edges (bidirectional ring)
  Fx, Fe = 4, 4            # input-graph node / edge feature dims
  Hn, He, HID = 128, 128, 128
  num_steps = 3
  coeff = 0.1

  # P_GN scalars a, b (only used by pde='random'; deterministic stand-ins).
  k_a, k_b, key = jax.random.split(key, 3)
  a = float(5.0 * jax.random.uniform(k_a, ()) - 2.5)
  b = float(5.0 * jax.random.uniform(k_b, ()) - 2.5)
  del a, b  # TODO(synk): used only by the un-wired pde='random' branch.

  # --- ring graph with bidirectional edges ------------------------------------
  senders = jnp.concatenate([jnp.arange(N), jnp.arange(N)])
  receivers = jnp.concatenate([(jnp.arange(N) + 1) % N, (jnp.arange(N) - 1) % N])
  S = jax.nn.one_hot(senders, N, dtype=jnp.float32)       # (E, N)
  R = jax.nn.one_hot(receivers, N, dtype=jnp.float32)     # (E, N)

  # Graph Laplacian L = D - A for this connectivity (module input).
  A = (R.T @ S) + (S.T @ R)
  A = (A > 0).astype(jnp.float32)
  laplacian = jnp.diag(A.sum(axis=1)) - A                  # (N, N)

  # --- deterministic GN-block parameters --------------------------------------
  d_e_in = (Fe + He) + 2 * (Fx + Hn)    # edge MLP input dim (concat form)
  d_n_in = (Fx + Hn) + He               # node MLP input dim (concat form)
  ks = jax.random.split(key, 8 + 2 * num_steps + 2)

  def _w(k, m, n):
    return jax.random.normal(k, (m, n), jnp.float32) / jnp.sqrt(float(m))

  def _b(k, n):
    return 0.1 * jax.random.normal(k, (1, n), jnp.float32)

  params = {
      "we1": _w(ks[0], d_e_in, HID), "be1": _b(ks[1], HID),
      "we2": _w(ks[2], HID, He),     "be2": _b(ks[3], He),
      "wn1": _w(ks[4], d_n_in, HID), "bn1": _b(ks[5], HID),
      "wn2": _w(ks[6], HID, Hn),     "bn2": _b(ks[7], Hn),
  }

  # --- input graph sequence + h_init ------------------------------------------
  input_graphs = []
  for t in range(num_steps):
    kx, ke = ks[8 + 2 * t], ks[9 + 2 * t]
    input_graphs.append((jax.random.normal(kx, (N, Fx), jnp.float32),
                         jax.random.normal(ke, (E, Fe), jnp.float32)))
  h_init = (jax.random.normal(ks[8 + 2 * num_steps], (N, Hn), jnp.float32),
            jax.random.normal(ks[9 + 2 * num_steps], (E, He), jnp.float32))

  # --- run the fused Pallas rollout -------------------------------------------
  outs, tders, sders = p_gn_forward(input_graphs, laplacian, h_init, S, R,
                                    params, coeff=coeff)
  jax.block_until_ready(outs[-1][0])

  # --- verify the full rollout against the pure-JAX reference -----------------
  r_outs, r_tders, r_sders = p_gn_reference(
      input_graphs, laplacian, h_init, S, R, params, coeff)
  for t in range(num_steps):
    assert jnp.allclose(outs[t][0], r_outs[t][0], atol=1e-2, rtol=1e-2)
    assert jnp.allclose(outs[t][1], r_outs[t][1], atol=1e-2, rtol=1e-2)
    assert jnp.allclose(tders[t], r_tders[t], atol=1e-2, rtol=1e-2)
    assert jnp.allclose(sders[t], r_sders[t], atol=1e-2, rtol=1e-2)

  print("KERNEL_OK")
</pallas_src>

<mosaic_0001>
module attributes {stable_mosaic.version = 11 : i64} {
  func.func @_p_gn_kernel(%arg0: i32, %arg1: memref<1x16x4xbf16, #tpu.memory_space<vmem>>, %arg2: memref<1x32x4xbf16, #tpu.memory_space<vmem>>, %arg3: memref<32x16xbf16, #tpu.memory_space<vmem>>, %arg4: memref<32x16xbf16, #tpu.memory_space<vmem>>, %arg5: memref<16x32xbf16, #tpu.memory_space<vmem>>, %arg6: memref<16x16xbf16, #tpu.memory_space<vmem>>, %arg7: memref<16x128xbf16, #tpu.memory_space<vmem>>, %arg8: memref<32x128xbf16, #tpu.memory_space<vmem>>, %arg9: memref<4x128xbf16, #tpu.memory_space<vmem>>, %arg10: memref<128x128xbf16, #tpu.memory_space<vmem>>, %arg11: memref<4x128xbf16, #tpu.memory_space<vmem>>, %arg12: memref<128x128xbf16, #tpu.memory_space<vmem>>, %arg13: memref<4x128xbf16, #tpu.memory_space<vmem>>, %arg14: memref<128x128xbf16, #tpu.memory_space<vmem>>, %arg15: memref<1x128xf32, #tpu.memory_space<vmem>>, %arg16: memref<128x128xbf16, #tpu.memory_space<vmem>>, %arg17: memref<1x128xf32, #tpu.memory_space<vmem>>, %arg18: memref<4x128xbf16, #tpu.memory_space<vmem>>, %arg19: memref<128x128xbf16, #tpu.memory_space<vmem>>, %arg20: memref<128x128xbf16, #tpu.memory_space<vmem>>, %arg21: memref<1x128xf32, #tpu.memory_space<vmem>>, %arg22: memref<128x128xbf16, #tpu.memory_space<vmem>>, %arg23: memref<1x128xf32, #tpu.memory_space<vmem>>, %arg24: memref<1xf32, #tpu.memory_space<smem>>, %arg25: memref<1x16x128xf32, #tpu.memory_space<vmem>>, %arg26: memref<1x32x128xf32, #tpu.memory_space<vmem>>, %arg27: memref<1x16x128xf32, #tpu.memory_space<vmem>>, %arg28: memref<1x16x128xf32, #tpu.memory_space<vmem>>, %arg29: memref<16x128xf32, #tpu.memory_space<vmem>>, %arg30: memref<32x128xf32, #tpu.memory_space<vmem>>) attributes {dimension_semantics = [#tpu.dimension_semantics<arbitrary>], iteration_bounds = array<i64: 3>, scalar_prefetch = 0 : i64, scratch_operands = 2 : i64, tpu.core_type = #tpu.core_type<tc>, window_params = [{transform_indices = @transform_0, window_bounds = array<i64: 1, 16, 4>}, {transform_indices = @transform_1, window_bounds = array<i64: 1, 32, 4>}, {pipeline_mode = #tpu.pipeline_mode<synchronous>, transform_indices = @transform_2, window_bounds = array<i64: 32, 16>}, {pipeline_mode = #tpu.pipeline_mode<synchronous>, transform_indices = @transform_3, window_bounds = array<i64: 32, 16>}, {pipeline_mode = #tpu.pipeline_mode<synchronous>, transform_indices = @transform_4, window_bounds = array<i64: 16, 32>}, {pipeline_mode = #tpu.pipeline_mode<synchronous>, transform_indices = @transform_5, window_bounds = array<i64: 16, 16>}, {pipeline_mode = #tpu.pipeline_mode<synchronous>, transform_indices = @transform_6, window_bounds = array<i64: 16, 128>}, {pipeline_mode = #tpu.pipeline_mode<synchronous>, transform_indices = @transform_7, window_bounds = array<i64: 32, 128>}, {pipeline_mode = #tpu.pipeline_mode<synchronous>, transform_indices = @transform_8, window_bounds = array<i64: 4, 128>}, {pipeline_mode = #tpu.pipeline_mode<synchronous>, transform_indices = @transform_9, window_bounds = array<i64: 128, 128>}, {pipeline_mode = #tpu.pipeline_mode<synchronous>, transform_indices = @transform_10, window_bounds = array<i64: 4, 128>}, {pipeline_mode = #tpu.pipeline_mode<synchronous>, transform_indices = @transform_11, window_bounds = array<i64: 128, 128>}, {pipeline_mode = #tpu.pipeline_mode<synchronous>, transform_indices = @transform_12, window_bounds = array<i64: 4, 128>}, {pipeline_mode = #tpu.pipeline_mode<synchronous>, transform_indices = @transform_13, window_bounds = array<i64: 128, 128>}, {pipeline_mode = #tpu.pipeline_mode<synchronous>, transform_indices = @transform_14, window_bounds = array<i64: 1, 128>}, {pipeline_mode = #tpu.pipeline_mode<synchronous>, transform_indices = @transform_15, window_bounds = array<i64: 128, 128>}, {pipeline_mode = #tpu.pipeline_mode<synchronous>, transform_indices = @transform_16, window_bounds = array<i64: 1, 128>}, {pipeline_mode = #tpu.pipeline_mode<synchronous>, transform_indices = @transform_17, window_bounds = array<i64: 4, 128>}, {pipeline_mode = #tpu.pipeline_mode<synchronous>, transform_indices = @transform_18, window_bounds = array<i64: 128, 128>}, {pipeline_mode = #tpu.pipeline_mode<synchronous>, transform_indices = @transform_19, window_bounds = array<i64: 128, 128>}, {pipeline_mode = #tpu.pipeline_mode<synchronous>, transform_indices = @transform_20, window_bounds = array<i64: 1, 128>}, {pipeline_mode = #tpu.pipeline_mode<synchronous>, transform_indices = @transform_21, window_bounds = array<i64: 128, 128>}, {pipeline_mode = #tpu.pipeline_mode<synchronous>, transform_indices = @transform_22, window_bounds = array<i64: 1, 128>}, {transform_indices = @transform_23, window_bounds = array<i64: 1>}, {transform_indices = @transform_24, window_bounds = array<i64: 1, 16, 128>}, {transform_indices = @transform_25, window_bounds = array<i64: 1, 32, 128>}, {transform_indices = @transform_26, window_bounds = array<i64: 1, 16, 128>}, {transform_indices = @transform_27, window_bounds = array<i64: 1, 16, 128>}]} {
    %c0_i32 = arith.constant 0 : i32
    %0 = arith.cmpi eq, %arg0, %c0_i32 : i32
    %1 = arith.extui %0 : i1 to i32
    %c0_i32_0 = arith.constant 0 : i32
    %2 = arith.cmpi ne, %1, %c0_i32_0 : i32
    scf.if %2 {
      %c0_84 = arith.constant 0 : index
      %c0_85 = arith.constant 0 : index
      %93 = vector.load %arg7[%c0_84, %c0_85] : memref<16x128xbf16, #tpu.memory_space<vmem>>, vector<16x128xbf16>
      %94 = arith.extf %93 : vector<16x128xbf16> to vector<16x128xf32>
      %c0_86 = arith.constant 0 : index
      %c0_87 = arith.constant 0 : index
      %95 = vector.load %arg29[%c0_86, %c0_87] : memref<16x128xf32, #tpu.memory_space<vmem>>, vector<16x128xf32>
      tpu.vector_store %arg29[%c0_86, %c0_87], %94 {strides = array<i32>} : memref<16x128xf32, #tpu.memory_space<vmem>>, vector<16x128xf32>,
      %c0_88 = arith.constant 0 : index
      %c0_89 = arith.constant 0 : index
      %96 = vector.load %arg8[%c0_88, %c0_89] : memref<32x128xbf16, #tpu.memory_space<vmem>>, vector<32x128xbf16>
      %97 = arith.extf %96 : vector<32x128xbf16> to vector<32x128xf32>
      %c0_90 = arith.constant 0 : index
      %c0_91 = arith.constant 0 : index
      %98 = vector.load %arg30[%c0_90, %c0_91] : memref<32x128xf32, #tpu.memory_space<vmem>>, vector<32x128xf32>
      tpu.vector_store %arg30[%c0_90, %c0_91], %97 {strides = array<i32>} : memref<32x128xf32, #tpu.memory_space<vmem>>, vector<32x128xf32>,
    } else {
    }
    %c0 = arith.constant 0 : index
    %c0_1 = arith.constant 0 : index
    %3 = vector.load %arg29[%c0, %c0_1] : memref<16x128xf32, #tpu.memory_space<vmem>>, vector<16x128xf32>
    %c0_2 = arith.constant 0 : index
    %c0_3 = arith.constant 0 : index
    %4 = vector.load %arg30[%c0_2, %c0_3] : memref<32x128xf32, #tpu.memory_space<vmem>>, vector<32x128xf32>
    %5 = arith.truncf %3 : vector<16x128xf32> to vector<16x128xbf16>
    %6 = arith.truncf %4 : vector<32x128xf32> to vector<32x128xbf16>
    %c0_4 = arith.constant 0 : index
    %c0_5 = arith.constant 0 : index
    %c0_6 = arith.constant 0 : index
    %7 = vector.load %arg1[%c0_4, %c0_5, %c0_6] : memref<1x16x4xbf16, #tpu.memory_space<vmem>>, vector<1x16x4xbf16>
    %8 = vector.shape_cast %7 : vector<1x16x4xbf16> to vector<16x4xbf16>
    %c0_7 = arith.constant 0 : index
    %c0_8 = arith.constant 0 : index
    %c0_9 = arith.constant 0 : index
    %9 = vector.load %arg2[%c0_7, %c0_8, %c0_9] : memref<1x32x4xbf16, #tpu.memory_space<vmem>>, vector<1x32x4xbf16>
    %10 = vector.shape_cast %9 : vector<1x32x4xbf16> to vector<32x4xbf16>
    %c0_10 = arith.constant 0 : index
    %c0_11 = arith.constant 0 : index
    %11 = vector.load %arg3[%c0_10, %c0_11] : memref<32x16xbf16, #tpu.memory_space<vmem>>, vector<32x16xbf16>
    %c0_12 = arith.constant 0 : index
    %c0_13 = arith.constant 0 : index
    %12 = vector.load %arg4[%c0_12, %c0_13] : memref<32x16xbf16, #tpu.memory_space<vmem>>, vector<32x16xbf16>
    %cst = arith.constant dense<0.000000e+00> : vector<32x4xf32>
    %13 = tpu.matmul %11, %8, %cst {dimension_numbers = #tpu.dot_dimension_numbers<[1], [0], [0], [1], [0, 0, 1, 1], [], []>} : vector<32x16xbf16>, vector<16x4xbf16>, vector<32x4xf32> -> vector<32x4xf32>
    %14 = arith.truncf %13 : vector<32x4xf32> to vector<32x4xbf16>
    %cst_14 = arith.constant dense<0.000000e+00> : vector<32x128xf32>
    %15 = tpu.matmul %11, %5, %cst_14 {dimension_numbers = #tpu.dot_dimension_numbers<[1], [0], [0], [1], [0, 0, 1, 1], [], []>} : vector<32x16xbf16>, vector<16x128xbf16>, vector<32x128xf32> -> vector<32x128xf32>
    %16 = arith.truncf %15 : vector<32x128xf32> to vector<32x128xbf16>
    %cst_15 = arith.constant dense<0.000000e+00> : vector<32x4xf32>
    %17 = tpu.matmul %12, %8, %cst_15 {dimension_numbers = #tpu.dot_dimension_numbers<[1], [0], [0], [1], [0, 0, 1, 1], [], []>} : vector<32x16xbf16>, vector<16x4xbf16>, vector<32x4xf32> -> vector<32x4xf32>
    %18 = arith.truncf %17 : vector<32x4xf32> to vector<32x4xbf16>
    %cst_16 = arith.constant dense<0.000000e+00> : vector<32x128xf32>
    %19 = tpu.matmul %12, %5, %cst_16 {dimension_numbers = #tpu.dot_dimension_numbers<[1], [0], [0], [1], [0, 0, 1, 1], [], []>} : vector<32x16xbf16>, vector<16x128xbf16>, vector<32x128xf32> -> vector<32x128xf32>
    %20 = arith.truncf %19 : vector<32x128xf32> to vector<32x128xbf16>
    %c0_17 = arith.constant 0 : index
    %c0_18 = arith.constant 0 : index
    %21 = vector.load %arg9[%c0_17, %c0_18] : memref<4x128xbf16, #tpu.memory_space<vmem>>, vector<4x128xbf16>
    %cst_19 = arith.constant dense<0.000000e+00> : vector<32x128xf32>
    %22 = tpu.matmul %10, %21, %cst_19 {dimension_numbers = #tpu.dot_dimension_numbers<[1], [0], [0], [1], [0, 0, 1, 1], [], []>} : vector<32x4xbf16>, vector<4x128xbf16>, vector<32x128xf32> -> vector<32x128xf32>
    %c0_20 = arith.constant 0 : index
    %c0_21 = arith.constant 0 : index
    %23 = vector.load %arg10[%c0_20, %c0_21] : memref<128x128xbf16, #tpu.memory_space<vmem>>, vector<128x128xbf16>
    %cst_22 = arith.constant dense<0.000000e+00> : vector<32x128xf32>
    %24 = tpu.matmul %6, %23, %cst_22 {dimension_numbers = #tpu.dot_dimension_numbers<[1], [0], [0], [1], [0, 0, 1, 1], [], []>} : vector<32x128xbf16>, vector<128x128xbf16>, vector<32x128xf32> -> vector<32x128xf32>
    %25 = arith.addf %22, %24 : vector<32x128xf32>
    %c0_23 = arith.constant 0 : index
    %c0_24 = arith.constant 0 : index
    %26 = vector.load %arg11[%c0_23, %c0_24] : memref<4x128xbf16, #tpu.memory_space<vmem>>, vector<4x128xbf16>
    %cst_25 = arith.constant dense<0.000000e+00> : vector<32x128xf32>
    %27 = tpu.matmul %14, %26, %cst_25 {dimension_numbers = #tpu.dot_dimension_numbers<[1], [0], [0], [1], [0, 0, 1, 1], [], []>} : vector<32x4xbf16>, vector<4x128xbf16>, vector<32x128xf32> -> vector<32x128xf32>
    %28 = arith.addf %25, %27 : vector<32x128xf32>
    %c0_26 = arith.constant 0 : index
    %c0_27 = arith.constant 0 : index
    %29 = vector.load %arg12[%c0_26, %c0_27] : memref<128x128xbf16, #tpu.memory_space<vmem>>, vector<128x128xbf16>
    %cst_28 = arith.constant dense<0.000000e+00> : vector<32x128xf32>
    %30 = tpu.matmul %16, %29, %cst_28 {dimension_numbers = #tpu.dot_dimension_numbers<[1], [0], [0], [1], [0, 0, 1, 1], [], []>} : vector<32x128xbf16>, vector<128x128xbf16>, vector<32x128xf32> -> vector<32x128xf32>
    %31 = arith.addf %28, %30 : vector<32x128xf32>
    %c0_29 = arith.constant 0 : index
    %c0_30 = arith.constant 0 : index
    %32 = vector.load %arg13[%c0_29, %c0_30] : memref<4x128xbf16, #tpu.memory_space<vmem>>, vector<4x128xbf16>
    %cst_31 = arith.constant dense<0.000000e+00> : vector<32x128xf32>
    %33 = tpu.matmul %18, %32, %cst_31 {dimension_numbers = #tpu.dot_dimension_numbers<[1], [0], [0], [1], [0, 0, 1, 1], [], []>} : vector<32x4xbf16>, vector<4x128xbf16>, vector<32x128xf32> -> vector<32x128xf32>
    %34 = arith.addf %31, %33 : vector<32x128xf32>
    %c0_32 = arith.constant 0 : index
    %c0_33 = arith.constant 0 : index
    %35 = vector.load %arg14[%c0_32, %c0_33] : memref<128x128xbf16, #tpu.memory_space<vmem>>, vector<128x128xbf16>
    %cst_34 = arith.constant dense<0.000000e+00> : vector<32x128xf32>
    %36 = tpu.matmul %20, %35, %cst_34 {dimension_numbers = #tpu.dot_dimension_numbers<[1], [0], [0], [1], [0, 0, 1, 1], [], []>} : vector<32x128xbf16>, vector<128x128xbf16>, vector<32x128xf32> -> vector<32x128xf32>
    %37 = arith.addf %34, %36 : vector<32x128xf32>
    %c0_35 = arith.constant 0 : index
    %c0_36 = arith.constant 0 : index
    %38 = vector.load %arg15[%c0_35, %c0_36] : memref<1x128xf32, #tpu.memory_space<vmem>>, vector<1x128xf32>
    %39 = vector.broadcast %38 : vector<1x128xf32> to vector<32x128xf32>
    %40 = arith.addf %37, %39 : vector<32x128xf32>
    %cst_37 = arith.constant 0.000000e+00 : f32
    %41 = vector.broadcast %cst_37 : f32 to vector<32x128xf32>
    %42 = arith.maximumf %40, %41 : vector<32x128xf32>
    %43 = arith.truncf %42 : vector<32x128xf32> to vector<32x128xbf16>
    %c0_38 = arith.constant 0 : index
    %c0_39 = arith.constant 0 : index
    %44 = vector.load %arg16[%c0_38, %c0_39] : memref<128x128xbf16, #tpu.memory_space<vmem>>, vector<128x128xbf16>
    %cst_40 = arith.constant dense<0.000000e+00> : vector<32x128xf32>
    %45 = tpu.matmul %43, %44, %cst_40 {dimension_numbers = #tpu.dot_dimension_numbers<[1], [0], [0], [1], [0, 0, 1, 1], [], []>} : vector<32x128xbf16>, vector<128x128xbf16>, vector<32x128xf32> -> vector<32x128xf32>
    %c0_41 = arith.constant 0 : index
    %c0_42 = arith.constant 0 : index
    %46 = vector.load %arg17[%c0_41, %c0_42] : memref<1x128xf32, #tpu.memory_space<vmem>>, vector<1x128xf32>
    %47 = vector.broadcast %46 : vector<1x128xf32> to vector<32x128xf32>
    %48 = arith.addf %45, %47 : vector<32x128xf32>
    %c0_43 = arith.constant 0 : index
    %c0_44 = arith.constant 0 : index
    %49 = vector.load %arg5[%c0_43, %c0_44] : memref<16x32xbf16, #tpu.memory_space<vmem>>, vector<16x32xbf16>
    %50 = arith.truncf %48 : vector<32x128xf32> to vector<32x128xbf16>
    %cst_45 = arith.constant dense<0.000000e+00> : vector<16x128xf32>
    %51 = tpu.matmul %49, %50, %cst_45 {dimension_numbers = #tpu.dot_dimension_numbers<[1], [0], [0], [1], [0, 0, 1, 1], [], []>} : vector<16x32xbf16>, vector<32x128xbf16>, vector<16x128xf32> -> vector<16x128xf32>
    %52 = arith.truncf %51 : vector<16x128xf32> to vector<16x128xbf16>
    %c0_46 = arith.constant 0 : index
    %c0_47 = arith.constant 0 : index
    %53 = vector.load %arg18[%c0_46, %c0_47] : memref<4x128xbf16, #tpu.memory_space<vmem>>, vector<4x128xbf16>
    %cst_48 = arith.constant dense<0.000000e+00> : vector<16x128xf32>
    %54 = tpu.matmul %8, %53, %cst_48 {dimension_numbers = #tpu.dot_dimension_numbers<[1], [0], [0], [1], [0, 0, 1, 1], [], []>} : vector<16x4xbf16>, vector<4x128xbf16>, vector<16x128xf32> -> vector<16x128xf32>
    %c0_49 = arith.constant 0 : index
    %c0_50 = arith.constant 0 : index
    %55 = vector.load %arg19[%c0_49, %c0_50] : memref<128x128xbf16, #tpu.memory_space<vmem>>, vector<128x128xbf16>
    %cst_51 = arith.constant dense<0.000000e+00> : vector<16x128xf32>
    %56 = tpu.matmul %5, %55, %cst_51 {dimension_numbers = #tpu.dot_dimension_numbers<[1], [0], [0], [1], [0, 0, 1, 1], [], []>} : vector<16x128xbf16>, vector<128x128xbf16>, vector<16x128xf32> -> vector<16x128xf32>
    %57 = arith.addf %54, %56 : vector<16x128xf32>
    %c0_52 = arith.constant 0 : index
    %c0_53 = arith.constant 0 : index
    %58 = vector.load %arg20[%c0_52, %c0_53] : memref<128x128xbf16, #tpu.memory_space<vmem>>, vector<128x128xbf16>
    %cst_54 = arith.constant dense<0.000000e+00> : vector<16x128xf32>
    %59 = tpu.matmul %52, %58, %cst_54 {dimension_numbers = #tpu.dot_dimension_numbers<[1], [0], [0], [1], [0, 0, 1, 1], [], []>} : vector<16x128xbf16>, vector<128x128xbf16>, vector<16x128xf32> -> vector<16x128xf32>
    %60 = arith.addf %57, %59 : vector<16x128xf32>
    %c0_55 = arith.constant 0 : index
    %c0_56 = arith.constant 0 : index
    %61 = vector.load %arg21[%c0_55, %c0_56] : memref<1x128xf32, #tpu.memory_space<vmem>>, vector<1x128xf32>
    %62 = vector.broadcast %61 : vector<1x128xf32> to vector<16x128xf32>
    %63 = arith.addf %60, %62 : vector<16x128xf32>
    %cst_57 = arith.constant 0.000000e+00 : f32
    %64 = vector.broadcast %cst_57 : f32 to vector<16x128xf32>
    %65 = arith.maximumf %63, %64 : vector<16x128xf32>
    %66 = arith.truncf %65 : vector<16x128xf32> to vector<16x128xbf16>
    %c0_58 = arith.constant 0 : index
    %c0_59 = arith.constant 0 : index
    %67 = vector.load %arg22[%c0_58, %c0_59] : memref<128x128xbf16, #tpu.memory_space<vmem>>, vector<128x128xbf16>
    %cst_60 = arith.constant dense<0.000000e+00> : vector<16x128xf32>
    %68 = tpu.matmul %66, %67, %cst_60 {dimension_numbers = #tpu.dot_dimension_numbers<[1], [0], [0], [1], [0, 0, 1, 1], [], []>} : vector<16x128xbf16>, vector<128x128xbf16>, vector<16x128xf32> -> vector<16x128xf32>
    %c0_61 = arith.constant 0 : index
    %c0_62 = arith.constant 0 : index
    %69 = vector.load %arg23[%c0_61, %c0_62] : memref<1x128xf32, #tpu.memory_space<vmem>>, vector<1x128xf32>
    %70 = vector.broadcast %69 : vector<1x128xf32> to vector<16x128xf32>
    %71 = arith.addf %68, %70 : vector<16x128xf32>
    %c0_63 = arith.constant 0 : index
    %72 = memref.load %arg24[%c0_63] : memref<1xf32, #tpu.memory_space<smem>>
    %c0_64 = arith.constant 0 : index
    %c0_65 = arith.constant 0 : index
    %c0_66 = arith.constant 0 : index
    %73 = vector.load %arg25[%c0_64, %c0_65, %c0_66] : memref<1x16x128xf32, #tpu.memory_space<vmem>>, vector<1x16x128xf32>
    %74 = vector.shape_cast %73 : vector<1x16x128xf32> to vector<16x128xf32>
    %75 = vector.shape_cast %71 : vector<16x128xf32> to vector<1x16x128xf32>
    tpu.vector_store %arg25[%c0_64, %c0_65, %c0_66], %75 {strides = array<i32>} : memref<1x16x128xf32, #tpu.memory_space<vmem>>, vector<1x16x128xf32>,
    %c0_67 = arith.constant 0 : index
    %c0_68 = arith.constant 0 : index
    %c0_69 = arith.constant 0 : index
    %76 = vector.load %arg26[%c0_67, %c0_68, %c0_69] : memref<1x32x128xf32, #tpu.memory_space<vmem>>, vector<1x32x128xf32>
    %77 = vector.shape_cast %76 : vector<1x32x128xf32> to vector<32x128xf32>
    %78 = vector.shape_cast %48 : vector<32x128xf32> to vector<1x32x128xf32>
    tpu.vector_store %arg26[%c0_67, %c0_68, %c0_69], %78 {strides = array<i32>} : memref<1x32x128xf32, #tpu.memory_space<vmem>>, vector<1x32x128xf32>,
    %79 = arith.subf %71, %3 : vector<16x128xf32>
    %c0_70 = arith.constant 0 : index
    %c0_71 = arith.constant 0 : index
    %c0_72 = arith.constant 0 : index
    %80 = vector.load %arg27[%c0_70, %c0_71, %c0_72] : memref<1x16x128xf32, #tpu.memory_space<vmem>>, vector<1x16x128xf32>
    %81 = vector.shape_cast %80 : vector<1x16x128xf32> to vector<16x128xf32>
    %82 = vector.shape_cast %79 : vector<16x128xf32> to vector<1x16x128xf32>
    tpu.vector_store %arg27[%c0_70, %c0_71, %c0_72], %82 {strides = array<i32>} : memref<1x16x128xf32, #tpu.memory_space<vmem>>, vector<1x16x128xf32>,
    %cst_73 = arith.constant 0.000000e+00 : f32
    %83 = arith.subf %cst_73, %72 : f32
    %c0_74 = arith.constant 0 : index
    %c0_75 = arith.constant 0 : index
    %84 = vector.load %arg6[%c0_74, %c0_75] : memref<16x16xbf16, #tpu.memory_space<vmem>>, vector<16x16xbf16>
    %cst_76 = arith.constant dense<0.000000e+00> : vector<16x128xf32>
    %85 = tpu.matmul %84, %5, %cst_76 {dimension_numbers = #tpu.dot_dimension_numbers<[1], [0], [0], [1], [0, 0, 1, 1], [], []>} : vector<16x16xbf16>, vector<16x128xbf16>, vector<16x128xf32> -> vector<16x128xf32>
    %86 = vector.broadcast %83 : f32 to vector<16x128xf32>
    %87 = arith.mulf %86, %85 : vector<16x128xf32>
    %c0_77 = arith.constant 0 : index
    %c0_78 = arith.constant 0 : index
    %c0_79 = arith.constant 0 : index
    %88 = vector.load %arg28[%c0_77, %c0_78, %c0_79] : memref<1x16x128xf32, #tpu.memory_space<vmem>>, vector<1x16x128xf32>
    %89 = vector.shape_cast %88 : vector<1x16x128xf32> to vector<16x128xf32>
    %90 = vector.shape_cast %87 : vector<16x128xf32> to vector<1x16x128xf32>
    tpu.vector_store %arg28[%c0_77, %c0_78, %c0_79], %90 {strides = array<i32>} : memref<1x16x128xf32, #tpu.memory_space<vmem>>, vector<1x16x128xf32>,
    %c0_80 = arith.constant 0 : index
    %c0_81 = arith.constant 0 : index
    %91 = vector.load %arg29[%c0_80, %c0_81] : memref<16x128xf32, #tpu.memory_space<vmem>>, vector<16x128xf32>
    tpu.vector_store %arg29[%c0_80, %c0_81], %71 {strides = array<i32>} : memref<16x128xf32, #tpu.memory_space<vmem>>, vector<16x128xf32>,
    %c0_82 = arith.constant 0 : index
    %c0_83 = arith.constant 0 : index
    %92 = vector.load %arg30[%c0_82, %c0_83] : memref<32x128xf32, #tpu.memory_space<vmem>>, vector<32x128xf32>
    tpu.vector_store %arg30[%c0_82, %c0_83], %48 {strides = array<i32>} : memref<32x128xf32, #tpu.memory_space<vmem>>, vector<32x128xf32>,
    return
  }
  func.func @transform_0(%arg0: i32) -> (i32, i32, i32) {
    %c0_i32 = arith.constant 0 : i32
    %c0_i32_0 = arith.constant 0 : i32
    %c0_i32_1 = arith.constant 0 : i32
    return %arg0, %c0_i32, %c0_i32_0 : i32, i32, i32
  }
  func.func @transform_1(%arg0: i32) -> (i32, i32, i32) {
    %c0_i32 = arith.constant 0 : i32
    %c0_i32_0 = arith.constant 0 : i32
    %c0_i32_1 = arith.constant 0 : i32
    return %arg0, %c0_i32, %c0_i32_0 : i32, i32, i32
  }
  func.func @transform_2(%arg0: i32) -> (i32, i32) {
    %c0_i32 = arith.constant 0 : i32
    %c0_i32_0 = arith.constant 0 : i32
    %c0_i32_1 = arith.constant 0 : i32
    return %c0_i32, %c0_i32_0 : i32, i32
  }
  func.func @transform_3(%arg0: i32) -> (i32, i32) {
    %c0_i32 = arith.constant 0 : i32
    %c0_i32_0 = arith.constant 0 : i32
    %c0_i32_1 = arith.constant 0 : i32
    return %c0_i32, %c0_i32_0 : i32, i32
  }
  func.func @transform_4(%arg0: i32) -> (i32, i32) {
    %c0_i32 = arith.constant 0 : i32
    %c0_i32_0 = arith.constant 0 : i32
    %c0_i32_1 = arith.constant 0 : i32
    return %c0_i32, %c0_i32_0 : i32, i32
  }
  func.func @transform_5(%arg0: i32) -> (i32, i32) {
    %c0_i32 = arith.constant 0 : i32
    %c0_i32_0 = arith.constant 0 : i32
    %c0_i32_1 = arith.constant 0 : i32
    return %c0_i32, %c0_i32_0 : i32, i32
  }
  func.func @transform_6(%arg0: i32) -> (i32, i32) {
    %c0_i32 = arith.constant 0 : i32
    %c0_i32_0 = arith.constant 0 : i32
    %c0_i32_1 = arith.constant 0 : i32
    return %c0_i32, %c0_i32_0 : i32, i32
  }
  func.func @transform_7(%arg0: i32) -> (i32, i32) {
    %c0_i32 = arith.constant 0 : i32
    %c0_i32_0 = arith.constant 0 : i32
    %c0_i32_1 = arith.constant 0 : i32
    return %c0_i32, %c0_i32_0 : i32, i32
  }
  func.func @transform_8(%arg0: i32) -> (i32, i32) {
    %c0_i32 = arith.constant 0 : i32
    %c0_i32_0 = arith.constant 0 : i32
    %c0_i32_1 = arith.constant 0 : i32
    return %c0_i32, %c0_i32_0 : i32, i32
  }
  func.func @transform_9(%arg0: i32) -> (i32, i32) {
    %c0_i32 = arith.constant 0 : i32
    %c0_i32_0 = arith.constant 0 : i32
    %c0_i32_1 = arith.constant 0 : i32
    return %c0_i32, %c0_i32_0 : i32, i32
  }
  func.func @transform_10(%arg0: i32) -> (i32, i32) {
    %c0_i32 = arith.constant 0 : i32
    %c0_i32_0 = arith.constant 0 : i32
    %c0_i32_1 = arith.constant 0 : i32
    return %c0_i32, %c0_i32_0 : i32, i32
  }
  func.func @transform_11(%arg0: i32) -> (i32, i32) {
    %c0_i32 = arith.constant 0 : i32
    %c0_i32_0 = arith.constant 0 : i32
    %c0_i32_1 = arith.constant 0 : i32
    return %c0_i32, %c0_i32_0 : i32, i32
  }
  func.func @transform_12(%arg0: i32) -> (i32, i32) {
    %c0_i32 = arith.constant 0 : i32
    %c0_i32_0 = arith.constant 0 : i32
    %c0_i32_1 = arith.constant 0 : i32
    return %c0_i32, %c0_i32_0 : i32, i32
  }
  func.func @transform_13(%arg0: i32) -> (i32, i32) {
    %c0_i32 = arith.constant 0 : i32
    %c0_i32_0 = arith.constant 0 : i32
    %c0_i32_1 = arith.constant 0 : i32
    return %c0_i32, %c0_i32_0 : i32, i32
  }
  func.func @transform_14(%arg0: i32) -> (i32, i32) {
    %c0_i32 = arith.constant 0 : i32
    %c0_i32_0 = arith.constant 0 : i32
    %c0_i32_1 = arith.constant 0 : i32
    return %c0_i32, %c0_i32_0 : i32, i32
  }
  func.func @transform_15(%arg0: i32) -> (i32, i32) {
    %c0_i32 = arith.constant 0 : i32
    %c0_i32_0 = arith.constant 0 : i32
    %c0_i32_1 = arith.constant 0 : i32
    return %c0_i32, %c0_i32_0 : i32, i32
  }
  func.func @transform_16(%arg0: i32) -> (i32, i32) {
    %c0_i32 = arith.constant 0 : i32
    %c0_i32_0 = arith.constant 0 : i32
    %c0_i32_1 = arith.constant 0 : i32
    return %c0_i32, %c0_i32_0 : i32, i32
  }
  func.func @transform_17(%arg0: i32) -> (i32, i32) {
    %c0_i32 = arith.constant 0 : i32
    %c0_i32_0 = arith.constant 0 : i32
    %c0_i32_1 = arith.constant 0 : i32
    return %c0_i32, %c0_i32_0 : i32, i32
  }
  func.func @transform_18(%arg0: i32) -> (i32, i32) {
    %c0_i32 = arith.constant 0 : i32
    %c0_i32_0 = arith.constant 0 : i32
    %c0_i32_1 = arith.constant 0 : i32
    return %c0_i32, %c0_i32_0 : i32, i32
  }
  func.func @transform_19(%arg0: i32) -> (i32, i32) {
    %c0_i32 = arith.constant 0 : i32
    %c0_i32_0 = arith.constant 0 : i32
    %c0_i32_1 = arith.constant 0 : i32
    return %c0_i32, %c0_i32_0 : i32, i32
  }
  func.func @transform_20(%arg0: i32) -> (i32, i32) {
    %c0_i32 = arith.constant 0 : i32
    %c0_i32_0 = arith.constant 0 : i32
    %c0_i32_1 = arith.constant 0 : i32
    return %c0_i32, %c0_i32_0 : i32, i32
  }
  func.func @transform_21(%arg0: i32) -> (i32, i32) {
    %c0_i32 = arith.constant 0 : i32
    %c0_i32_0 = arith.constant 0 : i32
    %c0_i32_1 = arith.constant 0 : i32
    return %c0_i32, %c0_i32_0 : i32, i32
  }
  func.func @transform_22(%arg0: i32) -> (i32, i32) {
    %c0_i32 = arith.constant 0 : i32
    %c0_i32_0 = arith.constant 0 : i32
    %c0_i32_1 = arith.constant 0 : i32
    return %c0_i32, %c0_i32_0 : i32, i32
  }
  func.func @transform_23(%arg0: i32) -> i32 {
    %c0_i32 = arith.constant 0 : i32
    %c0_i32_0 = arith.constant 0 : i32
    return %c0_i32 : i32
  }
  func.func @transform_24(%arg0: i32) -> (i32, i32, i32) {
    %c0_i32 = arith.constant 0 : i32
    %c0_i32_0 = arith.constant 0 : i32
    %c0_i32_1 = arith.constant 0 : i32
    return %arg0, %c0_i32, %c0_i32_0 : i32, i32, i32
  }
  func.func @transform_25(%arg0: i32) -> (i32, i32, i32) {
    %c0_i32 = arith.constant 0 : i32
    %c0_i32_0 = arith.constant 0 : i32
    %c0_i32_1 = arith.constant 0 : i32
    return %arg0, %c0_i32, %c0_i32_0 : i32, i32, i32
  }
  func.func @transform_26(%arg0: i32) -> (i32, i32, i32) {
    %c0_i32 = arith.constant 0 : i32
    %c0_i32_0 = arith.constant 0 : i32
    %c0_i32_1 = arith.constant 0 : i32
    return %arg0, %c0_i32, %c0_i32_0 : i32, i32, i32
  }
  func.func @transform_27(%arg0: i32) -> (i32, i32, i32) {
    %c0_i32 = arith.constant 0 : i32
    %c0_i32_0 = arith.constant 0 : i32
    %c0_i32_1 = arith.constant 0 : i32
    return %arg0, %c0_i32, %c0_i32_0 : i32, i32, i32
  }
}

</mosaic_0001>

<llo_original>
// kernel: tpu_custom_call.1
$region0: #{tpu_custom_call.1}
  #allocation0 [shape = 'u32[]', space=smem, size = 0x4, offset = 0x4, fixed_abs, tag = 'smem constant byte address 0x4 - core index']
  #allocation1 [shape = 'u32[144,128]{1,0:T(1,128)}', space=vmem, size = 0x12000, scoped, tag = 'internal scratch']
  #allocation2 [shape = 'f32[16,128]{1,0:T(8,128)}', space=vmem, size = 0x2000, scoped, tag = 'scratch operand']
  #allocation3 [shape = 'f32[32,128]{1,0:T(8,128)}', space=vmem, size = 0x4000, scoped, tag = 'scratch operand']
  #allocation4 [shape = 'f32[1]{0:T(128)S(6)}', space=smem, size = 0x200, scoped, tag = 'scoped memory for tpu_custom_call.1']
  %s0 = inlined_call_operand.vmem [shape: bf16[3,16,4], index: 0, kind: input, shape index: {}]
  %s1 = inlined_call_operand.vmem [shape: bf16[3,32,4], index: 1, kind: input, shape index: {}]
  %s2 = inlined_call_operand.vmem [shape: bf16[32,16], index: 2, kind: input, shape index: {}]
  %s3 = inlined_call_operand.vmem [shape: bf16[32,16], index: 3, kind: input, shape index: {}]
  %s4 = inlined_call_operand.hbm [shape: bf16[16,32], index: 4, kind: input, shape index: {}]
  %s5 = inlined_call_operand.hbm [shape: bf16[16,16], index: 5, kind: input, shape index: {}]
  %s6 = inlined_call_operand.hbm [shape: bf16[16,128], index: 6, kind: input, shape index: {}]
  %s7 = inlined_call_operand.hbm [shape: bf16[32,128], index: 7, kind: input, shape index: {}]
  %s8 = inlined_call_operand.hbm [shape: bf16[4,128], index: 8, kind: input, shape index: {}]
  %s9 = inlined_call_operand.vmem [shape: bf16[128,128], index: 9, kind: input, shape index: {}]
  %s10 = inlined_call_operand.hbm [shape: bf16[4,128], index: 10, kind: input, shape index: {}]
  %s11 = inlined_call_operand.vmem [shape: bf16[128,128], index: 11, kind: input, shape index: {}]
  %s12 = inlined_call_operand.hbm [shape: bf16[4,128], index: 12, kind: input, shape index: {}]
  %s13 = inlined_call_operand.hbm [shape: bf16[128,128], index: 13, kind: input, shape index: {}]
  %s14 = inlined_call_operand.hbm [shape: f32[1,128], index: 14, kind: input, shape index: {}]
  %s15 = inlined_call_operand.vmem [shape: bf16[128,128], index: 15, kind: input, shape index: {}]
  %s16 = inlined_call_operand.vmem [shape: f32[1,128], index: 16, kind: input, shape index: {}]
  %s17 = inlined_call_operand.vmem [shape: bf16[4,128], index: 17, kind: input, shape index: {}]
  %s18 = inlined_call_operand.hbm [shape: bf16[128,128], index: 18, kind: input, shape index: {}]
  %s19 = inlined_call_operand.hbm [shape: bf16[128,128], index: 19, kind: input, shape index: {}]
  %s20 = inlined_call_operand.vmem [shape: f32[1,128], index: 20, kind: input, shape index: {}]
  %s21 = inlined_call_operand.hbm [shape: bf16[128,128], index: 21, kind: input, shape index: {}]
  %s22 = inlined_call_operand.vmem [shape: f32[1,128], index: 22, kind: input, shape index: {}]
  %s23 = inlined_call_operand.<no memory space> [shape: f32[1], index: 23, kind: input, shape index: {}]
  %s24 = inlined_call_operand.hbm [shape: f32[3,16,128], index: 24, kind: output, shape index: {0}]
  %s25 = inlined_call_operand.hbm [shape: f32[3,32,128], index: 25, kind: output, shape index: {1}]
  %s26 = inlined_call_operand.hbm [shape: f32[3,16,128], index: 26, kind: output, shape index: {2}]
  %s27 = inlined_call_operand.hbm [shape: f32[3,16,128], index: 27, kind: output, shape index: {3}]
  %28 = xla_tuple %s24, %s25, %s26, %s27
  %s29 = sld [smem:[#allocation0]]
  $region205: #{tpu_custom_call.1} parent=0
    _
  %s31 = ssub.s32 1, %s29
  %s32 = scalar_select 0, %s31, %s29
  %33 = sst [smem:[#allocation4]] %s23
  $region1: #{tpu_custom_call.1} parent=0
    #allocation5 [shape = 'u8[4096]{0}', space=vmem, size = 0x1000, scoped, tag = 'input window, operand 4, single buffered']
    #allocation6 [shape = 's32[2]{0}', space=sflag, size = 0x8, scoped, tag = 'scoped memory for tpu_custom_call.1']
    #allocation7 [shape = 's32[2]{0}', space=sflag, size = 0x8, scoped, tag = 'scoped memory for tpu_custom_call.1']
    #allocation8 [shape = 'u8[4096]{0}', space=vmem, size = 0x1000, scoped, tag = 'input window, operand 5, single buffered']
    #allocation9 [shape = 's32[1]{0}', space=sflag, size = 0x4, scoped, tag = 'scoped memory for tpu_custom_call.1']
    #allocation10 [shape = 'u8[4096]{0}', space=vmem, size = 0x1000, scoped, tag = 'input window, operand 6, single buffered']
    #allocation11 [shape = 'u8[8192]{0}', space=vmem, size = 0x2000, scoped, tag = 'input window, operand 7, single buffered']
    #allocation12 [shape = 's32[1]{0}', space=sflag, size = 0x4, scoped, tag = 'scoped memory for tpu_custom_call.1']
    #allocation13 [shape = 'u8[1024]{0}', space=vmem, size = 0x400, scoped, tag = 'input window, operand 8, single buffered']
    #allocation14 [shape = 'u8[1024]{0}', space=vmem, size = 0x400, scoped, tag = 'input window, operand 10, single buffered']
    #allocation15 [shape = 's32[1]{0}', space=sflag, size = 0x4, scoped, tag = 'scoped memory for tpu_custom_call.1']
    #allocation16 [shape = 'u8[1024]{0}', space=vmem, size = 0x400, scoped, tag = 'input window, operand 12, single buffered']
    #allocation17 [shape = 'u8[32768]{0}', space=vmem, size = 0x8000, scoped, tag = 'input window, operand 13, single buffered']
    #allocation18 [shape = 's32[1]{0}', space=sflag, size = 0x4, scoped, tag = 'scoped memory for tpu_custom_call.1']
    #allocation19 [shape = 'u8[512]{0}', space=vmem, size = 0x400, scoped, tag = 'input window, operand 14, single buffered']
    #allocation20 [shape = 'u8[32768]{0}', space=vmem, size = 0x8000, scoped, tag = 'input window, operand 18, single buffered']
    #allocation21 [shape = 's32[1]{0}', space=sflag, size = 0x4, scoped, tag = 'scoped memory for tpu_custom_call.1']
    #allocation22 [shape = 'u8[32768]{0}', space=vmem, size = 0x8000, scoped, tag = 'input window, operand 19, single buffered']
    #allocation23 [shape = 'u8[32768]{0}', space=vmem, size = 0x8000, scoped, tag = 'input window, operand 21, single buffered']
    #allocation24 [shape = 's32[1]{0}', space=sflag, size = 0x4, scoped, tag = 'scoped memory for tpu_custom_call.1']
    #allocation25 [shape = 'u8[16384]{0}', space=vmem, size = 0x4000, scoped, tag = 'output window, operand 0']
    #allocation26 [shape = 'u8[32768]{0}', space=vmem, size = 0x8000, scoped, tag = 'output window, operand 1']
    #allocation27 [shape = 's32[2]{0}', space=sflag, size = 0x8, scoped, tag = 'scoped memory for tpu_custom_call.1']
    #allocation28 [shape = 'u8[16384]{0}', space=vmem, size = 0x4000, scoped, tag = 'output window, operand 2']
    #allocation29 [shape = 'u8[16384]{0}', space=vmem, size = 0x4000, scoped, tag = 'output window, operand 3']
    #allocation30 [shape = 's32[2]{0}', space=sflag, size = 0x8, scoped, tag = 'scoped memory for tpu_custom_call.1']
    %34 = vsyncpa [#allocation6], 0
    %35 = vsyncpa [#allocation9], 0
    %36 = vsyncpa [#allocation12], 0
    %37 = vsyncpa [#allocation15], 0
    %38 = vsyncpa [#allocation18], 0
    %39 = vsyncpa [#allocation21], 0
    %40 = vsyncpa [#allocation24], 0
    %41 = vsyncpa [#allocation7], 0
    %s42 = scalar_lea.sflag [#allocation7], 1
    %43 = vsyncpa %s42, 0
    %44 = vsyncpa [#allocation27], 0
    %s45 = scalar_lea.sflag [#allocation27], 1
    %46 = vsyncpa %s45, 0
    %47 = vsyncpa [#allocation30], 0
    %s48 = scalar_lea.sflag [#allocation30], 1
    %49 = vsyncpa %s48, 0
    loop: start=0, step=1, limit=5
    $region2: #{tpu_custom_call.1} parent=1 // loop_pre_header
      _
    $region3: #{tpu_custom_call.1} parent=1 // loop_header
      %s51 = sphi 0, %s55
      %p52 = scmp.ge.s32.totalorder %s51, 5
      %s61 = sphi 0, %s63
      %s64 = sphi 0, %s61
      %s65 = sphi 0, %s64
      %s81 = sphi 0, %s65
      %s87 = sphi 0, %s89
      %s90 = sphi 0, %s87
      %s91 = sphi 0, %s90
      %s107 = sphi 0, %s91
      %s111 = sphi 0, %s111
      %s113 = sphi 0, %s111
      %s114 = sphi 0, %s113
      %s128 = sphi 0, %s114
      %s132 = sphi 0, %s132
      %s134 = sphi 0, %s132
      %s135 = sphi 0, %s134
      %s149 = sphi 0, %s135
      %s153 = sphi 0, %s153
      %s155 = sphi 0, %s153
      %s156 = sphi 0, %s155
      %s170 = sphi 0, %s156
      %s174 = sphi 0, %s174
      %s176 = sphi 0, %s174
      %s177 = sphi 0, %s176
      %s191 = sphi 0, %s177
      %s195 = sphi 0, %s195
      %s197 = sphi 0, %s195
      %s198 = sphi 0, %s197
      %s212 = sphi 0, %s198
      %s216 = sphi 0, %s216
      %s218 = sphi 0, %s216
      %s219 = sphi 0, %s218
      %s233 = sphi 0, %s219
      %s237 = sphi 0, %s237
      %s239 = sphi 0, %s237
      %s240 = sphi 0, %s239
      %s254 = sphi 0, %s240
      %s258 = sphi 0, %s258
      %s260 = sphi 0, %s258
      %s261 = sphi 0, %s260
      %s275 = sphi 0, %s261
      %s279 = sphi 0, %s279
      %s281 = sphi 0, %s279
      %s282 = sphi 0, %s281
      %s296 = sphi 0, %s282
      %s300 = sphi 0, %s300
      %s302 = sphi 0, %s300
      %s303 = sphi 0, %s302
      %s317 = sphi 0, %s303
      %s321 = sphi 0, %s321
      %s323 = sphi 0, %s321
      %s324 = sphi 0, %s323
      %s338 = sphi 0, %s324
      %s342 = sphi 0, %s342
      %s344 = sphi 0, %s342
      %s345 = sphi 0, %s344
      %s359 = sphi 0, %s345
      %s363 = sphi 0, %s363
      %s365 = sphi 0, %s363
      %s366 = sphi 0, %s365
      %s380 = sphi 0, %s366
      %s384 = sphi 0, %s384
      %s386 = sphi 0, %s384
      %s387 = sphi 0, %s386
      %s401 = sphi 0, %s387
      %s405 = sphi 0, %s405
      %s407 = sphi 0, %s405
      %s408 = sphi 0, %s407
      %s422 = sphi 0, %s408
      %s426 = sphi 0, %s426
      %s428 = sphi 0, %s426
      %s429 = sphi 0, %s428
      %s443 = sphi 0, %s429
      %s447 = sphi 0, %s447
      %s449 = sphi 0, %s447
      %s450 = sphi 0, %s449
      %s464 = sphi 0, %s450
      %s468 = sphi 0, %s468
      %s470 = sphi 0, %s468
      %s471 = sphi 0, %s470
      %s485 = sphi 0, %s471
      %s489 = sphi 0, %s489
      %s491 = sphi 0, %s489
      %s492 = sphi 0, %s491
      %s506 = sphi 0, %s492
      %s510 = sphi 0, %s510
      %s512 = sphi 0, %s510
      %s513 = sphi 0, %s512
      %s527 = sphi 0, %s513
      %s531 = sphi 0, %s531
      %s533 = sphi 0, %s531
      %s534 = sphi 0, %s533
      %s548 = sphi 0, %s534
      %s552 = sphi 0, %s552
      %s554 = sphi 0, %s552
      %s555 = sphi 0, %s554
      %s569 = sphi 0, %s555
      %s575 = sphi 0, %s577
      %s578 = sphi 0, %s575
      %s579 = sphi 0, %s578
      %s595 = sphi 0, %s579
      %s601 = sphi 0, %s603
      %s604 = sphi 0, %s601
      %s605 = sphi 0, %s604
      %s621 = sphi 0, %s605
      %s627 = sphi 0, %s629
      %s630 = sphi 0, %s627
      %s631 = sphi 0, %s630
      %s647 = sphi 0, %s631
      %s653 = sphi 0, %s655
      %s656 = sphi 0, %s653
      %s657 = sphi 0, %s656
      %s673 = sphi 0, %s657
    $region4: #{tpu_custom_call.1} parent=1 // loop_header_branch
      %54 = sbr.rel (%p52) target = $region8
    $region5: #{tpu_custom_call.1} parent=1 // loop_body
      %s56 = ssub.s32 %s51, 1
      %s57 = ssub.s32 %s51, 2
      %s58 = sadd.s32 %s51, 1
      %s59 = ssub.s32 %s51, %s58
      %p60 = scmp.eq.s32.totalorder %s59, 0
      %s62 = sadd.s32 %s61, 1
      %s63 = scalar_select %p60, %s61, %s62
      %p66 = pneg %p60
      %p67 = scmp.eq.s32.totalorder %s51, 2
      %p68 = por %p66, %p67
      %p69 = scmp.ne.s32.totalorder %s61, %s64
      %p70 = scmp.eq.s32.totalorder %s51, 0
      %p71 = por %p69, %p70
      %p72 = scmp.ne.s32.totalorder %s61, %s64
      %p73 = scmp.eq.s32.totalorder %s56, 2
      %p74 = por %p72, %p73
      %p75 = scmp.ne.s32.totalorder %s64, %s65
      %p76 = scmp.eq.s32.totalorder %s56, 0
      %p77 = por %p75, %p76
      %p78 = scmp.ne.s32.totalorder %s64, %s65
      %p79 = scmp.eq.s32.totalorder %s57, 2
      %p80 = por %p78, %p79
      %p82 = scmp.ne.s32.totalorder %s65, %s81
      %p83 = scmp.eq.s32.totalorder %s57, 0
      %p84 = por %p82, %p83
      %s85 = ssub.s32 %s51, %s58
      %p86 = scmp.eq.s32.totalorder %s85, 0
      %s88 = sadd.s32 %s87, 1
      %s89 = scalar_select %p86, %s87, %s88
      %p92 = pneg %p86
      %p93 = scmp.eq.s32.totalorder %s51, 2
      %p94 = por %p92, %p93
      %p95 = scmp.ne.s32.totalorder %s87, %s90
      %p96 = scmp.eq.s32.totalorder %s51, 0
      %p97 = por %p95, %p96
      %p98 = scmp.ne.s32.totalorder %s87, %s90
      %p99 = scmp.eq.s32.totalorder %s56, 2
      %p100 = por %p98, %p99
      %p101 = scmp.ne.s32.totalorder %s90, %s91
      %p102 = scmp.eq.s32.totalorder %s56, 0
      %p103 = por %p101, %p102
      %p104 = scmp.ne.s32.totalorder %s90, %s91
      %p105 = scmp.eq.s32.totalorder %s57, 2
      %p106 = por %p104, %p105
      %p108 = scmp.ne.s32.totalorder %s91, %s107
      %p109 = scmp.eq.s32.totalorder %s57, 0
      %p110 = por %p108, %p109
      %s112 = sadd.s32 %s111, 1
      %p115 = scmp.eq.s32.totalorder %s51, 2
      %p116 = scmp.ne.s32.totalorder %s111, %s113
      %p117 = scmp.eq.s32.totalorder %s51, 0
      %p118 = por %p116, %p117
      %p119 = scmp.ne.s32.totalorder %s111, %s113
      %p120 = scmp.eq.s32.totalorder %s56, 2
      %p121 = por %p119, %p120
      %p122 = scmp.ne.s32.totalorder %s113, %s114
      %p123 = scmp.eq.s32.totalorder %s56, 0
      %p124 = por %p122, %p123
      %p125 = scmp.ne.s32.totalorder %s113, %s114
      %p126 = scmp.eq.s32.totalorder %s57, 2
      %p127 = por %p125, %p126
      %p129 = scmp.ne.s32.totalorder %s114, %s128
      %p130 = scmp.eq.s32.totalorder %s57, 0
      %p131 = por %p129, %p130
      %s133 = sadd.s32 %s132, 1
      %p136 = scmp.eq.s32.totalorder %s51, 2
      %p137 = scmp.ne.s32.totalorder %s132, %s134
      %p138 = scmp.eq.s32.totalorder %s51, 0
      %p139 = por %p137, %p138
      %p140 = scmp.ne.s32.totalorder %s132, %s134
      %p141 = scmp.eq.s32.totalorder %s56, 2
      %p142 = por %p140, %p141
      %p143 = scmp.ne.s32.totalorder %s134, %s135
      %p144 = scmp.eq.s32.totalorder %s56, 0
      %p145 = por %p143, %p144
      %p146 = scmp.ne.s32.totalorder %s134, %s135
      %p147 = scmp.eq.s32.totalorder %s57, 2
      %p148 = por %p146, %p147
      %p150 = scmp.ne.s32.totalorder %s135, %s149
      %p151 = scmp.eq.s32.totalorder %s57, 0
      %p152 = por %p150, %p151
      %s154 = sadd.s32 %s153, 1
      %p157 = scmp.eq.s32.totalorder %s51, 2
      %p158 = scmp.ne.s32.totalorder %s153, %s155
      %p159 = scmp.eq.s32.totalorder %s51, 0
      %p160 = por %p158, %p159
      %p161 = scmp.ne.s32.totalorder %s153, %s155
      %p162 = scmp.eq.s32.totalorder %s56, 2
      %p163 = por %p161, %p162
      %p164 = scmp.ne.s32.totalorder %s155, %s156
      %p165 = scmp.eq.s32.totalorder %s56, 0
      %p166 = por %p164, %p165
      %p167 = scmp.ne.s32.totalorder %s155, %s156
      %p168 = scmp.eq.s32.totalorder %s57, 2
      %p169 = por %p167, %p168
      %p171 = scmp.ne.s32.totalorder %s156, %s170
      %p172 = scmp.eq.s32.totalorder %s57, 0
      %p173 = por %p171, %p172
      %s175 = sadd.s32 %s174, 1
      %p178 = scmp.eq.s32.totalorder %s51, 2
      %p179 = scmp.ne.s32.totalorder %s174, %s176
      %p180 = scmp.eq.s32.totalorder %s51, 0
      %p181 = por %p179, %p180
      %p182 = scmp.ne.s32.totalorder %s174, %s176
      %p183 = scmp.eq.s32.totalorder %s56, 2
      %p184 = por %p182, %p183
      %p185 = scmp.ne.s32.totalorder %s176, %s177
      %p186 = scmp.eq.s32.totalorder %s56, 0
      %p187 = por %p185, %p186
      %p188 = scmp.ne.s32.totalorder %s176, %s177
      %p189 = scmp.eq.s32.totalorder %s57, 2
      %p190 = por %p188, %p189
      %p192 = scmp.ne.s32.totalorder %s177, %s191
      %p193 = scmp.eq.s32.totalorder %s57, 0
      %p194 = por %p192, %p193
      %s196 = sadd.s32 %s195, 1
      %p199 = scmp.eq.s32.totalorder %s51, 2
      %p200 = scmp.ne.s32.totalorder %s195, %s197
      %p201 = scmp.eq.s32.totalorder %s51, 0
      %p202 = por %p200, %p201
      %p203 = scmp.ne.s32.totalorder %s195, %s197
      %p204 = scmp.eq.s32.totalorder %s56, 2
      %p205 = por %p203, %p204
      %p206 = scmp.ne.s32.totalorder %s197, %s198
      %p207 = scmp.eq.s32.totalorder %s56, 0
      %p208 = por %p206, %p207
      %p209 = scmp.ne.s32.totalorder %s197, %s198
      %p210 = scmp.eq.s32.totalorder %s57, 2
      %p211 = por %p209, %p210
      %p213 = scmp.ne.s32.totalorder %s198, %s212
      %p214 = scmp.eq.s32.totalorder %s57, 0
      %p215 = por %p213, %p214
      %s217 = sadd.s32 %s216, 1
      %p220 = scmp.eq.s32.totalorder %s51, 2
      %p221 = scmp.ne.s32.totalorder %s216, %s218
      %p222 = scmp.eq.s32.totalorder %s51, 0
      %p223 = por %p221, %p222
      %p224 = scmp.ne.s32.totalorder %s216, %s218
      %p225 = scmp.eq.s32.totalorder %s56, 2
      %p226 = por %p224, %p225
      %p227 = scmp.ne.s32.totalorder %s218, %s219
      %p228 = scmp.eq.s32.totalorder %s56, 0
      %p229 = por %p227, %p228
      %p230 = scmp.ne.s32.totalorder %s218, %s219
      %p231 = scmp.eq.s32.totalorder %s57, 2
      %p232 = por %p230, %p231
      %p234 = scmp.ne.s32.totalorder %s219, %s233
      %p235 = scmp.eq.s32.totalorder %s57, 0
      %p236 = por %p234, %p235
      %s238 = sadd.s32 %s237, 1
      %p241 = scmp.eq.s32.totalorder %s51, 2
      %p242 = scmp.ne.s32.totalorder %s237, %s239
      %p243 = scmp.eq.s32.totalorder %s51, 0
      %p244 = por %p242, %p243
      %p245 = scmp.ne.s32.totalorder %s237, %s239
      %p246 = scmp.eq.s32.totalorder %s56, 2
      %p247 = por %p245, %p246
      %p248 = scmp.ne.s32.totalorder %s239, %s240
      %p249 = scmp.eq.s32.totalorder %s56, 0
      %p250 = por %p248, %p249
      %p251 = scmp.ne.s32.totalorder %s239, %s240
      %p252 = scmp.eq.s32.totalorder %s57, 2
      %p253 = por %p251, %p252
      %p255 = scmp.ne.s32.totalorder %s240, %s254
      %p256 = scmp.eq.s32.totalorder %s57, 0
      %p257 = por %p255, %p256
      %s259 = sadd.s32 %s258, 1
      %p262 = scmp.eq.s32.totalorder %s51, 2
      %p263 = scmp.ne.s32.totalorder %s258, %s260
      %p264 = scmp.eq.s32.totalorder %s51, 0
      %p265 = por %p263, %p264
      %p266 = scmp.ne.s32.totalorder %s258, %s260
      %p267 = scmp.eq.s32.totalorder %s56, 2
      %p268 = por %p266, %p267
      %p269 = scmp.ne.s32.totalorder %s260, %s261
      %p270 = scmp.eq.s32.totalorder %s56, 0
      %p271 = por %p269, %p270
      %p272 = scmp.ne.s32.totalorder %s260, %s261
      %p273 = scmp.eq.s32.totalorder %s57, 2
      %p274 = por %p272, %p273
      %p276 = scmp.ne.s32.totalorder %s261, %s275
      %p277 = scmp.eq.s32.totalorder %s57, 0
      %p278 = por %p276, %p277
      %s280 = sadd.s32 %s279, 1
      %p283 = scmp.eq.s32.totalorder %s51, 2
      %p284 = scmp.ne.s32.totalorder %s279, %s281
      %p285 = scmp.eq.s32.totalorder %s51, 0
      %p286 = por %p284, %p285
      %p287 = scmp.ne.s32.totalorder %s279, %s281
      %p288 = scmp.eq.s32.totalorder %s56, 2
      %p289 = por %p287, %p288
      %p290 = scmp.ne.s32.totalorder %s281, %s282
      %p291 = scmp.eq.s32.totalorder %s56, 0
      %p292 = por %p290, %p291
      %p293 = scmp.ne.s32.totalorder %s281, %s282
      %p294 = scmp.eq.s32.totalorder %s57, 2
      %p295 = por %p293, %p294
      %p297 = scmp.ne.s32.totalorder %s282, %s296
      %p298 = scmp.eq.s32.totalorder %s57, 0
      %p299 = por %p297, %p298
      %s301 = sadd.s32 %s300, 1
      %p304 = scmp.eq.s32.totalorder %s51, 2
      %p305 = scmp.ne.s32.totalorder %s300, %s302
      %p306 = scmp.eq.s32.totalorder %s51, 0
      %p307 = por %p305, %p306
      %p308 = scmp.ne.s32.totalorder %s300, %s302
      %p309 = scmp.eq.s32.totalorder %s56, 2
      %p310 = por %p308, %p309
      %p311 = scmp.ne.s32.totalorder %s302, %s303
      %p312 = scmp.eq.s32.totalorder %s56, 0
      %p313 = por %p311, %p312
      %p314 = scmp.ne.s32.totalorder %s302, %s303
      %p315 = scmp.eq.s32.totalorder %s57, 2
      %p316 = por %p314, %p315
      %p318 = scmp.ne.s32.totalorder %s303, %s317
      %p319 = scmp.eq.s32.totalorder %s57, 0
      %p320 = por %p318, %p319
      %s322 = sadd.s32 %s321, 1
      %p325 = scmp.eq.s32.totalorder %s51, 2
      %p326 = scmp.ne.s32.totalorder %s321, %s323
      %p327 = scmp.eq.s32.totalorder %s51, 0
      %p328 = por %p326, %p327
      %p329 = scmp.ne.s32.totalorder %s321, %s323
      %p330 = scmp.eq.s32.totalorder %s56, 2
      %p331 = por %p329, %p330
      %p332 = scmp.ne.s32.totalorder %s323, %s324
      %p333 = scmp.eq.s32.totalorder %s56, 0
      %p334 = por %p332, %p333
      %p335 = scmp.ne.s32.totalorder %s323, %s324
      %p336 = scmp.eq.s32.totalorder %s57, 2
      %p337 = por %p335, %p336
      %p339 = scmp.ne.s32.totalorder %s324, %s338
      %p340 = scmp.eq.s32.totalorder %s57, 0
      %p341 = por %p339, %p340
      %s343 = sadd.s32 %s342, 1
      %p346 = scmp.eq.s32.totalorder %s51, 2
      %p347 = scmp.ne.s32.totalorder %s342, %s344
      %p348 = scmp.eq.s32.totalorder %s51, 0
      %p349 = por %p347, %p348
      %p350 = scmp.ne.s32.totalorder %s342, %s344
      %p351 = scmp.eq.s32.totalorder %s56, 2
      %p352 = por %p350, %p351
      %p353 = scmp.ne.s32.totalorder %s344, %s345
      %p354 = scmp.eq.s32.totalorder %s56, 0
      %p355 = por %p353, %p354
      %p356 = scmp.ne.s32.totalorder %s344, %s345
      %p357 = scmp.eq.s32.totalorder %s57, 2
      %p358 = por %p356, %p357
      %p360 = scmp.ne.s32.totalorder %s345, %s359
      %p361 = scmp.eq.s32.totalorder %s57, 0
      %p362 = por %p360, %p361
      %s364 = sadd.s32 %s363, 1
      %p367 = scmp.eq.s32.totalorder %s51, 2
      %p368 = scmp.ne.s32.totalorder %s363, %s365
      %p369 = scmp.eq.s32.totalorder %s51, 0
      %p370 = por %p368, %p369
      %p371 = scmp.ne.s32.totalorder %s363, %s365
      %p372 = scmp.eq.s32.totalorder %s56, 2
      %p373 = por %p371, %p372
      %p374 = scmp.ne.s32.totalorder %s365, %s366
      %p375 = scmp.eq.s32.totalorder %s56, 0
      %p376 = por %p374, %p375
      %p377 = scmp.ne.s32.totalorder %s365, %s366
      %p378 = scmp.eq.s32.totalorder %s57, 2
      %p379 = por %p377, %p378
      %p381 = scmp.ne.s32.totalorder %s366, %s380
      %p382 = scmp.eq.s32.totalorder %s57, 0
      %p383 = por %p381, %p382
      %s385 = sadd.s32 %s384, 1
      %p388 = scmp.eq.s32.totalorder %s51, 2
      %p389 = scmp.ne.s32.totalorder %s384, %s386
      %p390 = scmp.eq.s32.totalorder %s51, 0
      %p391 = por %p389, %p390
      %p392 = scmp.ne.s32.totalorder %s384, %s386
      %p393 = scmp.eq.s32.totalorder %s56, 2
      %p394 = por %p392, %p393
      %p395 = scmp.ne.s32.totalorder %s386, %s387
      %p396 = scmp.eq.s32.totalorder %s56, 0
      %p397 = por %p395, %p396
      %p398 = scmp.ne.s32.totalorder %s386, %s387
      %p399 = scmp.eq.s32.totalorder %s57, 2
      %p400 = por %p398, %p399
      %p402 = scmp.ne.s32.totalorder %s387, %s401
      %p403 = scmp.eq.s32.totalorder %s57, 0
      %p404 = por %p402, %p403
      %s406 = sadd.s32 %s405, 1
      %p409 = scmp.eq.s32.totalorder %s51, 2
      %p410 = scmp.ne.s32.totalorder %s405, %s407
      %p411 = scmp.eq.s32.totalorder %s51, 0
      %p412 = por %p410, %p411
      %p413 = scmp.ne.s32.totalorder %s405, %s407
      %p414 = scmp.eq.s32.totalorder %s56, 2
      %p415 = por %p413, %p414
      %p416 = scmp.ne.s32.totalorder %s407, %s408
      %p417 = scmp.eq.s32.totalorder %s56, 0
      %p418 = por %p416, %p417
      %p419 = scmp.ne.s32.totalorder %s407, %s408
      %p420 = scmp.eq.s32.totalorder %s57, 2
      %p421 = por %p419, %p420
      %p423 = scmp.ne.s32.totalorder %s408, %s422
      %p424 = scmp.eq.s32.totalorder %s57, 0
      %p425 = por %p423, %p424
      %s427 = sadd.s32 %s426, 1
      %p430 = scmp.eq.s32.totalorder %s51, 2
      %p431 = scmp.ne.s32.totalorder %s426, %s428
      %p432 = scmp.eq.s32.totalorder %s51, 0
      %p433 = por %p431, %p432
      %p434 = scmp.ne.s32.totalorder %s426, %s428
      %p435 = scmp.eq.s32.totalorder %s56, 2
      %p436 = por %p434, %p435
      %p437 = scmp.ne.s32.totalorder %s428, %s429
      %p438 = scmp.eq.s32.totalorder %s56, 0
      %p439 = por %p437, %p438
      %p440 = scmp.ne.s32.totalorder %s428, %s429
      %p441 = scmp.eq.s32.totalorder %s57, 2
      %p442 = por %p440, %p441
      %p444 = scmp.ne.s32.totalorder %s429, %s443
      %p445 = scmp.eq.s32.totalorder %s57, 0
      %p446 = por %p444, %p445
      %s448 = sadd.s32 %s447, 1
      %p451 = scmp.eq.s32.totalorder %s51, 2
      %p452 = scmp.ne.s32.totalorder %s447, %s449
      %p453 = scmp.eq.s32.totalorder %s51, 0
      %p454 = por %p452, %p453
      %p455 = scmp.ne.s32.totalorder %s447, %s449
      %p456 = scmp.eq.s32.totalorder %s56, 2
      %p457 = por %p455, %p456
      %p458 = scmp.ne.s32.totalorder %s449, %s450
      %p459 = scmp.eq.s32.totalorder %s56, 0
      %p460 = por %p458, %p459
      %p461 = scmp.ne.s32.totalorder %s449, %s450
      %p462 = scmp.eq.s32.totalorder %s57, 2
      %p463 = por %p461, %p462
      %p465 = scmp.ne.s32.totalorder %s450, %s464
      %p466 = scmp.eq.s32.totalorder %s57, 0
      %p467 = por %p465, %p466
      %s469 = sadd.s32 %s468, 1
      %p472 = scmp.eq.s32.totalorder %s51, 2
      %p473 = scmp.ne.s32.totalorder %s468, %s470
      %p474 = scmp.eq.s32.totalorder %s51, 0
      %p475 = por %p473, %p474
      %p476 = scmp.ne.s32.totalorder %s468, %s470
      %p477 = scmp.eq.s32.totalorder %s56, 2
      %p478 = por %p476, %p477
      %p479 = scmp.ne.s32.totalorder %s470, %s471
      %p480 = scmp.eq.s32.totalorder %s56, 0
      %p481 = por %p479, %p480
      %p482 = scmp.ne.s32.totalorder %s470, %s471
      %p483 = scmp.eq.s32.totalorder %s57, 2
      %p484 = por %p482, %p483
      %p486 = scmp.ne.s32.totalorder %s471, %s485
      %p487 = scmp.eq.s32.totalorder %s57, 0
      %p488 = por %p486, %p487
      %s490 = sadd.s32 %s489, 1
      %p493 = scmp.eq.s32.totalorder %s51, 2
      %p494 = scmp.ne.s32.totalorder %s489, %s491
      %p495 = scmp.eq.s32.totalorder %s51, 0
      %p496 = por %p494, %p495
      %p497 = scmp.ne.s32.totalorder %s489, %s491
      %p498 = scmp.eq.s32.totalorder %s56, 2
      %p499 = por %p497, %p498
      %p500 = scmp.ne.s32.totalorder %s491, %s492
      %p501 = scmp.eq.s32.totalorder %s56, 0
      %p502 = por %p500, %p501
      %p503 = scmp.ne.s32.totalorder %s491, %s492
      %p504 = scmp.eq.s32.totalorder %s57, 2
      %p505 = por %p503, %p504
      %p507 = scmp.ne.s32.totalorder %s492, %s506
      %p508 = scmp.eq.s32.totalorder %s57, 0
      %p509 = por %p507, %p508
      %s511 = sadd.s32 %s510, 1
      %p514 = scmp.eq.s32.totalorder %s51, 2
      %p515 = scmp.ne.s32.totalorder %s510, %s512
      %p516 = scmp.eq.s32.totalorder %s51, 0
      %p517 = por %p515, %p516
      %p518 = scmp.ne.s32.totalorder %s510, %s512
      %p519 = scmp.eq.s32.totalorder %s56, 2
      %p520 = por %p518, %p519
      %p521 = scmp.ne.s32.totalorder %s512, %s513
      %p522 = scmp.eq.s32.totalorder %s56, 0
      %p523 = por %p521, %p522
      %p524 = scmp.ne.s32.totalorder %s512, %s513
      %p525 = scmp.eq.s32.totalorder %s57, 2
      %p526 = por %p524, %p525
      %p528 = scmp.ne.s32.totalorder %s513, %s527
      %p529 = scmp.eq.s32.totalorder %s57, 0
      %p530 = por %p528, %p529
      %s532 = sadd.s32 %s531, 1
      %p535 = scmp.eq.s32.totalorder %s51, 2
      %p536 = scmp.ne.s32.totalorder %s531, %s533
      %p537 = scmp.eq.s32.totalorder %s51, 0
      %p538 = por %p536, %p537
      %p539 = scmp.ne.s32.totalorder %s531, %s533
      %p540 = scmp.eq.s32.totalorder %s56, 2
      %p541 = por %p539, %p540
      %p542 = scmp.ne.s32.totalorder %s533, %s534
      %p543 = scmp.eq.s32.totalorder %s56, 0
      %p544 = por %p542, %p543
      %p545 = scmp.ne.s32.totalorder %s533, %s534
      %p546 = scmp.eq.s32.totalorder %s57, 2
      %p547 = por %p545, %p546
      %p549 = scmp.ne.s32.totalorder %s534, %s548
      %p550 = scmp.eq.s32.totalorder %s57, 0
      %p551 = por %p549, %p550
      %s553 = sadd.s32 %s552, 1
      %p556 = scmp.eq.s32.totalorder %s51, 2
      %p557 = scmp.ne.s32.totalorder %s552, %s554
      %p558 = scmp.eq.s32.totalorder %s51, 0
      %p559 = por %p557, %p558
      %p560 = scmp.ne.s32.totalorder %s552, %s554
      %p561 = scmp.eq.s32.totalorder %s56, 2
      %p562 = por %p560, %p561
      %p563 = scmp.ne.s32.totalorder %s554, %s555
      %p564 = scmp.eq.s32.totalorder %s56, 0
      %p565 = por %p563, %p564
      %p566 = scmp.ne.s32.totalorder %s554, %s555
      %p567 = scmp.eq.s32.totalorder %s57, 2
      %p568 = por %p566, %p567
      %p570 = scmp.ne.s32.totalorder %s555, %s569
      %p571 = scmp.eq.s32.totalorder %s57, 0
      %p572 = por %p570, %p571
      %s573 = ssub.s32 %s51, %s58
      %p574 = scmp.eq.s32.totalorder %s573, 0
      %s576 = sadd.s32 %s575, 1
      %s577 = scalar_select %p574, %s575, %s576
      %p580 = pneg %p574
      %p581 = scmp.eq.s32.totalorder %s51, 2
      %p582 = por %p580, %p581
      %p583 = scmp.ne.s32.totalorder %s575, %s578
      %p584 = scmp.eq.s32.totalorder %s51, 0
      %p585 = por %p583, %p584
      %p586 = scmp.ne.s32.totalorder %s575, %s578
      %p587 = scmp.eq.s32.totalorder %s56, 2
      %p588 = por %p586, %p587
      %p589 = scmp.ne.s32.totalorder %s578, %s579
      %p590 = scmp.eq.s32.totalorder %s56, 0
      %p591 = por %p589, %p590
      %p592 = scmp.ne.s32.totalorder %s578, %s579
      %p593 = scmp.eq.s32.totalorder %s57, 2
      %p594 = por %p592, %p593
      %p596 = scmp.ne.s32.totalorder %s579, %s595
      %p597 = scmp.eq.s32.totalorder %s57, 0
      %p598 = por %p596, %p597
      %s599 = ssub.s32 %s51, %s58
      %p600 = scmp.eq.s32.totalorder %s599, 0
      %s602 = sadd.s32 %s601, 1
      %s603 = scalar_select %p600, %s601, %s602
      %p606 = pneg %p600
      %p607 = scmp.eq.s32.totalorder %s51, 2
      %p608 = por %p606, %p607
      %p609 = scmp.ne.s32.totalorder %s601, %s604
      %p610 = scmp.eq.s32.totalorder %s51, 0
      %p611 = por %p609, %p610
      %p612 = scmp.ne.s32.totalorder %s601, %s604
      %p613 = scmp.eq.s32.totalorder %s56, 2
      %p614 = por %p612, %p613
      %p615 = scmp.ne.s32.totalorder %s604, %s605
      %p616 = scmp.eq.s32.totalorder %s56, 0
      %p617 = por %p615, %p616
      %p618 = scmp.ne.s32.totalorder %s604, %s605
      %p619 = scmp.eq.s32.totalorder %s57, 2
      %p620 = por %p618, %p619
      %p622 = scmp.ne.s32.totalorder %s605, %s621
      %p623 = scmp.eq.s32.totalorder %s57, 0
      %p624 = por %p622, %p623
      %s625 = ssub.s32 %s51, %s58
      %p626 = scmp.eq.s32.totalorder %s625, 0
      %s628 = sadd.s32 %s627, 1
      %s629 = scalar_select %p626, %s627, %s628
      %p632 = pneg %p626
      %p633 = scmp.eq.s32.totalorder %s51, 2
      %p634 = por %p632, %p633
      %p635 = scmp.ne.s32.totalorder %s627, %s630
      %p636 = scmp.eq.s32.totalorder %s51, 0
      %p637 = por %p635, %p636
      %p638 = scmp.ne.s32.totalorder %s627, %s630
      %p639 = scmp.eq.s32.totalorder %s56, 2
      %p640 = por %p638, %p639
      %p641 = scmp.ne.s32.totalorder %s630, %s631
      %p642 = scmp.eq.s32.totalorder %s56, 0
      %p643 = por %p641, %p642
      %p644 = scmp.ne.s32.totalorder %s630, %s631
      %p645 = scmp.eq.s32.totalorder %s57, 2
      %p646 = por %p644, %p645
      %p648 = scmp.ne.s32.totalorder %s631, %s647
      %p649 = scmp.eq.s32.totalorder %s57, 0
      %p650 = por %p648, %p649
      %s651 = ssub.s32 %s51, %s58
      %p652 = scmp.eq.s32.totalorder %s651, 0
      %s654 = sadd.s32 %s653, 1
      %s655 = scalar_select %p652, %s653, %s654
      %p658 = pneg %p652
      %p659 = scmp.eq.s32.totalorder %s51, 2
      %p660 = por %p658, %p659
      %p661 = scmp.ne.s32.totalorder %s653, %s656
      %p662 = scmp.eq.s32.totalorder %s51, 0
      %p663 = por %p661, %p662
      %p664 = scmp.ne.s32.totalorder %s653, %s656
      %p665 = scmp.eq.s32.totalorder %s56, 2
      %p666 = por %p664, %p665
      %p667 = scmp.ne.s32.totalorder %s656, %s657
      %p668 = scmp.eq.s32.totalorder %s56, 0
      %p669 = por %p667, %p668
      %p670 = scmp.ne.s32.totalorder %s656, %s657
      %p671 = scmp.eq.s32.totalorder %s57, 2
      %p672 = por %p670, %p671
      %p674 = scmp.ne.s32.totalorder %s657, %s673
      %p675 = scmp.eq.s32.totalorder %s57, 0
      %p676 = por %p674, %p675
      %p677 = scmp.le.s32.totalorder 1, %s51
      %p678 = scmp.lt.s32.totalorder %s51, 4
      %p679 = pnand %p677, %p678
      %p680 = pneg %p679
      // Predicated region
      $region9: #{tpu_custom_call.1} parent=5 // pred_check
        _
      $region10: #{tpu_custom_call.1} parent=5 // pred_check_branch
        %682 = sbr.rel (%p679) target = $region12
      $region11: #{tpu_custom_call.1} parent=5 // pred_region
        %s683 = ssub.s32 %s51, 1
        // Predicated region
        $region13: #{tpu_custom_call.1} parent=11 // pred_check
          %p684 = pneg %p124
        $region14: #{tpu_custom_call.1} parent=11 // pred_check_branch
          %686 = sbr.rel (%p684) target = $region16
        $region15: #{tpu_custom_call.1} parent=11 // pred_region
          _
        $region16: #{tpu_custom_call.1} parent=11 // pred_fallthru
          _
        // Predicated region
        $region17: #{tpu_custom_call.1} parent=11 // pred_check
          %p687 = pneg %p145
        $region18: #{tpu_custom_call.1} parent=11 // pred_check_branch
          %689 = sbr.rel (%p687) target = $region20
        $region19: #{tpu_custom_call.1} parent=11 // pred_region
          _
        $region20: #{tpu_custom_call.1} parent=11 // pred_fallthru
          _
        // Predicated region
        $region21: #{tpu_custom_call.1} parent=11 // pred_check
          %p690 = pneg %p166
        $region22: #{tpu_custom_call.1} parent=11 // pred_check_branch
          %692 = sbr.rel (%p690) target = $region24
        $region23: #{tpu_custom_call.1} parent=11 // pred_region
          %s694 = ssub.s32 128, 128
          %695 = vsyncadd [#allocation6], %s694
          %s696 = sshll.u32 [#allocation5], 4
          %s697 = int_to_ptr.vmem [resolvable:$true] %s696
          %702 = dma.hbm_to_vmem [thread:$0]  %s4, 128, %s697, [#allocation6], 64, 64, 4
        $region24: #{tpu_custom_call.1} parent=11 // pred_fallthru
          _
        // Predicated region
        $region25: #{tpu_custom_call.1} parent=11 // pred_check
          %p703 = pneg %p187
        $region26: #{tpu_custom_call.1} parent=11 // pred_check_branch
          %705 = sbr.rel (%p703) target = $region28
        $region27: #{tpu_custom_call.1} parent=11 // pred_region
          %s707 = ssub.s32 128, 128
          %708 = vsyncadd [#allocation9], %s707
          %s709 = sshll.u32 [#allocation8], 4
          %s710 = int_to_ptr.vmem [resolvable:$true] %s709
          %715 = dma.hbm_to_vmem [thread:$0]  %s5, 128, %s710, [#allocation9], 64, 64, 4
        $region28: #{tpu_custom_call.1} parent=11 // pred_fallthru
          _
        // Predicated region
        $region29: #{tpu_custom_call.1} parent=11 // pred_check
          %p716 = pneg %p208
        $region30: #{tpu_custom_call.1} parent=11 // pred_check_branch
          %718 = sbr.rel (%p716) target = $region32
        $region31: #{tpu_custom_call.1} parent=11 // pred_region
          %s720 = ssub.s32 128, 128
          %721 = vsyncadd [#allocation9], %s720
          %s722 = sshll.u32 [#allocation10], 4
          %s723 = int_to_ptr.vmem [resolvable:$true] %s722
          %728 = dma.hbm_to_vmem [thread:$0]  %s6, 128, %s723, [#allocation9], 64, 64, 4
        $region32: #{tpu_custom_call.1} parent=11 // pred_fallthru
          _
        // Predicated region
        $region33: #{tpu_custom_call.1} parent=11 // pred_check
          %p729 = pneg %p229
        $region34: #{tpu_custom_call.1} parent=11 // pred_check_branch
          %731 = sbr.rel (%p729) target = $region36
        $region35: #{tpu_custom_call.1} parent=11 // pred_region
          %s733 = ssub.s32 256, 256
          %734 = vsyncadd [#allocation12], %s733
          %s735 = sshll.u32 [#allocation11], 4
          %s736 = int_to_ptr.vmem [resolvable:$true] %s735
          %741 = dma.hbm_to_vmem [thread:$0]  %s7, 256, %s736, [#allocation12], 64, 64, 4
        $region36: #{tpu_custom_call.1} parent=11 // pred_fallthru
          _
        // Predicated region
        $region37: #{tpu_custom_call.1} parent=11 // pred_check
          %p742 = pneg %p250
        $region38: #{tpu_custom_call.1} parent=11 // pred_check_branch
          %744 = sbr.rel (%p742) target = $region40
        $region39: #{tpu_custom_call.1} parent=11 // pred_region
          %s746 = ssub.s32 32, 32
          %747 = vsyncadd [#allocation12], %s746
          %s749 = sshll.u32 [#allocation13], 4
          %s750 = int_to_ptr.vmem [resolvable:$true] %s749
          %752 = dma.hbm_to_vmem [thread:$0]  %s8, 32, %s750, [#allocation12]
        $region40: #{tpu_custom_call.1} parent=11 // pred_fallthru
          _
        // Predicated region
        $region41: #{tpu_custom_call.1} parent=11 // pred_check
          %p753 = pneg %p271
        $region42: #{tpu_custom_call.1} parent=11 // pred_check_branch
          %755 = sbr.rel (%p753) target = $region44
        $region43: #{tpu_custom_call.1} parent=11 // pred_region
          _
        $region44: #{tpu_custom_call.1} parent=11 // pred_fallthru
          _
        // Predicated region
        $region45: #{tpu_custom_call.1} parent=11 // pred_check
          %p756 = pneg %p292
        $region46: #{tpu_custom_call.1} parent=11 // pred_check_branch
          %758 = sbr.rel (%p756) target = $region48
        $region47: #{tpu_custom_call.1} parent=11 // pred_region
          %s760 = ssub.s32 32, 32
          %761 = vsyncadd [#allocation15], %s760
          %s763 = sshll.u32 [#allocation14], 4
          %s764 = int_to_ptr.vmem [resolvable:$true] %s763
          %766 = dma.hbm_to_vmem [thread:$0]  %s10, 32, %s764, [#allocation15]
        $region48: #{tpu_custom_call.1} parent=11 // pred_fallthru
          _
        // Predicated region
        $region49: #{tpu_custom_call.1} parent=11 // pred_check
          %p767 = pneg %p313
        $region50: #{tpu_custom_call.1} parent=11 // pred_check_branch
          %769 = sbr.rel (%p767) target = $region52
        $region51: #{tpu_custom_call.1} parent=11 // pred_region
          _
        $region52: #{tpu_custom_call.1} parent=11 // pred_fallthru
          _
        // Predicated region
        $region53: #{tpu_custom_call.1} parent=11 // pred_check
          %p770 = pneg %p334
        $region54: #{tpu_custom_call.1} parent=11 // pred_check_branch
          %772 = sbr.rel (%p770) target = $region56
        $region55: #{tpu_custom_call.1} parent=11 // pred_region
          %s774 = ssub.s32 32, 32
          %775 = vsyncadd [#allocation15], %s774
          %s777 = sshll.u32 [#allocation16], 4
          %s778 = int_to_ptr.vmem [resolvable:$true] %s777
          %780 = dma.hbm_to_vmem [thread:$0]  %s12, 32, %s778, [#allocation15]
        $region56: #{tpu_custom_call.1} parent=11 // pred_fallthru
          _
        // Predicated region
        $region57: #{tpu_custom_call.1} parent=11 // pred_check
          %p781 = pneg %p355
        $region58: #{tpu_custom_call.1} parent=11 // pred_check_branch
          %783 = sbr.rel (%p781) target = $region60
        $region59: #{tpu_custom_call.1} parent=11 // pred_region
          %s785 = ssub.s32 1024, 1024
          %786 = vsyncadd [#allocation18], %s785
          %s787 = sshll.u32 [#allocation17], 4
          %s788 = int_to_ptr.vmem [resolvable:$true] %s787
          %793 = dma.hbm_to_vmem [thread:$0]  %s13, 1024, %s788, [#allocation18], 64, 64, 4
        $region60: #{tpu_custom_call.1} parent=11 // pred_fallthru
          _
        // Predicated region
        $region61: #{tpu_custom_call.1} parent=11 // pred_check
          %p794 = pneg %p376
        $region62: #{tpu_custom_call.1} parent=11 // pred_check_branch
          %796 = sbr.rel (%p794) target = $region64
        $region63: #{tpu_custom_call.1} parent=11 // pred_region
          %s798 = ssub.s32 16, 16
          %799 = vsyncadd [#allocation18], %s798
          %s801 = sshll.u32 [#allocation19], 4
          %s802 = int_to_ptr.vmem [resolvable:$true] %s801
          %804 = dma.hbm_to_vmem [thread:$0]  %s14, 16, %s802, [#allocation18]
        $region64: #{tpu_custom_call.1} parent=11 // pred_fallthru
          _
        // Predicated region
        $region65: #{tpu_custom_call.1} parent=11 // pred_check
          %p805 = pneg %p397
        $region66: #{tpu_custom_call.1} parent=11 // pred_check_branch
          %807 = sbr.rel (%p805) target = $region68
        $region67: #{tpu_custom_call.1} parent=11 // pred_region
          _
        $region68: #{tpu_custom_call.1} parent=11 // pred_fallthru
          _
        // Predicated region
        $region69: #{tpu_custom_call.1} parent=11 // pred_check
          %p808 = pneg %p418
        $region70: #{tpu_custom_call.1} parent=11 // pred_check_branch
          %810 = sbr.rel (%p808) target = $region72
        $region71: #{tpu_custom_call.1} parent=11 // pred_region
          _
        $region72: #{tpu_custom_call.1} parent=11 // pred_fallthru
          _
        // Predicated region
        $region73: #{tpu_custom_call.1} parent=11 // pred_check
          %p811 = pneg %p439
        $region74: #{tpu_custom_call.1} parent=11 // pred_check_branch
          %813 = sbr.rel (%p811) target = $region76
        $region75: #{tpu_custom_call.1} parent=11 // pred_region
          _
        $region76: #{tpu_custom_call.1} parent=11 // pred_fallthru
          _
        // Predicated region
        $region77: #{tpu_custom_call.1} parent=11 // pred_check
          %p814 = pneg %p460
        $region78: #{tpu_custom_call.1} parent=11 // pred_check_branch
          %816 = sbr.rel (%p814) target = $region80
        $region79: #{tpu_custom_call.1} parent=11 // pred_region
          %s818 = ssub.s32 1024, 1024
          %819 = vsyncadd [#allocation21], %s818
          %s820 = sshll.u32 [#allocation20], 4
          %s821 = int_to_ptr.vmem [resolvable:$true] %s820
          %826 = dma.hbm_to_vmem [thread:$0]  %s18, 1024, %s821, [#allocation21], 64, 64, 4
        $region80: #{tpu_custom_call.1} parent=11 // pred_fallthru
          _
        // Predicated region
        $region81: #{tpu_custom_call.1} parent=11 // pred_check
          %p827 = pneg %p481
        $region82: #{tpu_custom_call.1} parent=11 // pred_check_branch
          %829 = sbr.rel (%p827) target = $region84
        $region83: #{tpu_custom_call.1} parent=11 // pred_region
          %s831 = ssub.s32 1024, 1024
          %832 = vsyncadd [#allocation21], %s831
          %s833 = sshll.u32 [#allocation22], 4
          %s834 = int_to_ptr.vmem [resolvable:$true] %s833
          %839 = dma.hbm_to_vmem [thread:$0]  %s19, 1024, %s834, [#allocation21], 64, 64, 4
        $region84: #{tpu_custom_call.1} parent=11 // pred_fallthru
          _
        // Predicated region
        $region85: #{tpu_custom_call.1} parent=11 // pred_check
          %p840 = pneg %p502
        $region86: #{tpu_custom_call.1} parent=11 // pred_check_branch
          %842 = sbr.rel (%p840) target = $region88
        $region87: #{tpu_custom_call.1} parent=11 // pred_region
          _
        $region88: #{tpu_custom_call.1} parent=11 // pred_fallthru
          _
        // Predicated region
        $region89: #{tpu_custom_call.1} parent=11 // pred_check
          %p843 = pneg %p523
        $region90: #{tpu_custom_call.1} parent=11 // pred_check_branch
          %845 = sbr.rel (%p843) target = $region92
        $region91: #{tpu_custom_call.1} parent=11 // pred_region
          %s847 = ssub.s32 1024, 1024
          %848 = vsyncadd [#allocation24], %s847
          %s849 = sshll.u32 [#allocation23], 4
          %s850 = int_to_ptr.vmem [resolvable:$true] %s849
          %855 = dma.hbm_to_vmem [thread:$0]  %s21, 1024, %s850, [#allocation24], 64, 64, 4
        $region92: #{tpu_custom_call.1} parent=11 // pred_fallthru
          _
        // Predicated region
        $region93: #{tpu_custom_call.1} parent=11 // pred_check
          %p856 = pneg %p544
        $region94: #{tpu_custom_call.1} parent=11 // pred_check_branch
          %858 = sbr.rel (%p856) target = $region96
        $region95: #{tpu_custom_call.1} parent=11 // pred_region
          _
        $region96: #{tpu_custom_call.1} parent=11 // pred_fallthru
          _
        // Predicated region
        $region97: #{tpu_custom_call.1} parent=11 // pred_check
          %p859 = pneg %p565
        $region98: #{tpu_custom_call.1} parent=11 // pred_check_branch
          %861 = sbr.rel (%p859) target = $region100
        $region99: #{tpu_custom_call.1} parent=11 // pred_region
          _
        $region100: #{tpu_custom_call.1} parent=11 // pred_fallthru
          _
      $region12: #{tpu_custom_call.1} parent=5 // pred_fallthru
        _
      %p862 = scmp.lt.s32.totalorder %s51, 3
      // Predicated region
      $region101: #{tpu_custom_call.1} parent=5 // pred_check
        %p863 = pneg %p862
      $region102: #{tpu_custom_call.1} parent=5 // pred_check_branch
        %865 = sbr.rel (%p863) target = $region104
      $region103: #{tpu_custom_call.1} parent=5 // pred_region
        // Predicated region
        $region105: #{tpu_custom_call.1} parent=103 // pred_check
          %p866 = pneg %p71
        $region106: #{tpu_custom_call.1} parent=103 // pred_check_branch
          %868 = sbr.rel (%p866) target = $region108
        $region107: #{tpu_custom_call.1} parent=103 // pred_region
          %p869 = scmp.lt.s32.totalorder %s51, 2
          %s870 = scalar_select %p869, %s51, 2
          %s871 = smul.addr %s870, 2
          %s872 = smul.addr %s871, 4
          %s873 = scalar_lea.vmem %s0, %s872
        $region108: #{tpu_custom_call.1} parent=103 // pred_fallthru
          _
        // Predicated region
        $region109: #{tpu_custom_call.1} parent=103 // pred_check
          %p874 = pneg %p97
        $region110: #{tpu_custom_call.1} parent=103 // pred_check_branch
          %876 = sbr.rel (%p874) target = $region112
        $region111: #{tpu_custom_call.1} parent=103 // pred_region
          %p877 = scmp.lt.s32.totalorder %s51, 2
          %s878 = scalar_select %p877, %s51, 2
          %s879 = smul.addr %s878, 4
          %s880 = smul.addr %s879, 4
          %s881 = scalar_lea.vmem %s1, %s880
        $region112: #{tpu_custom_call.1} parent=103 // pred_fallthru
          _
      $region104: #{tpu_custom_call.1} parent=5 // pred_fallthru
        _
      %p882 = scmp.le.s32.totalorder 1, %s51
      %p883 = scmp.lt.s32.totalorder %s51, 4
      %p884 = pnand %p882, %p883
      %p885 = pneg %p884
      // Predicated region
      $region113: #{tpu_custom_call.1} parent=5 // pred_check
        _
      $region114: #{tpu_custom_call.1} parent=5 // pred_check_branch
        %887 = sbr.rel (%p884) target = $region116
      $region115: #{tpu_custom_call.1} parent=5 // pred_region
        %s888 = ssub.s32 %s51, 1
        // Predicated region
        $region117: #{tpu_custom_call.1} parent=115 // pred_check
          %p889 = pneg %p166
        $region118: #{tpu_custom_call.1} parent=115 // pred_check_branch
          %891 = sbr.rel (%p889) target = $region120
        $region119: #{tpu_custom_call.1} parent=115 // pred_region
          %892 = dma.done [#allocation6], 128
        $region120: #{tpu_custom_call.1} parent=115 // pred_fallthru
          _
        // Predicated region
        $region121: #{tpu_custom_call.1} parent=115 // pred_check
          %p893 = pneg %p187
        $region122: #{tpu_custom_call.1} parent=115 // pred_check_branch
          %895 = sbr.rel (%p893) target = $region124
        $region123: #{tpu_custom_call.1} parent=115 // pred_region
          %896 = dma.done [#allocation9], 128
        $region124: #{tpu_custom_call.1} parent=115 // pred_fallthru
          _
        // Predicated region
        $region125: #{tpu_custom_call.1} parent=115 // pred_check
          %p897 = pneg %p208
        $region126: #{tpu_custom_call.1} parent=115 // pred_check_branch
          %899 = sbr.rel (%p897) target = $region128
        $region127: #{tpu_custom_call.1} parent=115 // pred_region
          %900 = dma.done [#allocation9], 128
        $region128: #{tpu_custom_call.1} parent=115 // pred_fallthru
          _
        // Predicated region
        $region129: #{tpu_custom_call.1} parent=115 // pred_check
          %p901 = pneg %p229
        $region130: #{tpu_custom_call.1} parent=115 // pred_check_branch
          %903 = sbr.rel (%p901) target = $region132
        $region131: #{tpu_custom_call.1} parent=115 // pred_region
          %904 = dma.done [#allocation12], 256
        $region132: #{tpu_custom_call.1} parent=115 // pred_fallthru
          _
        // Predicated region
        $region133: #{tpu_custom_call.1} parent=115 // pred_check
          %p905 = pneg %p250
        $region134: #{tpu_custom_call.1} parent=115 // pred_check_branch
          %907 = sbr.rel (%p905) target = $region136
        $region135: #{tpu_custom_call.1} parent=115 // pred_region
          %908 = dma.done [#allocation12], 32
        $region136: #{tpu_custom_call.1} parent=115 // pred_fallthru
          _
        // Predicated region
        $region137: #{tpu_custom_call.1} parent=115 // pred_check
          %p909 = pneg %p292
        $region138: #{tpu_custom_call.1} parent=115 // pred_check_branch
          %911 = sbr.rel (%p909) target = $region140
        $region139: #{tpu_custom_call.1} parent=115 // pred_region
          %912 = dma.done [#allocation15], 32
        $region140: #{tpu_custom_call.1} parent=115 // pred_fallthru
          _
        // Predicated region
        $region141: #{tpu_custom_call.1} parent=115 // pred_check
          %p913 = pneg %p334
        $region142: #{tpu_custom_call.1} parent=115 // pred_check_branch
          %915 = sbr.rel (%p913) target = $region144
        $region143: #{tpu_custom_call.1} parent=115 // pred_region
          %916 = dma.done [#allocation15], 32
        $region144: #{tpu_custom_call.1} parent=115 // pred_fallthru
          _
        // Predicated region
        $region145: #{tpu_custom_call.1} parent=115 // pred_check
          %p917 = pneg %p355
        $region146: #{tpu_custom_call.1} parent=115 // pred_check_branch
          %919 = sbr.rel (%p917) target = $region148
        $region147: #{tpu_custom_call.1} parent=115 // pred_region
          %920 = dma.done [#allocation18], 1024
        $region148: #{tpu_custom_call.1} parent=115 // pred_fallthru
          _
        // Predicated region
        $region149: #{tpu_custom_call.1} parent=115 // pred_check
          %p921 = pneg %p376
        $region150: #{tpu_custom_call.1} parent=115 // pred_check_branch
          %923 = sbr.rel (%p921) target = $region152
        $region151: #{tpu_custom_call.1} parent=115 // pred_region
          %924 = dma.done [#allocation18], 16
        $region152: #{tpu_custom_call.1} parent=115 // pred_fallthru
          _
        // Predicated region
        $region153: #{tpu_custom_call.1} parent=115 // pred_check
          %p925 = pneg %p460
        $region154: #{tpu_custom_call.1} parent=115 // pred_check_branch
          %927 = sbr.rel (%p925) target = $region156
        $region155: #{tpu_custom_call.1} parent=115 // pred_region
          %928 = dma.done [#allocation21], 1024
        $region156: #{tpu_custom_call.1} parent=115 // pred_fallthru
          _
        // Predicated region
        $region157: #{tpu_custom_call.1} parent=115 // pred_check
          %p929 = pneg %p481
        $region158: #{tpu_custom_call.1} parent=115 // pred_check_branch
          %931 = sbr.rel (%p929) target = $region160
        $region159: #{tpu_custom_call.1} parent=115 // pred_region
          %932 = dma.done [#allocation21], 1024
        $region160: #{tpu_custom_call.1} parent=115 // pred_fallthru
          _
        // Predicated region
        $region161: #{tpu_custom_call.1} parent=115 // pred_check
          %p933 = pneg %p523
        $region162: #{tpu_custom_call.1} parent=115 // pred_check_branch
          %935 = sbr.rel (%p933) target = $region164
        $region163: #{tpu_custom_call.1} parent=115 // pred_region
          %936 = dma.done [#allocation24], 1024
        $region164: #{tpu_custom_call.1} parent=115 // pred_fallthru
          _
        %p937 = scmp.lt.s32.totalorder %s56, 2
        %s938 = scalar_select %p937, %s56, 2
        %s939 = smul.addr %s938, 2
        %s940 = smul.addr %s939, 4
        %s941 = scalar_lea.vmem %s0, %s940
        %p942 = pneg %p77
        %p943 = pneg %p74
        %p944 = scmp.lt.s32.totalorder %s56, 2
        %s945 = scalar_select %p944, %s56, 2
        %s946 = smul.addr %s945, 4
        %s947 = smul.addr %s946, 4
        %s948 = scalar_lea.vmem %s1, %s947
        %p949 = pneg %p103
        %p950 = pneg %p100
        %p951 = pneg %p124
        %p952 = pneg %p121
        %p953 = pneg %p145
        %p954 = pneg %p142
        %p955 = pneg %p166
        %p956 = pneg %p163
        %p957 = pneg %p187
        %p958 = pneg %p184
        %p959 = pneg %p208
        %p960 = pneg %p205
        %p961 = pneg %p229
        %p962 = pneg %p226
        %p963 = pneg %p250
        %p964 = pneg %p247
        %p965 = pneg %p271
        %p966 = pneg %p268
        %p967 = pneg %p292
        %p968 = pneg %p289
        %p969 = pneg %p313
        %p970 = pneg %p310
        %p971 = pneg %p334
        %p972 = pneg %p331
        %p973 = pneg %p355
        %p974 = pneg %p352
        %p975 = pneg %p376
        %p976 = pneg %p373
        %p977 = pneg %p397
        %p978 = pneg %p394
        %p979 = pneg %p418
        %p980 = pneg %p415
        %p981 = pneg %p439
        %p982 = pneg %p436
        %p983 = pneg %p460
        %p984 = pneg %p457
        %p985 = pneg %p481
        %p986 = pneg %p478
        %p987 = pneg %p502
        %p988 = pneg %p499
        %p989 = pneg %p523
        %p990 = pneg %p520
        %p991 = pneg %p544
        %p992 = pneg %p541
        %p993 = pneg %p565
        %p994 = pneg %p562
        %p995 = pneg %p591
        %p996 = pneg %p588
        %s997 = sand.u32 %s578, 1
        %s998 = scalar_lea.sflag [#allocation7], %s997
        %s999 = sand.u32 %s578, 1
        %s1000 = smul.addr %s999, 16
        %s1001 = scalar_lea.vmem [#allocation25], %s1000
        %p1002 = pneg %p617
        %p1003 = pneg %p614
        %s1004 = sand.u32 %s56, 1
        %s1005 = scalar_lea.sflag [#allocation27], %s1004
        %s1006 = sand.u32 %s604, 1
        %s1007 = smul.addr %s1006, 32
        %s1008 = scalar_lea.vmem [#allocation26], %s1007
        %p1009 = pneg %p643
        %p1010 = pneg %p640
        %s1011 = sand.u32 %s56, 1
        %s1012 = scalar_lea.sflag [#allocation27], %s1011
        %s1013 = sand.u32 %s630, 1
        %s1014 = smul.addr %s1013, 16
        %s1015 = scalar_lea.vmem [#allocation28], %s1014
        %p1016 = pneg %p669
        %p1017 = pneg %p666
        %s1018 = sand.u32 %s656, 1
        %s1019 = scalar_lea.sflag [#allocation30], %s1018
        %s1020 = sand.u32 %s656, 1
        %s1021 = smul.addr %s1020, 16
        %s1022 = scalar_lea.vmem [#allocation29], %s1021
        %p1023 = scmp.lt.s32.totalorder %s56, 2
        %s1024 = scalar_select %p1023, %s56, 2
        %s1025 = smul.addr %s1024, 2
        %s1026 = smul.addr %s1025, 4
        %s1027 = scalar_lea.vmem %s0, %s1026
        %p1028 = scmp.lt.s32.totalorder %s56, 2
        %s1029 = scalar_select %p1028, %s56, 2
        %s1030 = smul.addr %s1029, 4
        %s1031 = smul.addr %s1030, 4
        %s1032 = scalar_lea.vmem %s1, %s1031
        %p1034 = scmp.eq.s32.totalorder %s56, 0
        // Predicated region
        $region165: #{tpu_custom_call.1} parent=115 // pred_check
          %p1035 = pneg %p1034
        $region166: #{tpu_custom_call.1} parent=115 // pred_check_branch
          %1037 = sbr.rel (%p1035) target = $region168
        $region167: #{tpu_custom_call.1} parent=115 // pred_region
          %v1038 = vld [vmem:[#allocation10] sm:$0xf]
          %v1039 = vld [vmem:[#allocation10 + $0x4] sm:$0xf]
          %v1040 = vunpack.c.l.bf16 %v1038
          %v1041 = vunpack.c.l.bf16 %v1039
          %1042 = vst [vmem:[#allocation2] sm:$0xff] %v1040
          %1043 = vst [vmem:[#allocation2 + $0x8] sm:$0xff] %v1041
          %v1044 = vld [vmem:[#allocation11] sm:$0xf]
          %v1045 = vld [vmem:[#allocation11 + $0x4] sm:$0xf]
          %v1046 = vld [vmem:[#allocation11 + $0x8] sm:$0xf]
          %v1047 = vld [vmem:[#allocation11 + $0xc] sm:$0xf]
          %v1048 = vunpack.c.l.bf16 %v1044
          %v1049 = vunpack.c.l.bf16 %v1045
          %v1050 = vunpack.c.l.bf16 %v1046
          %v1051 = vunpack.c.l.bf16 %v1047
          %1052 = vst [vmem:[#allocation3] sm:$0xff] %v1048
          %1053 = vst [vmem:[#allocation3 + $0x8] sm:$0xff] %v1049
          %1054 = vst [vmem:[#allocation3 + $0x10] sm:$0xff] %v1050
          %1055 = vst [vmem:[#allocation3 + $0x18] sm:$0xff] %v1051
        $region168: #{tpu_custom_call.1} parent=115 // pred_fallthru
          _
        %v1056 = vld [vmem:[#allocation2] sm:$0xff]
        %v1057 = vld [vmem:[#allocation2 + $0x8] sm:$0xff]
        %v1058 = vld [vmem:[#allocation3] sm:$0xff]
        %v1059 = vld [vmem:[#allocation3 + $0x8] sm:$0xff]
        %v1060 = vld [vmem:[#allocation3 + $0x10] sm:$0xff]
        %v1061 = vld [vmem:[#allocation3 + $0x18] sm:$0xff]
        %v1062 = vpack.c.bf16 %v1057, %v1056
        %v1063 = vpack.c.bf16 %v1059, %v1058
        %v1064 = vpack.c.bf16 %v1061, %v1060
        %v1065 = vld [vmem:[%s1027] sm:$0xf]
        %v1066 = vld [vmem:[%s1027 + $0x4] sm:$0xf]
        %v1067 = vld [vmem:[%s1032] sm:$0xf]
        %v1068 = vld [vmem:[%s1032 + $0x4] sm:$0xf]
        %v1069 = vld [vmem:[%s1032 + $0x8] sm:$0xf]
        %v1070 = vld [vmem:[%s1032 + $0xc] sm:$0xf]
        %v1071 = vld [vmem:[%s2] sm:$0xf]
        %v1072 = vld [vmem:[%s2 + $0x4] sm:$0xf]
        %v1073 = vld [vmem:[%s2 + $0x8] sm:$0xf]
        %v1074 = vld [vmem:[%s2 + $0xc] sm:$0xf]
        %v1075 = vld [vmem:[%s3] sm:$0xf]
        %v1076 = vld [vmem:[%s3 + $0x4] sm:$0xf]
        %v1077 = vld [vmem:[%s3 + $0x8] sm:$0xf]
        %v1078 = vld [vmem:[%s3 + $0xc] sm:$0xf]
        %v1083 = vunpack.c.l.b16 %v1071
        %v1084 = vunpack.c.l.b16 %v1072
        %v1085 = vunpack.c.l.b16 %v1073
        %v1086 = vunpack.c.l.b16 %v1074
        %v1087 = vpack.c.b16 %v1084, %v1083
        %v1088 = vpack.c.b16 %v1086, %v1085
        %v1091 = vunpack.c.l.b16 %v1065
        %v1092 = vunpack.c.l.b16 %v1066
        %v1093 = vpack.c.b16 %v1092, %v1091
        %vm1095 = vcmask 130048
        %v1097 = vsel %vm1095, %v1087, 0
        %v1100 = vsel %vm1095, %v1088, 0
        %1102 = vmatprep.subr.bf16.mxu0 0
        %1103 = vmatpush1.bf16.msra.mxu0 %v1093
        %1104 = vmatprep.subr.bf16.mxu0 0
        %1105 = vmatpush1.bf16.msra.mxu0 0
        %1106 = vmatprep.subr.bf16.mxu0 0
        %1107 = vmatpush1.bf16.msra.mxu0 0
        %1108 = vmatprep.subr.bf16.mxu0 0
        %1109 = vmatpush1.bf16.msra.mxu0 0
        %1110 = vmatprep.subr.bf16.mxu0 0
        %1111 = vmatpush1.bf16.msra.mxu0 0
        %1112 = vmatprep.subr.bf16.mxu0 0
        %1113 = vmatpush1.bf16.msra.mxu0 0
        %1114 = vmatprep.subr.bf16.mxu0 0
        %1115 = vmatpush1.bf16.msra.mxu0 0
        %1116 = vmatprep.subr.bf16.mxu0 0
        %1117 = vmatpush1.bf16.msra.mxu0 0
        %1118 = vmatprep.subr.bf16.mxu0 0
        %1119 = vmatpush1.bf16.msra.mxu0 0
        %1120 = vmatprep.subr.bf16.mxu0 0
        %1121 = vmatpush1.bf16.msra.mxu0 0
        %1122 = vmatprep.subr.bf16.mxu0 0
        %1123 = vmatpush1.bf16.msra.mxu0 0
        %1124 = vmatprep.subr.bf16.mxu0 0
        %1125 = vmatpush1.bf16.msra.mxu0 0
        %1126 = vmatprep.subr.bf16.mxu0 0
        %1127 = vmatpush1.bf16.msra.mxu0 0
        %1128 = vmatprep.subr.bf16.mxu0 0
        %1129 = vmatpush1.bf16.msra.mxu0 0
        %1130 = vmatprep.subr.bf16.mxu0 0
        %1131 = vmatpush1.bf16.msra.mxu0 0
        %1132 = vmatprep.subr.bf16.mxu0 0
        %1133 = vmatpush1.bf16.msra.mxu0 0
        %1134 = vmatprep.mubr.bf16.mxu0 0
        %1135 = vmatmul.mubr.bf16.gmra.mrb[0].mxu0 %v1097
        %v1136 = vpop.f32.mrb[0].mxu0
        %v1137 = vadd.f32 0.0, %v1136
        %v1138 = vpop.f32.mrb[0].mxu0
        %v1139 = vpop.f32.mrb[0].mxu0
        %v1140 = vadd.f32 0.0, %v1139
        %v1141 = vpop.f32.mrb[0].mxu0
        %1142 = vmatprep.mubr.bf16.mxu0 0
        %1143 = vmatmul.mubr.bf16.gmra.mrb[0].mxu0 %v1100
        %v1144 = vpop.f32.mrb[0].mxu0
        %v1145 = vadd.f32 0.0, %v1144
        %v1146 = vpop.f32.mrb[0].mxu0
        %v1147 = vpop.f32.mrb[0].mxu0
        %v1148 = vadd.f32 0.0, %v1147
        %v1149 = vpop.f32.mrb[0].mxu0
        %1150 = vdwg.mxu0
        %v1151 = vpack.c.bf16 %v1140, %v1137
        %v1152 = vpack.c.bf16 %v1148, %v1145
        %1153 = vmatprep.subr.bf16.mxu0 0
        %1154 = vmatpush1.bf16.msra.mxu0 %v1062
        %1155 = vmatprep.subr.bf16.mxu0 0
        %1156 = vmatpush1.bf16.msra.mxu0 0
        %1157 = vmatprep.subr.bf16.mxu0 0
        %1158 = vmatpush1.bf16.msra.mxu0 0
        %1159 = vmatprep.subr.bf16.mxu0 0
        %1160 = vmatpush1.bf16.msra.mxu0 0
        %1161 = vmatprep.subr.bf16.mxu0 0
        %1162 = vmatpush1.bf16.msra.mxu0 0
        %1163 = vmatprep.subr.bf16.mxu0 0
        %1164 = vmatpush1.bf16.msra.mxu0 0
        %1165 = vmatprep.subr.bf16.mxu0 0
        %1166 = vmatpush1.bf16.msra.mxu0 0
        %1167 = vmatprep.subr.bf16.mxu0 0
        %1168 = vmatpush1.bf16.msra.mxu0 0
        %1169 = vmatprep.subr.bf16.mxu0 0
        %1170 = vmatpush1.bf16.msra.mxu0 0
        %1171 = vmatprep.subr.bf16.mxu0 0
        %1172 = vmatpush1.bf16.msra.mxu0 0
        %1173 = vmatprep.subr.bf16.mxu0 0
        %1174 = vmatpush1.bf16.msra.mxu0 0
        %1175 = vmatprep.subr.bf16.mxu0 0
        %1176 = vmatpush1.bf16.msra.mxu0 0
        %1177 = vmatprep.subr.bf16.mxu0 0
        %1178 = vmatpush1.bf16.msra.mxu0 0
        %1179 = vmatprep.subr.bf16.mxu0 0
        %1180 = vmatpush1.bf16.msra.mxu0 0
        %1181 = vmatprep.subr.bf16.mxu0 0
        %1182 = vmatpush1.bf16.msra.mxu0 0
        %1183 = vmatprep.subr.bf16.mxu0 0
        %1184 = vmatpush1.bf16.msra.mxu0 0
        %1185 = vmatprep.mubr.bf16.mxu0 0
        %1186 = vmatmul.mubr.bf16.gmra.mrb[0].mxu0 %v1097
        %v1187 = vpop.f32.mrb[0].mxu0
        %v1188 = vadd.f32 0.0, %v1187
        %v1189 = vpop.f32.mrb[0].mxu0
        %v1190 = vpop.f32.mrb[0].mxu0
        %v1191 = vadd.f32 0.0, %v1190
        %v1192 = vpop.f32.mrb[0].mxu0
        %1193 = vmatprep.mubr.bf16.mxu0 0
        %1194 = vmatmul.mubr.bf16.gmra.mrb[0].mxu0 %v1100
        %v1195 = vpop.f32.mrb[0].mxu0
        %v1196 = vadd.f32 0.0, %v1195
        %v1197 = vpop.f32.mrb[0].mxu0
        %v1198 = vpop.f32.mrb[0].mxu0
        %v1199 = vadd.f32 0.0, %v1198
        %v1200 = vpop.f32.mrb[0].mxu0
        %1201 = vdwg.mxu0
        %v1202 = vpack.c.bf16 %v1191, %v1188
        %v1203 = vpack.c.bf16 %v1199, %v1196
        %v1208 = vunpack.c.l.b16 %v1075
        %v1209 = vunpack.c.l.b16 %v1076
        %v1210 = vunpack.c.l.b16 %v1077
        %v1211 = vunpack.c.l.b16 %v1078
        %v1212 = vpack.c.b16 %v1209, %v1208
        %v1213 = vpack.c.b16 %v1211, %v1210
        %v1215 = vsel %vm1095, %v1212, 0
        %v1218 = vsel %vm1095, %v1213, 0
        %1220 = vmatprep.subr.bf16.mxu0 0
        %1221 = vmatpush1.bf16.msra.mxu0 %v1093
        %1222 = vmatprep.subr.bf16.mxu0 0
        %1223 = vmatpush1.bf16.msra.mxu0 0
        %1224 = vmatprep.subr.bf16.mxu0 0
        %1225 = vmatpush1.bf16.msra.mxu0 0
        %1226 = vmatprep.subr.bf16.mxu0 0
        %1227 = vmatpush1.bf16.msra.mxu0 0
        %1228 = vmatprep.subr.bf16.mxu0 0
        %1229 = vmatpush1.bf16.msra.mxu0 0
        %1230 = vmatprep.subr.bf16.mxu0 0
        %1231 = vmatpush1.bf16.msra.mxu0 0
        %1232 = vmatprep.subr.bf16.mxu0 0
        %1233 = vmatpush1.bf16.msra.mxu0 0
        %1234 = vmatprep.subr.bf16.mxu0 0
        %1235 = vmatpush1.bf16.msra.mxu0 0
        %1236 = vmatprep.subr.bf16.mxu0 0
        %1237 = vmatpush1.bf16.msra.mxu0 0
        %1238 = vmatprep.subr.bf16.mxu0 0
        %1239 = vmatpush1.bf16.msra.mxu0 0
        %1240 = vmatprep.subr.bf16.mxu0 0
        %1241 = vmatpush1.bf16.msra.mxu0 0
        %1242 = vmatprep.subr.bf16.mxu0 0
        %1243 = vmatpush1.bf16.msra.mxu0 0
        %1244 = vmatprep.subr.bf16.mxu0 0
        %1245 = vmatpush1.bf16.msra.mxu0 0
        %1246 = vmatprep.subr.bf16.mxu0 0
        %1247 = vmatpush1.bf16.msra.mxu0 0
        %1248 = vmatprep.subr.bf16.mxu0 0
        %1249 = vmatpush1.bf16.msra.mxu0 0
        %1250 = vmatprep.subr.bf16.mxu0 0
        %1251 = vmatpush1.bf16.msra.mxu0 0
        %1252 = vmatprep.mubr.bf16.mxu0 0
        %1253 = vmatmul.mubr.bf16.gmra.mrb[0].mxu0 %v1215
        %v1254 = vpop.f32.mrb[0].mxu0
        %v1255 = vadd.f32 0.0, %v1254
        %v1256 = vpop.f32.mrb[0].mxu0
        %v1257 = vpop.f32.mrb[0].mxu0
        %v1258 = vadd.f32 0.0, %v1257
        %v1259 = vpop.f32.mrb[0].mxu0
        %1260 = vmatprep.mubr.bf16.mxu0 0
        %1261 = vmatmul.mubr.bf16.gmra.mrb[0].mxu0 %v1218
        %v1262 = vpop.f32.mrb[0].mxu0
        %v1263 = vadd.f32 0.0, %v1262
        %v1264 = vpop.f32.mrb[0].mxu0
        %v1265 = vpop.f32.mrb[0].mxu0
        %v1266 = vadd.f32 0.0, %v1265
        %v1267 = vpop.f32.mrb[0].mxu0
        %1268 = vdwg.mxu0
        %v1269 = vpack.c.bf16 %v1258, %v1255
        %v1270 = vpack.c.bf16 %v1266, %v1263
        %1271 = vmatprep.subr.bf16.mxu0 0
        %1272 = vmatpush1.bf16.msra.mxu0 %v1062
        %1273 = vmatprep.subr.bf16.mxu0 0
        %1274 = vmatpush1.bf16.msra.mxu0 0
        %1275 = vmatprep.subr.bf16.mxu0 0
        %1276 = vmatpush1.bf16.msra.mxu0 0
        %1277 = vmatprep.subr.bf16.mxu0 0
        %1278 = vmatpush1.bf16.msra.mxu0 0
        %1279 = vmatprep.subr.bf16.mxu0 0
        %1280 = vmatpush1.bf16.msra.mxu0 0
        %1281 = vmatprep.subr.bf16.mxu0 0
        %1282 = vmatpush1.bf16.msra.mxu0 0
        %1283 = vmatprep.subr.bf16.mxu0 0
        %1284 = vmatpush1.bf16.msra.mxu0 0
        %1285 = vmatprep.subr.bf16.mxu0 0
        %1286 = vmatpush1.bf16.msra.mxu0 0
        %1287 = vmatprep.subr.bf16.mxu0 0
        %1288 = vmatpush1.bf16.msra.mxu0 0
        %1289 = vmatprep.subr.bf16.mxu0 0
        %1290 = vmatpush1.bf16.msra.mxu0 0
        %1291 = vmatprep.subr.bf16.mxu0 0
        %1292 = vmatpush1.bf16.msra.mxu0 0
        %1293 = vmatprep.subr.bf16.mxu0 0
        %1294 = vmatpush1.bf16.msra.mxu0 0
        %1295 = vmatprep.subr.bf16.mxu0 0
        %1296 = vmatpush1.bf16.msra.mxu0 0
        %1297 = vmatprep.subr.bf16.mxu0 0
        %1298 = vmatpush1.bf16.msra.mxu0 0
        %1299 = vmatprep.subr.bf16.mxu0 0
        %1300 = vmatpush1.bf16.msra.mxu0 0
        %1301 = vmatprep.subr.bf16.mxu0 0
        %1302 = vmatpush1.bf16.msra.mxu0 0
        %1303 = vmatprep.mubr.bf16.mxu0 0
        %1304 = vmatmul.mubr.bf16.gmra.mrb[0].mxu0 %v1215
        %v1305 = vpop.f32.mrb[0].mxu0
        %v1306 = vadd.f32 0.0, %v1305
        %v1307 = vpop.f32.mrb[0].mxu0
        %v1308 = vpop.f32.mrb[0].mxu0
        %v1309 = vadd.f32 0.0, %v1308
        %v1310 = vpop.f32.mrb[0].mxu0
        %1311 = vmatprep.mubr.bf16.mxu0 0
        %1312 = vmatmul.mubr.bf16.gmra.mrb[0].mxu0 %v1218
        %v1313 = vpop.f32.mrb[0].mxu0
        %v1314 = vadd.f32 0.0, %v1313
        %v1315 = vpop.f32.mrb[0].mxu0
        %v1316 = vpop.f32.mrb[0].mxu0
        %v1317 = vadd.f32 0.0, %v1316
        %v1318 = vpop.f32.mrb[0].mxu0
        %1319 = vdwg.mxu0
        %v1320 = vpack.c.bf16 %v1309, %v1306
        %v1321 = vpack.c.bf16 %v1317, %v1314
        %v1322 = vld [vmem:[#allocation13] sm:$0x3]
        %v1323 = vld [vmem:[%s9] sm:$0xf]
        %v1324 = vld [vmem:[%s9 + $0x4] sm:$0xf]
        %v1325 = vld [vmem:[%s9 + $0x8] sm:$0xf]
        %v1326 = vld [vmem:[%s9 + $0xc] sm:$0xf]
        %v1327 = vld [vmem:[%s9 + $0x10] sm:$0xf]
        %v1328 = vld [vmem:[%s9 + $0x14] sm:$0xf]
        %v1329 = vld [vmem:[%s9 + $0x18] sm:$0xf]
        %v1330 = vld [vmem:[%s9 + $0x1c] sm:$0xf]
        %v1331 = vld [vmem:[%s9 + $0x20] sm:$0xf]
        %v1332 = vld [vmem:[%s9 + $0x24] sm:$0xf]
        %v1333 = vld [vmem:[%s9 + $0x28] sm:$0xf]
        %v1334 = vld [vmem:[%s9 + $0x2c] sm:$0xf]
        %v1335 = vld [vmem:[%s9 + $0x30] sm:$0xf]
        %v1336 = vld [vmem:[%s9 + $0x34] sm:$0xf]
        %v1337 = vld [vmem:[%s9 + $0x38] sm:$0xf]
        %v1338 = vld [vmem:[%s9 + $0x3c] sm:$0xf]
        %v1355 = vunpack.c.l.b16 %v1323
        %v1356 = vunpack.c.l.b16 %v1324
        %v1357 = vunpack.c.l.b16 %v1325
        %v1358 = vunpack.c.l.b16 %v1326
        %v1359 = vunpack.c.l.b16 %v1327
        %v1360 = vunpack.c.l.b16 %v1328
        %v1361 = vunpack.c.l.b16 %v1329
        %v1362 = vunpack.c.l.b16 %v1330
        %v1363 = vunpack.c.l.b16 %v1331
        %v1364 = vunpack.c.l.b16 %v1332
        %v1365 = vunpack.c.l.b16 %v1333
        %v1366 = vunpack.c.l.b16 %v1334
        %v1367 = vunpack.c.l.b16 %v1335
        %v1368 = vunpack.c.l.b16 %v1336
        %v1369 = vunpack.c.l.b16 %v1337
        %v1370 = vunpack.c.l.b16 %v1338
        %v1371 = vpack.c.b16 %v1356, %v1355
        %v1372 = vpack.c.b16 %v1358, %v1357
        %v1373 = vpack.c.b16 %v1360, %v1359
        %v1374 = vpack.c.b16 %v1362, %v1361
        %v1375 = vpack.c.b16 %v1364, %v1363
        %v1376 = vpack.c.b16 %v1366, %v1365
        %v1377 = vpack.c.b16 %v1368, %v1367
        %v1378 = vpack.c.b16 %v1370, %v1369
        %1387 = vmatprep.subr.bf16.mxu0 0
        %1388 = vmatpush1.bf16.msra.mxu0 %v1371
        %1389 = vmatprep.subr.bf16.mxu0 0
        %1390 = vmatpush1.bf16.msra.mxu0 %v1372
        %1391 = vmatprep.subr.bf16.mxu0 0
        %1392 = vmatpush1.bf16.msra.mxu0 %v1373
        %1393 = vmatprep.subr.bf16.mxu0 0
        %1394 = vmatpush1.bf16.msra.mxu0 %v1374
        %1395 = vmatprep.subr.bf16.mxu0 0
        %1396 = vmatpush1.bf16.msra.mxu0 %v1375
        %1397 = vmatprep.subr.bf16.mxu0 0
        %1398 = vmatpush1.bf16.msra.mxu0 %v1376
        %1399 = vmatprep.subr.bf16.mxu0 0
        %1400 = vmatpush1.bf16.msra.mxu0 %v1377
        %1401 = vmatprep.subr.bf16.mxu0 0
        %1402 = vmatpush1.bf16.msra.mxu0 %v1378
        %1403 = vmatprep.subr.bf16.mxu0 0
        %1404 = vmatpush1.bf16.msra.mxu0 0
        %1405 = vmatprep.subr.bf16.mxu0 0
        %1406 = vmatpush1.bf16.msra.mxu0 0
        %1407 = vmatprep.subr.bf16.mxu0 0
        %1408 = vmatpush1.bf16.msra.mxu0 0
        %1409 = vmatprep.subr.bf16.mxu0 0
        %1410 = vmatpush1.bf16.msra.mxu0 0
        %1411 = vmatprep.subr.bf16.mxu0 0
        %1412 = vmatpush1.bf16.msra.mxu0 0
        %1413 = vmatprep.subr.bf16.mxu0 0
        %1414 = vmatpush1.bf16.msra.mxu0 0
        %1415 = vmatprep.subr.bf16.mxu0 0
        %1416 = vmatpush1.bf16.msra.mxu0 0
        %1417 = vmatprep.subr.bf16.mxu0 0
        %1418 = vmatpush1.bf16.msra.mxu0 0
        %1419 = vmatprep.mubr.bf16.mxu0 0
        %1420 = vmatmul.mubr.bf16.gmra.mrb[0].mxu0 %v1063
        %v1421 = vpop.f32.mrb[0].mxu0
        %v1422 = vadd.f32 0.0, %v1421
        %v1423 = vpop.f32.mrb[0].mxu0
        %v1424 = vpop.f32.mrb[0].mxu0
        %v1425 = vadd.f32 0.0, %v1424
        %v1426 = vpop.f32.mrb[0].mxu0
        %1427 = vmatprep.mubr.bf16.mxu0 0
        %1428 = vmatmul.mubr.bf16.gmra.mrb[0].mxu0 %v1064
        %v1429 = vpop.f32.mrb[0].mxu0
        %v1430 = vadd.f32 0.0, %v1429
        %v1431 = vpop.f32.mrb[0].mxu0
        %v1432 = vpop.f32.mrb[0].mxu0
        %v1433 = vadd.f32 0.0, %v1432
        %v1434 = vpop.f32.mrb[0].mxu0
        %1435 = vdwg.mxu0
        %v1440 = vunpack.c.l.b16 %v1067
        %v1441 = vunpack.c.l.b16 %v1068
        %v1442 = vunpack.c.l.b16 %v1069
        %v1443 = vunpack.c.l.b16 %v1070
        %v1444 = vpack.c.b16 %v1441, %v1440
        %v1445 = vpack.c.b16 %v1443, %v1442
        %vm1446 = vcmask 31744
        %v1448 = vsel %vm1446, %v1444, 0
        %v1451 = vsel %vm1446, %v1445, 0
        %vm1453 = vcmask 1041408
        %v1455 = vsel %vm1453, %v1322, 0
        %1457 = vmatprep.subr.bf16.mxu0 0
        %1458 = vmatpush1.bf16.msra.mxu0 %v1455
        %1459 = vmatprep.subr.bf16.mxu0 0
        %1460 = vmatpush1.bf16.msra.mxu0 0
        %1461 = vmatprep.subr.bf16.mxu0 0
        %1462 = vmatpush1.bf16.msra.mxu0 0
        %1463 = vmatprep.subr.bf16.mxu0 0
        %1464 = vmatpush1.bf16.msra.mxu0 0
        %1465 = vmatprep.subr.bf16.mxu0 0
        %1466 = vmatpush1.bf16.msra.mxu0 0
        %1467 = vmatprep.subr.bf16.mxu0 0
        %1468 = vmatpush1.bf16.msra.mxu0 0
        %1469 = vmatprep.subr.bf16.mxu0 0
        %1470 = vmatpush1.bf16.msra.mxu0 0
        %1471 = vmatprep.subr.bf16.mxu0 0
        %1472 = vmatpush1.bf16.msra.mxu0 0
        %1473 = vmatprep.subr.bf16.mxu0 0
        %1474 = vmatpush1.bf16.msra.mxu0 0
        %1475 = vmatprep.subr.bf16.mxu0 0
        %1476 = vmatpush1.bf16.msra.mxu0 0
        %1477 = vmatprep.subr.bf16.mxu0 0
        %1478 = vmatpush1.bf16.msra.mxu0 0
        %1479 = vmatprep.subr.bf16.mxu0 0
        %1480 = vmatpush1.bf16.msra.mxu0 0
        %1481 = vmatprep.subr.bf16.mxu0 0
        %1482 = vmatpush1.bf16.msra.mxu0 0
        %1483 = vmatprep.subr.bf16.mxu0 0
        %1484 = vmatpush1.bf16.msra.mxu0 0
        %1485 = vmatprep.subr.bf16.mxu0 0
        %1486 = vmatpush1.bf16.msra.mxu0 0
        %1487 = vmatprep.subr.bf16.mxu0 0
        %1488 = vmatpush1.bf16.msra.mxu0 0
        %1489 = vmatprep.mubr.bf16.mxu0 0
        %1490 = vmatmul.mubr.bf16.gmra.mrb[0].mxu0 %v1448
        %v1491 = vpop.f32.mrb[0].mxu0
        %v1492 = vadd.f32 %v1422, %v1491
        %v1493 = vpop.f32.mrb[0].mxu0
        %v1494 = vpop.f32.mrb[0].mxu0
        %v1495 = vadd.f32 %v1425, %v1494
        %v1496 = vpop.f32.mrb[0].mxu0
        %1497 = vmatprep.mubr.bf16.mxu0 0
        %1498 = vmatmul.mubr.bf16.gmra.mrb[0].mxu0 %v1451
        %v1499 = vpop.f32.mrb[0].mxu0
        %v1500 = vadd.f32 %v1430, %v1499
        %v1501 = vpop.f32.mrb[0].mxu0
        %v1502 = vpop.f32.mrb[0].mxu0
        %v1503 = vadd.f32 %v1433, %v1502
        %v1504 = vpop.f32.mrb[0].mxu0
        %1505 = vdwg.mxu0
        %v1506 = vld [vmem:[#allocation14] sm:$0x3]
        %v1508 = vsel %vm1446, %v1151, 0
        %v1511 = vsel %vm1446, %v1152, 0
        %v1514 = vsel %vm1453, %v1506, 0
        %1516 = vmatprep.subr.bf16.mxu0 0
        %1517 = vmatpush1.bf16.msra.mxu0 %v1514
        %1518 = vmatprep.subr.bf16.mxu0 0
        %1519 = vmatpush1.bf16.msra.mxu0 0
        %1520 = vmatprep.subr.bf16.mxu0 0
        %1521 = vmatpush1.bf16.msra.mxu0 0
        %1522 = vmatprep.subr.bf16.mxu0 0
        %1523 = vmatpush1.bf16.msra.mxu0 0
        %1524 = vmatprep.subr.bf16.mxu0 0
        %1525 = vmatpush1.bf16.msra.mxu0 0
        %1526 = vmatprep.subr.bf16.mxu0 0
        %1527 = vmatpush1.bf16.msra.mxu0 0
        %1528 = vmatprep.subr.bf16.mxu0 0
        %1529 = vmatpush1.bf16.msra.mxu0 0
        %1530 = vmatprep.subr.bf16.mxu0 0
        %1531 = vmatpush1.bf16.msra.mxu0 0
        %1532 = vmatprep.subr.bf16.mxu0 0
        %1533 = vmatpush1.bf16.msra.mxu0 0
        %1534 = vmatprep.subr.bf16.mxu0 0
        %1535 = vmatpush1.bf16.msra.mxu0 0
        %1536 = vmatprep.subr.bf16.mxu0 0
        %1537 = vmatpush1.bf16.msra.mxu0 0
        %1538 = vmatprep.subr.bf16.mxu0 0
        %1539 = vmatpush1.bf16.msra.mxu0 0
        %1540 = vmatprep.subr.bf16.mxu0 0
        %1541 = vmatpush1.bf16.msra.mxu0 0
        %1542 = vmatprep.subr.bf16.mxu0 0
        %1543 = vmatpush1.bf16.msra.mxu0 0
        %1544 = vmatprep.subr.bf16.mxu0 0
        %1545 = vmatpush1.bf16.msra.mxu0 0
        %1546 = vmatprep.subr.bf16.mxu0 0
        %1547 = vmatpush1.bf16.msra.mxu0 0
        %1548 = vmatprep.mubr.bf16.mxu0 0
        %1549 = vmatmul.mubr.bf16.gmra.mrb[0].mxu0 %v1508
        %v1550 = vpop.f32.mrb[0].mxu0
        %v1551 = vadd.f32 0.0, %v1550
        %v1552 = vpop.f32.mrb[0].mxu0
        %v1553 = vpop.f32.mrb[0].mxu0
        %v1554 = vadd.f32 0.0, %v1553
        %v1555 = vpop.f32.mrb[0].mxu0
        %1556 = vmatprep.mubr.bf16.mxu0 0
        %1557 = vmatmul.mubr.bf16.gmra.mrb[0].mxu0 %v1511
        %v1558 = vpop.f32.mrb[0].mxu0
        %v1559 = vadd.f32 0.0, %v1558
        %v1560 = vpop.f32.mrb[0].mxu0
        %v1561 = vpop.f32.mrb[0].mxu0
        %v1562 = vadd.f32 0.0, %v1561
        %v1563 = vpop.f32.mrb[0].mxu0
        %1564 = vdwg.mxu0
        %v1565 = vadd.f32 %v1492, %v1551
        %v1566 = vadd.f32 %v1495, %v1554
        %v1567 = vadd.f32 %v1500, %v1559
        %v1568 = vadd.f32 %v1503, %v1562
        %v1569 = vld [vmem:[%s11] sm:$0xf]
        %v1570 = vld [vmem:[%s11 + $0x4] sm:$0xf]
        %v1571 = vld [vmem:[%s11 + $0x8] sm:$0xf]
        %v1572 = vld [vmem:[%s11 + $0xc] sm:$0xf]
        %v1573 = vld [vmem:[%s11 + $0x10] sm:$0xf]
        %v1574 = vld [vmem:[%s11 + $0x14] sm:$0xf]
        %v1575 = vld [vmem:[%s11 + $0x18] sm:$0xf]
        %v1576 = vld [vmem:[%s11 + $0x1c] sm:$0xf]
        %v1577 = vld [vmem:[%s11 + $0x20] sm:$0xf]
        %v1578 = vld [vmem:[%s11 + $0x24] sm:$0xf]
        %v1579 = vld [vmem:[%s11 + $0x28] sm:$0xf]
        %v1580 = vld [vmem:[%s11 + $0x2c] sm:$0xf]
        %v1581 = vld [vmem:[%s11 + $0x30] sm:$0xf]
        %v1582 = vld [vmem:[%s11 + $0x34] sm:$0xf]
        %v1583 = vld [vmem:[%s11 + $0x38] sm:$0xf]
        %v1584 = vld [vmem:[%s11 + $0x3c] sm:$0xf]
        %v1601 = vunpack.c.l.b16 %v1569
        %v1602 = vunpack.c.l.b16 %v1570
        %v1603 = vunpack.c.l.b16 %v1571
        %v1604 = vunpack.c.l.b16 %v1572
        %v1605 = vunpack.c.l.b16 %v1573
        %v1606 = vunpack.c.l.b16 %v1574
        %v1607 = vunpack.c.l.b16 %v1575
        %v1608 = vunpack.c.l.b16 %v1576
        %v1609 = vunpack.c.l.b16 %v1577
        %v1610 = vunpack.c.l.b16 %v1578
        %v1611 = vunpack.c.l.b16 %v1579
        %v1612 = vunpack.c.l.b16 %v1580
        %v1613 = vunpack.c.l.b16 %v1581
        %v1614 = vunpack.c.l.b16 %v1582
        %v1615 = vunpack.c.l.b16 %v1583
        %v1616 = vunpack.c.l.b16 %v1584
        %v1617 = vpack.c.b16 %v1602, %v1601
        %v1618 = vpack.c.b16 %v1604, %v1603
        %v1619 = vpack.c.b16 %v1606, %v1605
        %v1620 = vpack.c.b16 %v1608, %v1607
        %v1621 = vpack.c.b16 %v1610, %v1609
        %v1622 = vpack.c.b16 %v1612, %v1611
        %v1623 = vpack.c.b16 %v1614, %v1613
        %v1624 = vpack.c.b16 %v1616, %v1615
        %1633 = vmatprep.subr.bf16.mxu0 0
        %1634 = vmatpush1.bf16.msra.mxu0 %v1617
        %1635 = vmatprep.subr.bf16.mxu0 0
        %1636 = vmatpush1.bf16.msra.mxu0 %v1618
        %1637 = vmatprep.subr.bf16.mxu0 0
        %1638 = vmatpush1.bf16.msra.mxu0 %v1619
        %1639 = vmatprep.subr.bf16.mxu0 0
        %1640 = vmatpush1.bf16.msra.mxu0 %v1620
        %1641 = vmatprep.subr.bf16.mxu0 0
        %1642 = vmatpush1.bf16.msra.mxu0 %v1621
        %1643 = vmatprep.subr.bf16.mxu0 0
        %1644 = vmatpush1.bf16.msra.mxu0 %v1622
        %1645 = vmatprep.subr.bf16.mxu0 0
        %1646 = vmatpush1.bf16.msra.mxu0 %v1623
        %1647 = vmatprep.subr.bf16.mxu0 0
        %1648 = vmatpush1.bf16.msra.mxu0 %v1624
        %1649 = vmatprep.subr.bf16.mxu0 0
        %1650 = vmatpush1.bf16.msra.mxu0 0
        %1651 = vmatprep.subr.bf16.mxu0 0
        %1652 = vmatpush1.bf16.msra.mxu0 0
        %1653 = vmatprep.subr.bf16.mxu0 0
        %1654 = vmatpush1.bf16.msra.mxu0 0
        %1655 = vmatprep.subr.bf16.mxu0 0
        %1656 = vmatpush1.bf16.msra.mxu0 0
        %1657 = vmatprep.subr.bf16.mxu0 0
        %1658 = vmatpush1.bf16.msra.mxu0 0
        %1659 = vmatprep.subr.bf16.mxu0 0
        %1660 = vmatpush1.bf16.msra.mxu0 0
        %1661 = vmatprep.subr.bf16.mxu0 0
        %1662 = vmatpush1.bf16.msra.mxu0 0
        %1663 = vmatprep.subr.bf16.mxu0 0
        %1664 = vmatpush1.bf16.msra.mxu0 0
        %1665 = vmatprep.mubr.bf16.mxu0 0
        %1666 = vmatmul.mubr.bf16.gmra.mrb[0].mxu0 %v1202
        %v1667 = vpop.f32.mrb[0].mxu0
        %v1668 = vadd.f32 0.0, %v1667
        %v1669 = vpop.f32.mrb[0].mxu0
        %v1670 = vpop.f32.mrb[0].mxu0
        %v1671 = vadd.f32 0.0, %v1670
        %v1672 = vpop.f32.mrb[0].mxu0
        %1673 = vmatprep.mubr.bf16.mxu0 0
        %1674 = vmatmul.mubr.bf16.gmra.mrb[0].mxu0 %v1203
        %v1675 = vpop.f32.mrb[0].mxu0
        %v1676 = vadd.f32 0.0, %v1675
        %v1677 = vpop.f32.mrb[0].mxu0
        %v1678 = vpop.f32.mrb[0].mxu0
        %v1679 = vadd.f32 0.0, %v1678
        %v1680 = vpop.f32.mrb[0].mxu0
        %1681 = vdwg.mxu0
        %v1682 = vadd.f32 %v1565, %v1668
        %v1683 = vadd.f32 %v1566, %v1671
        %v1684 = vadd.f32 %v1567, %v1676
        %v1685 = vadd.f32 %v1568, %v1679
        %v1686 = vld [vmem:[#allocation16] sm:$0x3]
        %v1688 = vsel %vm1446, %v1269, 0
        %v1691 = vsel %vm1446, %v1270, 0
        %v1694 = vsel %vm1453, %v1686, 0
        %1696 = vmatprep.subr.bf16.mxu0 0
        %1697 = vmatpush1.bf16.msra.mxu0 %v1694
        %1698 = vmatprep.subr.bf16.mxu0 0
        %1699 = vmatpush1.bf16.msra.mxu0 0
        %1700 = vmatprep.subr.bf16.mxu0 0
        %1701 = vmatpush1.bf16.msra.mxu0 0
        %1702 = vmatprep.subr.bf16.mxu0 0
        %1703 = vmatpush1.bf16.msra.mxu0 0
        %1704 = vmatprep.subr.bf16.mxu0 0
        %1705 = vmatpush1.bf16.msra.mxu0 0
        %1706 = vmatprep.subr.bf16.mxu0 0
        %1707 = vmatpush1.bf16.msra.mxu0 0
        %1708 = vmatprep.subr.bf16.mxu0 0
        %1709 = vmatpush1.bf16.msra.mxu0 0
        %1710 = vmatprep.subr.bf16.mxu0 0
        %1711 = vmatpush1.bf16.msra.mxu0 0
        %1712 = vmatprep.subr.bf16.mxu0 0
        %1713 = vmatpush1.bf16.msra.mxu0 0
        %1714 = vmatprep.subr.bf16.mxu0 0
        %1715 = vmatpush1.bf16.msra.mxu0 0
        %1716 = vmatprep.subr.bf16.mxu0 0
        %1717 = vmatpush1.bf16.msra.mxu0 0
        %1718 = vmatprep.subr.bf16.mxu0 0
        %1719 = vmatpush1.bf16.msra.mxu0 0
        %1720 = vmatprep.subr.bf16.mxu0 0
        %1721 = vmatpush1.bf16.msra.mxu0 0
        %1722 = vmatprep.subr.bf16.mxu0 0
        %1723 = vmatpush1.bf16.msra.mxu0 0
        %1724 = vmatprep.subr.bf16.mxu0 0
        %1725 = vmatpush1.bf16.msra.mxu0 0
        %1726 = vmatprep.subr.bf16.mxu0 0
        %1727 = vmatpush1.bf16.msra.mxu0 0
        %1728 = vmatprep.mubr.bf16.mxu0 0
        %1729 = vmatmul.mubr.bf16.gmra.mrb[0].mxu0 %v1688
        %v1730 = vpop.f32.mrb[0].mxu0
        %v1731 = vadd.f32 0.0, %v1730
        %v1732 = vpop.f32.mrb[0].mxu0
        %v1733 = vpop.f32.mrb[0].mxu0
        %v1734 = vadd.f32 0.0, %v1733
        %v1735 = vpop.f32.mrb[0].mxu0
        %1736 = vmatprep.mubr.bf16.mxu0 0
        %1737 = vmatmul.mubr.bf16.gmra.mrb[0].mxu0 %v1691
        %v1738 = vpop.f32.mrb[0].mxu0
        %v1739 = vadd.f32 0.0, %v1738
        %v1740 = vpop.f32.mrb[0].mxu0
        %v1741 = vpop.f32.mrb[0].mxu0
        %v1742 = vadd.f32 0.0, %v1741
        %v1743 = vpop.f32.mrb[0].mxu0
        %1744 = vdwg.mxu0
        %v1745 = vadd.f32 %v1682, %v1731
        %v1746 = vadd.f32 %v1683, %v1734
        %v1747 = vadd.f32 %v1684, %v1739
        %v1748 = vadd.f32 %v1685, %v1742
        %v1749 = vld [vmem:[#allocation17] sm:$0xf]
        %v1750 = vld [vmem:[#allocation17 + $0x4] sm:$0xf]
        %v1751 = vld [vmem:[#allocation17 + $0x8] sm:$0xf]
        %v1752 = vld [vmem:[#allocation17 + $0xc] sm:$0xf]
        %v1753 = vld [vmem:[#allocation17 + $0x10] sm:$0xf]
        %v1754 = vld [vmem:[#allocation17 + $0x14] sm:$0xf]
        %v1755 = vld [vmem:[#allocation17 + $0x18] sm:$0xf]
        %v1756 = vld [vmem:[#allocation17 + $0x1c] sm:$0xf]
        %v1757 = vld [vmem:[#allocation17 + $0x20] sm:$0xf]
        %v1758 = vld [vmem:[#allocation17 + $0x24] sm:$0xf]
        %v1759 = vld [vmem:[#allocation17 + $0x28] sm:$0xf]
        %v1760 = vld [vmem:[#allocation17 + $0x2c] sm:$0xf]
        %v1761 = vld [vmem:[#allocation17 + $0x30] sm:$0xf]
        %v1762 = vld [vmem:[#allocation17 + $0x34] sm:$0xf]
        %v1763 = vld [vmem:[#allocation17 + $0x38] sm:$0xf]
        %v1764 = vld [vmem:[#allocation17 + $0x3c] sm:$0xf]
        %v1781 = vunpack.c.l.b16 %v1749
        %v1782 = vunpack.c.l.b16 %v1750
        %v1783 = vunpack.c.l.b16 %v1751
        %v1784 = vunpack.c.l.b16 %v1752
        %v1785 = vunpack.c.l.b16 %v1753
        %v1786 = vunpack.c.l.b16 %v1754
        %v1787 = vunpack.c.l.b16 %v1755
        %v1788 = vunpack.c.l.b16 %v1756
        %v1789 = vunpack.c.l.b16 %v1757
        %v1790 = vunpack.c.l.b16 %v1758
        %v1791 = vunpack.c.l.b16 %v1759
        %v1792 = vunpack.c.l.b16 %v1760
        %v1793 = vunpack.c.l.b16 %v1761
        %v1794 = vunpack.c.l.b16 %v1762
        %v1795 = vunpack.c.l.b16 %v1763
        %v1796 = vunpack.c.l.b16 %v1764
        %v1797 = vpack.c.b16 %v1782, %v1781
        %v1798 = vpack.c.b16 %v1784, %v1783
        %v1799 = vpack.c.b16 %v1786, %v1785
        %v1800 = vpack.c.b16 %v1788, %v1787
        %v1801 = vpack.c.b16 %v1790, %v1789
        %v1802 = vpack.c.b16 %v1792, %v1791
        %v1803 = vpack.c.b16 %v1794, %v1793
        %v1804 = vpack.c.b16 %v1796, %v1795
        %1813 = vmatprep.subr.bf16.mxu0 0
        %1814 = vmatpush1.bf16.msra.mxu0 %v1797
        %1815 = vmatprep.subr.bf16.mxu0 0
        %1816 = vmatpush1.bf16.msra.mxu0 %v1798
        %1817 = vmatprep.subr.bf16.mxu0 0
        %1818 = vmatpush1.bf16.msra.mxu0 %v1799
        %1819 = vmatprep.subr.bf16.mxu0 0
        %1820 = vmatpush1.bf16.msra.mxu0 %v1800
        %1821 = vmatprep.subr.bf16.mxu0 0
        %1822 = vmatpush1.bf16.msra.mxu0 %v1801
        %1823 = vmatprep.subr.bf16.mxu0 0
        %1824 = vmatpush1.bf16.msra.mxu0 %v1802
        %1825 = vmatprep.subr.bf16.mxu0 0
        %1826 = vmatpush1.bf16.msra.mxu0 %v1803
        %1827 = vmatprep.subr.bf16.mxu0 0
        %1828 = vmatpush1.bf16.msra.mxu0 %v1804
        %1829 = vmatprep.subr.bf16.mxu0 0
        %1830 = vmatpush1.bf16.msra.mxu0 0
        %1831 = vmatprep.subr.bf16.mxu0 0
        %1832 = vmatpush1.bf16.msra.mxu0 0
        %1833 = vmatprep.subr.bf16.mxu0 0
        %1834 = vmatpush1.bf16.msra.mxu0 0
        %1835 = vmatprep.subr.bf16.mxu0 0
        %1836 = vmatpush1.bf16.msra.mxu0 0
        %1837 = vmatprep.subr.bf16.mxu0 0
        %1838 = vmatpush1.bf16.msra.mxu0 0
        %1839 = vmatprep.subr.bf16.mxu0 0
        %1840 = vmatpush1.bf16.msra.mxu0 0
        %1841 = vmatprep.subr.bf16.mxu0 0
        %1842 = vmatpush1.bf16.msra.mxu0 0
        %1843 = vmatprep.subr.bf16.mxu0 0
        %1844 = vmatpush1.bf16.msra.mxu0 0
        %1845 = vmatprep.mubr.bf16.mxu0 0
        %1846 = vmatmul.mubr.bf16.gmra.mrb[0].mxu0 %v1320
        %v1847 = vpop.f32.mrb[0].mxu0
        %v1848 = vadd.f32 0.0, %v1847
        %v1849 = vpop.f32.mrb[0].mxu0
        %v1850 = vpop.f32.mrb[0].mxu0
        %v1851 = vadd.f32 0.0, %v1850
        %v1852 = vpop.f32.mrb[0].mxu0
        %1853 = vmatprep.mubr.bf16.mxu0 0
        %1854 = vmatmul.mubr.bf16.gmra.mrb[0].mxu0 %v1321
        %v1855 = vpop.f32.mrb[0].mxu0
        %v1856 = vadd.f32 0.0, %v1855
        %v1857 = vpop.f32.mrb[0].mxu0
        %v1858 = vpop.f32.mrb[0].mxu0
        %v1859 = vadd.f32 0.0, %v1858
        %v1860 = vpop.f32.mrb[0].mxu0
        %1861 = vdwg.mxu0
        %v1862 = vadd.f32 %v1745, %v1848
        %v1863 = vadd.f32 %v1746, %v1851
        %v1864 = vadd.f32 %v1747, %v1856
        %v1865 = vadd.f32 %v1748, %v1859
        %v1866 = vld [vmem:[#allocation19] sm:$0x1]
        %v1868 = vlaneseq
        %v1869 = vshrl.u32 %v1868, 7
        %v1870 = vsub.s32 0, %v1869
        %v1871 = vrot.slane %v1866, %v1870
        %v1873 = vadd.f32 %v1862, %v1871
        %v1874 = vadd.f32 %v1863, %v1871
        %v1875 = vadd.f32 %v1864, %v1871
        %v1876 = vadd.f32 %v1865, %v1871
        %v1877 = vmax.f32 %v1873, 0.0
        %v1878 = vmax.f32 %v1874, 0.0
        %v1879 = vmax.f32 %v1875, 0.0
        %v1880 = vmax.f32 %v1876, 0.0
        %v1881 = vpack.c.bf16 %v1878, %v1877
        %v1882 = vpack.c.bf16 %v1880, %v1879
        %v1883 = vld [vmem:[%s15] sm:$0xf]
        %v1884 = vld [vmem:[%s15 + $0x4] sm:$0xf]
        %v1885 = vld [vmem:[%s15 + $0x8] sm:$0xf]
        %v1886 = vld [vmem:[%s15 + $0xc] sm:$0xf]
        %v1887 = vld [vmem:[%s15 + $0x10] sm:$0xf]
        %v1888 = vld [vmem:[%s15 + $0x14] sm:$0xf]
        %v1889 = vld [vmem:[%s15 + $0x18] sm:$0xf]
        %v1890 = vld [vmem:[%s15 + $0x1c] sm:$0xf]
        %v1891 = vld [vmem:[%s15 + $0x20] sm:$0xf]
        %v1892 = vld [vmem:[%s15 + $0x24] sm:$0xf]
        %v1893 = vld [vmem:[%s15 + $0x28] sm:$0xf]
        %v1894 = vld [vmem:[%s15 + $0x2c] sm:$0xf]
        %v1895 = vld [vmem:[%s15 + $0x30] sm:$0xf]
        %v1896 = vld [vmem:[%s15 + $0x34] sm:$0xf]
        %v1897 = vld [vmem:[%s15 + $0x38] sm:$0xf]
        %v1898 = vld [vmem:[%s15 + $0x3c] sm:$0xf]
        %v1899 = vld [vmem:[%s16] sm:$0x1]
        %v1901 = vlaneseq
        %v1902 = vshrl.u32 %v1901, 7
        %v1903 = vsub.s32 0, %v1902
        %v1904 = vrot.slane %v1899, %v1903
        %v1922 = vunpack.c.l.b16 %v1883
        %v1923 = vunpack.c.l.b16 %v1884
        %v1924 = vunpack.c.l.b16 %v1885
        %v1925 = vunpack.c.l.b16 %v1886
        %v1926 = vunpack.c.l.b16 %v1887
        %v1927 = vunpack.c.l.b16 %v1888
        %v1928 = vunpack.c.l.b16 %v1889
        %v1929 = vunpack.c.l.b16 %v1890
        %v1930 = vunpack.c.l.b16 %v1891
        %v1931 = vunpack.c.l.b16 %v1892
        %v1932 = vunpack.c.l.b16 %v1893
        %v1933 = vunpack.c.l.b16 %v1894
        %v1934 = vunpack.c.l.b16 %v1895
        %v1935 = vunpack.c.l.b16 %v1896
        %v1936 = vunpack.c.l.b16 %v1897
        %v1937 = vunpack.c.l.b16 %v1898
        %v1938 = vpack.c.b16 %v1923, %v1922
        %v1939 = vpack.c.b16 %v1925, %v1924
        %v1940 = vpack.c.b16 %v1927, %v1926
        %v1941 = vpack.c.b16 %v1929, %v1928
        %v1942 = vpack.c.b16 %v1931, %v1930
        %v1943 = vpack.c.b16 %v1933, %v1932
        %v1944 = vpack.c.b16 %v1935, %v1934
        %v1945 = vpack.c.b16 %v1937, %v1936
        %1954 = vmatprep.subr.bf16.mxu0 0
        %1955 = vmatpush1.bf16.msra.mxu0 %v1938
        %1956 = vmatprep.subr.bf16.mxu0 0
        %1957 = vmatpush1.bf16.msra.mxu0 %v1939
        %1958 = vmatprep.subr.bf16.mxu0 0
        %1959 = vmatpush1.bf16.msra.mxu0 %v1940
        %1960 = vmatprep.subr.bf16.mxu0 0
        %1961 = vmatpush1.bf16.msra.mxu0 %v1941
        %1962 = vmatprep.subr.bf16.mxu0 0
        %1963 = vmatpush1.bf16.msra.mxu0 %v1942
        %1964 = vmatprep.subr.bf16.mxu0 0
        %1965 = vmatpush1.bf16.msra.mxu0 %v1943
        %1966 = vmatprep.subr.bf16.mxu0 0
        %1967 = vmatpush1.bf16.msra.mxu0 %v1944
        %1968 = vmatprep.subr.bf16.mxu0 0
        %1969 = vmatpush1.bf16.msra.mxu0 %v1945
        %1970 = vmatprep.subr.bf16.mxu0 0
        %1971 = vmatpush1.bf16.msra.mxu0 0
        %1972 = vmatprep.subr.bf16.mxu0 0
        %1973 = vmatpush1.bf16.msra.mxu0 0
        %1974 = vmatprep.subr.bf16.mxu0 0
        %1975 = vmatpush1.bf16.msra.mxu0 0
        %1976 = vmatprep.subr.bf16.mxu0 0
        %1977 = vmatpush1.bf16.msra.mxu0 0
        %1978 = vmatprep.subr.bf16.mxu0 0
        %1979 = vmatpush1.bf16.msra.mxu0 0
        %1980 = vmatprep.subr.bf16.mxu0 0
        %1981 = vmatpush1.bf16.msra.mxu0 0
        %1982 = vmatprep.subr.bf16.mxu0 0
        %1983 = vmatpush1.bf16.msra.mxu0 0
        %1984 = vmatprep.subr.bf16.mxu0 0
        %1985 = vmatpush1.bf16.msra.mxu0 0
        %1986 = vmatprep.mubr.bf16.mxu0 0
        %1987 = vmatmul.mubr.bf16.gmra.mrb[0].mxu0 %v1881
        %v1988 = vpop.f32.mrb[0].mxu0
        %v1989 = vadd.f32 %v1904, %v1988
        %v1990 = vpop.f32.mrb[0].mxu0
        %v1991 = vpop.f32.mrb[0].mxu0
        %v1992 = vadd.f32 %v1904, %v1991
        %v1993 = vpop.f32.mrb[0].mxu0
        %1994 = vmatprep.mubr.bf16.mxu0 0
        %1995 = vmatmul.mubr.bf16.gmra.mrb[0].mxu0 %v1882
        %v1996 = vpop.f32.mrb[0].mxu0
        %v1997 = vadd.f32 %v1904, %v1996
        %v1998 = vpop.f32.mrb[0].mxu0
        %v1999 = vpop.f32.mrb[0].mxu0
        %v2000 = vadd.f32 %v1904, %v1999
        %v2001 = vpop.f32.mrb[0].mxu0
        %2002 = vdwg.mxu0
        %v2003 = vld [vmem:[#allocation5] sm:$0xf]
        %v2004 = vld [vmem:[#allocation5 + $0x4] sm:$0xf]
        %v2005 = vpack.c.bf16 %v1992, %v1989
        %v2006 = vpack.c.bf16 %v2000, %v1997
        %v2009 = vunpack.c.l.b16 %v2003
        %v2010 = vunpack.c.l.b16 %v2004
        %v2011 = vpack.c.b16 %v2010, %v2009
        %vm2012 = vcmask 261120
        %v2014 = vsel %vm2012, %v2011, 0
        %2016 = vmatprep.subr.bf16.mxu0 0
        %2017 = vmatpush1.bf16.msra.mxu0 %v2005
        %2018 = vmatprep.subr.bf16.mxu0 0
        %2019 = vmatpush1.bf16.msra.mxu0 %v2006
        %2020 = vmatprep.subr.bf16.mxu0 0
        %2021 = vmatpush1.bf16.msra.mxu0 0
        %2022 = vmatprep.subr.bf16.mxu0 0
        %2023 = vmatpush1.bf16.msra.mxu0 0
        %2024 = vmatprep.subr.bf16.mxu0 0
        %2025 = vmatpush1.bf16.msra.mxu0 0
        %2026 = vmatprep.subr.bf16.mxu0 0
        %2027 = vmatpush1.bf16.msra.mxu0 0
        %2028 = vmatprep.subr.bf16.mxu0 0
        %2029 = vmatpush1.bf16.msra.mxu0 0
        %2030 = vmatprep.subr.bf16.mxu0 0
        %2031 = vmatpush1.bf16.msra.mxu0 0
        %2032 = vmatprep.subr.bf16.mxu0 0
        %2033 = vmatpush1.bf16.msra.mxu0 0
        %2034 = vmatprep.subr.bf16.mxu0 0
        %2035 = vmatpush1.bf16.msra.mxu0 0
        %2036 = vmatprep.subr.bf16.mxu0 0
        %2037 = vmatpush1.bf16.msra.mxu0 0
        %2038 = vmatprep.subr.bf16.mxu0 0
        %2039 = vmatpush1.bf16.msra.mxu0 0
        %2040 = vmatprep.subr.bf16.mxu0 0
        %2041 = vmatpush1.bf16.msra.mxu0 0
        %2042 = vmatprep.subr.bf16.mxu0 0
        %2043 = vmatpush1.bf16.msra.mxu0 0
        %2044 = vmatprep.subr.bf16.mxu0 0
        %2045 = vmatpush1.bf16.msra.mxu0 0
        %2046 = vmatprep.subr.bf16.mxu0 0
        %2047 = vmatpush1.bf16.msra.mxu0 0
        %2048 = vmatprep.mubr.bf16.mxu0 0
        %2049 = vmatmul.mubr.bf16.gmra.mrb[0].mxu0 %v2014
        %v2050 = vpop.f32.mrb[0].mxu0
        %v2051 = vadd.f32 0.0, %v2050
        %v2052 = vpop.f32.mrb[0].mxu0
        %v2053 = vpop.f32.mrb[0].mxu0
        %v2054 = vadd.f32 0.0, %v2053
        %v2055 = vpop.f32.mrb[0].mxu0
        %2056 = vdwg.mxu0
        %v2057 = vpack.c.bf16 %v2054, %v2051
        %v2058 = vld [vmem:[%s17] sm:$0x3]
        %v2059 = vld [vmem:[#allocation20] sm:$0xf]
        %v2060 = vld [vmem:[#allocation20 + $0x4] sm:$0xf]
        %v2061 = vld [vmem:[#allocation20 + $0x8] sm:$0xf]
        %v2062 = vld [vmem:[#allocation20 + $0xc] sm:$0xf]
        %v2063 = vld [vmem:[#allocation20 + $0x10] sm:$0xf]
        %v2064 = vld [vmem:[#allocation20 + $0x14] sm:$0xf]
        %v2065 = vld [vmem:[#allocation20 + $0x18] sm:$0xf]
        %v2066 = vld [vmem:[#allocation20 + $0x1c] sm:$0xf]
        %v2067 = vld [vmem:[#allocation20 + $0x20] sm:$0xf]
        %v2068 = vld [vmem:[#allocation20 + $0x24] sm:$0xf]
        %v2069 = vld [vmem:[#allocation20 + $0x28] sm:$0xf]
        %v2070 = vld [vmem:[#allocation20 + $0x2c] sm:$0xf]
        %v2071 = vld [vmem:[#allocation20 + $0x30] sm:$0xf]
        %v2072 = vld [vmem:[#allocation20 + $0x34] sm:$0xf]
        %v2073 = vld [vmem:[#allocation20 + $0x38] sm:$0xf]
        %v2074 = vld [vmem:[#allocation20 + $0x3c] sm:$0xf]
        %v2091 = vunpack.c.l.b16 %v2059
        %v2092 = vunpack.c.l.b16 %v2060
        %v2093 = vunpack.c.l.b16 %v2061
        %v2094 = vunpack.c.l.b16 %v2062
        %v2095 = vunpack.c.l.b16 %v2063
        %v2096 = vunpack.c.l.b16 %v2064
        %v2097 = vunpack.c.l.b16 %v2065
        %v2098 = vunpack.c.l.b16 %v2066
        %v2099 = vunpack.c.l.b16 %v2067
        %v2100 = vunpack.c.l.b16 %v2068
        %v2101 = vunpack.c.l.b16 %v2069
        %v2102 = vunpack.c.l.b16 %v2070
        %v2103 = vunpack.c.l.b16 %v2071
        %v2104 = vunpack.c.l.b16 %v2072
        %v2105 = vunpack.c.l.b16 %v2073
        %v2106 = vunpack.c.l.b16 %v2074
        %v2107 = vpack.c.b16 %v2092, %v2091
        %v2108 = vpack.c.b16 %v2094, %v2093
        %v2109 = vpack.c.b16 %v2096, %v2095
        %v2110 = vpack.c.b16 %v2098, %v2097
        %v2111 = vpack.c.b16 %v2100, %v2099
        %v2112 = vpack.c.b16 %v2102, %v2101
        %v2113 = vpack.c.b16 %v2104, %v2103
        %v2114 = vpack.c.b16 %v2106, %v2105
        %2123 = vmatprep.subr.bf16.mxu0 0
        %2124 = vmatpush1.bf16.msra.mxu0 %v2107
        %2125 = vmatprep.subr.bf16.mxu0 0
        %2126 = vmatpush1.bf16.msra.mxu0 %v2108
        %2127 = vmatprep.subr.bf16.mxu0 0
        %2128 = vmatpush1.bf16.msra.mxu0 %v2109
        %2129 = vmatprep.subr.bf16.mxu0 0
        %2130 = vmatpush1.bf16.msra.mxu0 %v2110
        %2131 = vmatprep.subr.bf16.mxu0 0
        %2132 = vmatpush1.bf16.msra.mxu0 %v2111
        %2133 = vmatprep.subr.bf16.mxu0 0
        %2134 = vmatpush1.bf16.msra.mxu0 %v2112
        %2135 = vmatprep.subr.bf16.mxu0 0
        %2136 = vmatpush1.bf16.msra.mxu0 %v2113
        %2137 = vmatprep.subr.bf16.mxu0 0
        %2138 = vmatpush1.bf16.msra.mxu0 %v2114
        %2139 = vmatprep.subr.bf16.mxu0 0
        %2140 = vmatpush1.bf16.msra.mxu0 0
        %2141 = vmatprep.subr.bf16.mxu0 0
        %2142 = vmatpush1.bf16.msra.mxu0 0
        %2143 = vmatprep.subr.bf16.mxu0 0
        %2144 = vmatpush1.bf16.msra.mxu0 0
        %2145 = vmatprep.subr.bf16.mxu0 0
        %2146 = vmatpush1.bf16.msra.mxu0 0
        %2147 = vmatprep.subr.bf16.mxu0 0
        %2148 = vmatpush1.bf16.msra.mxu0 0
        %2149 = vmatprep.subr.bf16.mxu0 0
        %2150 = vmatpush1.bf16.msra.mxu0 0
        %2151 = vmatprep.subr.bf16.mxu0 0
        %2152 = vmatpush1.bf16.msra.mxu0 0
        %2153 = vmatprep.subr.bf16.mxu0 0
        %2154 = vmatpush1.bf16.msra.mxu0 0
        %2155 = vmatprep.mubr.bf16.mxu0 0
        %2156 = vmatmul.mubr.bf16.gmra.mrb[0].mxu0 %v1062
        %v2157 = vpop.f32.mrb[0].mxu0
        %v2158 = vadd.f32 0.0, %v2157
        %v2159 = vpop.f32.mrb[0].mxu0
        %v2160 = vpop.f32.mrb[0].mxu0
        %v2161 = vadd.f32 0.0, %v2160
        %v2162 = vpop.f32.mrb[0].mxu0
        %2163 = vdwg.mxu0
        %v2165 = vsel %vm1446, %v1093, 0
        %v2168 = vsel %vm1453, %v2058, 0
        %2170 = vmatprep.subr.bf16.mxu0 0
        %2171 = vmatpush1.bf16.msra.mxu0 %v2168
        %2172 = vmatprep.subr.bf16.mxu0 0
        %2173 = vmatpush1.bf16.msra.mxu0 0
        %2174 = vmatprep.subr.bf16.mxu0 0
        %2175 = vmatpush1.bf16.msra.mxu0 0
        %2176 = vmatprep.subr.bf16.mxu0 0
        %2177 = vmatpush1.bf16.msra.mxu0 0
        %2178 = vmatprep.subr.bf16.mxu0 0
        %2179 = vmatpush1.bf16.msra.mxu0 0
        %2180 = vmatprep.subr.bf16.mxu0 0
        %2181 = vmatpush1.bf16.msra.mxu0 0
        %2182 = vmatprep.subr.bf16.mxu0 0
        %2183 = vmatpush1.bf16.msra.mxu0 0
        %2184 = vmatprep.subr.bf16.mxu0 0
        %2185 = vmatpush1.bf16.msra.mxu0 0
        %2186 = vmatprep.subr.bf16.mxu0 0
        %2187 = vmatpush1.bf16.msra.mxu0 0
        %2188 = vmatprep.subr.bf16.mxu0 0
        %2189 = vmatpush1.bf16.msra.mxu0 0
        %2190 = vmatprep.subr.bf16.mxu0 0
        %2191 = vmatpush1.bf16.msra.mxu0 0
        %2192 = vmatprep.subr.bf16.mxu0 0
        %2193 = vmatpush1.bf16.msra.mxu0 0
        %2194 = vmatprep.subr.bf16.mxu0 0
        %2195 = vmatpush1.bf16.msra.mxu0 0
        %2196 = vmatprep.subr.bf16.mxu0 0
        %2197 = vmatpush1.bf16.msra.mxu0 0
        %2198 = vmatprep.subr.bf16.mxu0 0
        %2199 = vmatpush1.bf16.msra.mxu0 0
        %2200 = vmatprep.subr.bf16.mxu0 0
        %2201 = vmatpush1.bf16.msra.mxu0 0
        %2202 = vmatprep.mubr.bf16.mxu0 0
        %2203 = vmatmul.mubr.bf16.gmra.mrb[0].mxu0 %v2165
        %v2204 = vpop.f32.mrb[0].mxu0
        %v2205 = vadd.f32 %v2158, %v2204
        %v2206 = vpop.f32.mrb[0].mxu0
        %v2207 = vpop.f32.mrb[0].mxu0
        %v2208 = vadd.f32 %v2161, %v2207
        %v2209 = vpop.f32.mrb[0].mxu0
        %2210 = vdwg.mxu0
        %v2211 = vld [vmem:[#allocation22] sm:$0xf]
        %v2212 = vld [vmem:[#allocation22 + $0x4] sm:$0xf]
        %v2213 = vld [vmem:[#allocation22 + $0x8] sm:$0xf]
        %v2214 = vld [vmem:[#allocation22 + $0xc] sm:$0xf]
        %v2215 = vld [vmem:[#allocation22 + $0x10] sm:$0xf]
        %v2216 = vld [vmem:[#allocation22 + $0x14] sm:$0xf]
        %v2217 = vld [vmem:[#allocation22 + $0x18] sm:$0xf]
        %v2218 = vld [vmem:[#allocation22 + $0x1c] sm:$0xf]
        %v2219 = vld [vmem:[#allocation22 + $0x20] sm:$0xf]
        %v2220 = vld [vmem:[#allocation22 + $0x24] sm:$0xf]
        %v2221 = vld [vmem:[#allocation22 + $0x28] sm:$0xf]
        %v2222 = vld [vmem:[#allocation22 + $0x2c] sm:$0xf]
        %v2223 = vld [vmem:[#allocation22 + $0x30] sm:$0xf]
        %v2224 = vld [vmem:[#allocation22 + $0x34] sm:$0xf]
        %v2225 = vld [vmem:[#allocation22 + $0x38] sm:$0xf]
        %v2226 = vld [vmem:[#allocation22 + $0x3c] sm:$0xf]
        %v2243 = vunpack.c.l.b16 %v2211
        %v2244 = vunpack.c.l.b16 %v2212
        %v2245 = vunpack.c.l.b16 %v2213
        %v2246 = vunpack.c.l.b16 %v2214
        %v2247 = vunpack.c.l.b16 %v2215
        %v2248 = vunpack.c.l.b16 %v2216
        %v2249 = vunpack.c.l.b16 %v2217
        %v2250 = vunpack.c.l.b16 %v2218
        %v2251 = vunpack.c.l.b16 %v2219
        %v2252 = vunpack.c.l.b16 %v2220
        %v2253 = vunpack.c.l.b16 %v2221
        %v2254 = vunpack.c.l.b16 %v2222
        %v2255 = vunpack.c.l.b16 %v2223
        %v2256 = vunpack.c.l.b16 %v2224
        %v2257 = vunpack.c.l.b16 %v2225
        %v2258 = vunpack.c.l.b16 %v2226
        %v2259 = vpack.c.b16 %v2244, %v2243
        %v2260 = vpack.c.b16 %v2246, %v2245
        %v2261 = vpack.c.b16 %v2248, %v2247
        %v2262 = vpack.c.b16 %v2250, %v2249
        %v2263 = vpack.c.b16 %v2252, %v2251
        %v2264 = vpack.c.b16 %v2254, %v2253
        %v2265 = vpack.c.b16 %v2256, %v2255
        %v2266 = vpack.c.b16 %v2258, %v2257
        %2275 = vmatprep.subr.bf16.mxu0 0
        %2276 = vmatpush1.bf16.msra.mxu0 %v2259
        %2277 = vmatprep.subr.bf16.mxu0 0
        %2278 = vmatpush1.bf16.msra.mxu0 %v2260
        %2279 = vmatprep.subr.bf16.mxu0 0
        %2280 = vmatpush1.bf16.msra.mxu0 %v2261
        %2281 = vmatprep.subr.bf16.mxu0 0
        %2282 = vmatpush1.bf16.msra.mxu0 %v2262
        %2283 = vmatprep.subr.bf16.mxu0 0
        %2284 = vmatpush1.bf16.msra.mxu0 %v2263
        %2285 = vmatprep.subr.bf16.mxu0 0
        %2286 = vmatpush1.bf16.msra.mxu0 %v2264
        %2287 = vmatprep.subr.bf16.mxu0 0
        %2288 = vmatpush1.bf16.msra.mxu0 %v2265
        %2289 = vmatprep.subr.bf16.mxu0 0
        %2290 = vmatpush1.bf16.msra.mxu0 %v2266
        %2291 = vmatprep.subr.bf16.mxu0 0
        %2292 = vmatpush1.bf16.msra.mxu0 0
        %2293 = vmatprep.subr.bf16.mxu0 0
        %2294 = vmatpush1.bf16.msra.mxu0 0
        %2295 = vmatprep.subr.bf16.mxu0 0
        %2296 = vmatpush1.bf16.msra.mxu0 0
        %2297 = vmatprep.subr.bf16.mxu0 0
        %2298 = vmatpush1.bf16.msra.mxu0 0
        %2299 = vmatprep.subr.bf16.mxu0 0
        %2300 = vmatpush1.bf16.msra.mxu0 0
        %2301 = vmatprep.subr.bf16.mxu0 0
        %2302 = vmatpush1.bf16.msra.mxu0 0
        %2303 = vmatprep.subr.bf16.mxu0 0
        %2304 = vmatpush1.bf16.msra.mxu0 0
        %2305 = vmatprep.subr.bf16.mxu0 0
        %2306 = vmatpush1.bf16.msra.mxu0 0
        %2307 = vmatprep.mubr.bf16.mxu0 0
        %2308 = vmatmul.mubr.bf16.gmra.mrb[0].mxu0 %v2057
        %v2309 = vpop.f32.mrb[0].mxu0
        %v2310 = vadd.f32 0.0, %v2309
        %v2311 = vpop.f32.mrb[0].mxu0
        %v2312 = vpop.f32.mrb[0].mxu0
        %v2313 = vadd.f32 0.0, %v2312
        %v2314 = vpop.f32.mrb[0].mxu0
        %2315 = vdwg.mxu0
        %v2316 = vadd.f32 %v2205, %v2310
        %v2317 = vadd.f32 %v2208, %v2313
        %v2318 = vld [vmem:[%s20] sm:$0x1]
        %v2320 = vlaneseq
        %v2321 = vshrl.u32 %v2320, 7
        %v2322 = vsub.s32 0, %v2321
        %v2323 = vrot.slane %v2318, %v2322
        %v2325 = vadd.f32 %v2316, %v2323
        %v2326 = vadd.f32 %v2317, %v2323
        %v2327 = vmax.f32 %v2325, 0.0
        %v2328 = vmax.f32 %v2326, 0.0
        %v2329 = vpack.c.bf16 %v2328, %v2327
        %v2330 = vld [vmem:[#allocation23] sm:$0xf]
        %v2331 = vld [vmem:[#allocation23 + $0x4] sm:$0xf]
        %v2332 = vld [vmem:[#allocation23 + $0x8] sm:$0xf]
        %v2333 = vld [vmem:[#allocation23 + $0xc] sm:$0xf]
        %v2334 = vld [vmem:[#allocation23 + $0x10] sm:$0xf]
        %v2335 = vld [vmem:[#allocation23 + $0x14] sm:$0xf]
        %v2336 = vld [vmem:[#allocation23 + $0x18] sm:$0xf]
        %v2337 = vld [vmem:[#allocation23 + $0x1c] sm:$0xf]
        %v2338 = vld [vmem:[#allocation23 + $0x20] sm:$0xf]
        %v2339 = vld [vmem:[#allocation23 + $0x24] sm:$0xf]
        %v2340 = vld [vmem:[#allocation23 + $0x28] sm:$0xf]
        %v2341 = vld [vmem:[#allocation23 + $0x2c] sm:$0xf]
        %v2342 = vld [vmem:[#allocation23 + $0x30] sm:$0xf]
        %v2343 = vld [vmem:[#allocation23 + $0x34] sm:$0xf]
        %v2344 = vld [vmem:[#allocation23 + $0x38] sm:$0xf]
        %v2345 = vld [vmem:[#allocation23 + $0x3c] sm:$0xf]
        %v2346 = vld [vmem:[%s22] sm:$0x1]
        %v2348 = vlaneseq
        %v2349 = vshrl.u32 %v2348, 7
        %v2350 = vsub.s32 0, %v2349
        %v2351 = vrot.slane %v2346, %v2350
        %v2369 = vunpack.c.l.b16 %v2330
        %v2370 = vunpack.c.l.b16 %v2331
        %v2371 = vunpack.c.l.b16 %v2332
        %v2372 = vunpack.c.l.b16 %v2333
        %v2373 = vunpack.c.l.b16 %v2334
        %v2374 = vunpack.c.l.b16 %v2335
        %v2375 = vunpack.c.l.b16 %v2336
        %v2376 = vunpack.c.l.b16 %v2337
        %v2377 = vunpack.c.l.b16 %v2338
        %v2378 = vunpack.c.l.b16 %v2339
        %v2379 = vunpack.c.l.b16 %v2340
        %v2380 = vunpack.c.l.b16 %v2341
        %v2381 = vunpack.c.l.b16 %v2342
        %v2382 = vunpack.c.l.b16 %v2343
        %v2383 = vunpack.c.l.b16 %v2344
        %v2384 = vunpack.c.l.b16 %v2345
        %v2385 = vpack.c.b16 %v2370, %v2369
        %v2386 = vpack.c.b16 %v2372, %v2371
        %v2387 = vpack.c.b16 %v2374, %v2373
        %v2388 = vpack.c.b16 %v2376, %v2375
        %v2389 = vpack.c.b16 %v2378, %v2377
        %v2390 = vpack.c.b16 %v2380, %v2379
        %v2391 = vpack.c.b16 %v2382, %v2381
        %v2392 = vpack.c.b16 %v2384, %v2383
        %2401 = vmatprep.subr.bf16.mxu0 0
        %2402 = vmatpush1.bf16.msra.mxu0 %v2385
        %2403 = vmatprep.subr.bf16.mxu0 0
        %2404 = vmatpush1.bf16.msra.mxu0 %v2386
        %2405 = vmatprep.subr.bf16.mxu0 0
        %2406 = vmatpush1.bf16.msra.mxu0 %v2387
        %2407 = vmatprep.subr.bf16.mxu0 0
        %2408 = vmatpush1.bf16.msra.mxu0 %v2388
        %2409 = vmatprep.subr.bf16.mxu0 0
        %2410 = vmatpush1.bf16.msra.mxu0 %v2389
        %2411 = vmatprep.subr.bf16.mxu0 0
        %2412 = vmatpush1.bf16.msra.mxu0 %v2390
        %2413 = vmatprep.subr.bf16.mxu0 0
        %2414 = vmatpush1.bf16.msra.mxu0 %v2391
        %2415 = vmatprep.subr.bf16.mxu0 0
        %2416 = vmatpush1.bf16.msra.mxu0 %v2392
        %2417 = vmatprep.subr.bf16.mxu0 0
        %2418 = vmatpush1.bf16.msra.mxu0 0
        %2419 = vmatprep.subr.bf16.mxu0 0
        %2420 = vmatpush1.bf16.msra.mxu0 0
        %2421 = vmatprep.subr.bf16.mxu0 0
        %2422 = vmatpush1.bf16.msra.mxu0 0
        %2423 = vmatprep.subr.bf16.mxu0 0
        %2424 = vmatpush1.bf16.msra.mxu0 0
        %2425 = vmatprep.subr.bf16.mxu0 0
        %2426 = vmatpush1.bf16.msra.mxu0 0
        %2427 = vmatprep.subr.bf16.mxu0 0
        %2428 = vmatpush1.bf16.msra.mxu0 0
        %2429 = vmatprep.subr.bf16.mxu0 0
        %2430 = vmatpush1.bf16.msra.mxu0 0
        %2431 = vmatprep.subr.bf16.mxu0 0
        %2432 = vmatpush1.bf16.msra.mxu0 0
        %2433 = vmatprep.mubr.bf16.mxu0 0
        %2434 = vmatmul.mubr.bf16.gmra.mrb[0].mxu0 %v2329
        %v2435 = vpop.f32.mrb[0].mxu0
        %v2436 = vadd.f32 %v2351, %v2435
        %v2437 = vpop.f32.mrb[0].mxu0
        %v2438 = vpop.f32.mrb[0].mxu0
        %v2439 = vadd.f32 %v2351, %v2438
        %v2440 = vpop.f32.mrb[0].mxu0
        %2441 = vdwg.mxu0
        %s2442 = sld [smem:[#allocation4]]
        %2443 = vst [vmem:[%s1001] sm:$0xff] %v2436
        %2444 = vst [vmem:[%s1001 + $0x8] sm:$0xff] %v2439
        %2445 = vst [vmem:[%s1008] sm:$0xff] %v1989
        %2446 = vst [vmem:[%s1008 + $0x8] sm:$0xff] %v1992
        %2447 = vst [vmem:[%s1008 + $0x10] sm:$0xff] %v1997
        %2448 = vst [vmem:[%s1008 + $0x18] sm:$0xff] %v2000
        %v2449 = vsub.f32 %v2436, %v1056
        %v2450 = vsub.f32 %v2439, %v1057
        %2451 = vst [vmem:[%s1015] sm:$0xff] %v2449
        %2452 = vst [vmem:[%s1015 + $0x8] sm:$0xff] %v2450
        %s2453 = ssub.f32 0.0, %s2442
        %v2454 = vld [vmem:[#allocation8] sm:$0xf]
        %v2455 = vld [vmem:[#allocation8 + $0x4] sm:$0xf]
        %v2458 = vunpack.c.l.b16 %v2454
        %v2459 = vunpack.c.l.b16 %v2455
        %v2460 = vpack.c.b16 %v2459, %v2458
        %v2462 = vsel %vm1095, %v2460, 0
        %2464 = vmatprep.subr.bf16.mxu0 0
        %2465 = vmatpush1.bf16.msra.mxu0 %v1062
        %2466 = vmatprep.subr.bf16.mxu0 0
        %2467 = vmatpush1.bf16.msra.mxu0 0
        %2468 = vmatprep.subr.bf16.mxu0 0
        %2469 = vmatpush1.bf16.msra.mxu0 0
        %2470 = vmatprep.subr.bf16.mxu0 0
        %2471 = vmatpush1.bf16.msra.mxu0 0
        %2472 = vmatprep.subr.bf16.mxu0 0
        %2473 = vmatpush1.bf16.msra.mxu0 0
        %2474 = vmatprep.subr.bf16.mxu0 0
        %2475 = vmatpush1.bf16.msra.mxu0 0
        %2476 = vmatprep.subr.bf16.mxu0 0
        %2477 = vmatpush1.bf16.msra.mxu0 0
        %2478 = vmatprep.subr.bf16.mxu0 0
        %2479 = vmatpush1.bf16.msra.mxu0 0
        %2480 = vmatprep.subr.bf16.mxu0 0
        %2481 = vmatpush1.bf16.msra.mxu0 0
        %2482 = vmatprep.subr.bf16.mxu0 0
        %2483 = vmatpush1.bf16.msra.mxu0 0
        %2484 = vmatprep.subr.bf16.mxu0 0
        %2485 = vmatpush1.bf16.msra.mxu0 0
        %2486 = vmatprep.subr.bf16.mxu0 0
        %2487 = vmatpush1.bf16.msra.mxu0 0
        %2488 = vmatprep.subr.bf16.mxu0 0
        %2489 = vmatpush1.bf16.msra.mxu0 0
        %2490 = vmatprep.subr.bf16.mxu0 0
        %2491 = vmatpush1.bf16.msra.mxu0 0
        %2492 = vmatprep.subr.bf16.mxu0 0
        %2493 = vmatpush1.bf16.msra.mxu0 0
        %2494 = vmatprep.subr.bf16.mxu0 0
        %2495 = vmatpush1.bf16.msra.mxu0 0
        %2496 = vmatprep.mubr.bf16.mxu0 0
        %2497 = vmatmul.mubr.bf16.gmra.mrb[0].mxu0 %v2462
        %v2498 = vpop.f32.mrb[0].mxu0
        %v2499 = vadd.f32 0.0, %v2498
        %v2500 = vpop.f32.mrb[0].mxu0
        %v2501 = vpop.f32.mrb[0].mxu0
        %v2502 = vadd.f32 0.0, %v2501
        %v2503 = vpop.f32.mrb[0].mxu0
        %2504 = vdwg.mxu0
        %v2505 = vstv %s2453
        %v2506 = vmul.f32 %v2505, %v2499
        %v2507 = vmul.f32 %v2505, %v2502
        %2508 = vst [vmem:[%s1022] sm:$0xff] %v2506
        %2509 = vst [vmem:[%s1022 + $0x8] sm:$0xff] %v2507
        %2510 = vst [vmem:[#allocation2] sm:$0xff] %v2436
        %2511 = vst [vmem:[#allocation2 + $0x8] sm:$0xff] %v2439
        %2512 = vst [vmem:[#allocation3] sm:$0xff] %v1989
        %2513 = vst [vmem:[#allocation3 + $0x8] sm:$0xff] %v1992
        %2514 = vst [vmem:[#allocation3 + $0x10] sm:$0xff] %v1997
        %2515 = vst [vmem:[#allocation3 + $0x18] sm:$0xff] %v2000
        %s2516 = sand.u32 %s578, 1
        %s2517 = scalar_lea.sflag [#allocation7], %s2516
        %s2518 = sand.u32 %s578, 1
        %s2519 = smul.addr %s2518, 16
        %s2520 = scalar_lea.vmem [#allocation25], %s2519
        %s2521 = sand.u32 %s56, 1
        %s2522 = scalar_lea.sflag [#allocation27], %s2521
        %s2523 = sand.u32 %s604, 1
        %s2524 = smul.addr %s2523, 32
        %s2525 = scalar_lea.vmem [#allocation26], %s2524
        %s2526 = sand.u32 %s56, 1
        %s2527 = scalar_lea.sflag [#allocation27], %s2526
        %s2528 = sand.u32 %s630, 1
        %s2529 = smul.addr %s2528, 16
        %s2530 = scalar_lea.vmem [#allocation28], %s2529
        %s2531 = sand.u32 %s656, 1
        %s2532 = scalar_lea.sflag [#allocation30], %s2531
        %s2533 = sand.u32 %s656, 1
        %s2534 = smul.addr %s2533, 16
        %s2535 = scalar_lea.vmem [#allocation29], %s2534
        // Predicated region
        $region169: #{tpu_custom_call.1} parent=115 // pred_check
          %p2536 = pneg %p588
        $region170: #{tpu_custom_call.1} parent=115 // pred_check_branch
          %2538 = sbr.rel (%p2536) target = $region172
        $region171: #{tpu_custom_call.1} parent=115 // pred_region
          %s2540 = ssub.s32 256, 256
          %2541 = vsyncadd %s2517, %s2540
          %s2542 = smul.addr %s56, 2
          %s2543 = smul.addr %s2542, 128
          %s2544 = scalar_lea.hbm %s24, %s2543
          %s2545 = sshll.u32 %s2520, 4
          %s2546 = int_to_ptr.vmem [resolvable:$true] %s2545
          %2551 = dma.vmem_to_hbm [thread:$0]  %s2546, 256, %s2544, %s2517, 128, 128, 8
        $region172: #{tpu_custom_call.1} parent=115 // pred_fallthru
          _
        // Predicated region
        $region173: #{tpu_custom_call.1} parent=115 // pred_check
          %p2552 = pneg %p614
        $region174: #{tpu_custom_call.1} parent=115 // pred_check_branch
          %2554 = sbr.rel (%p2552) target = $region176
        $region175: #{tpu_custom_call.1} parent=115 // pred_region
          %s2556 = ssub.s32 512, 512
          %2557 = vsyncadd %s2522, %s2556
          %s2558 = smul.addr %s56, 4
          %s2559 = smul.addr %s2558, 128
          %s2560 = scalar_lea.hbm %s25, %s2559
          %s2561 = sshll.u32 %s2525, 4
          %s2562 = int_to_ptr.vmem [resolvable:$true] %s2561
          %2567 = dma.vmem_to_hbm [thread:$0]  %s2562, 512, %s2560, %s2522, 128, 128, 8
        $region176: #{tpu_custom_call.1} parent=115 // pred_fallthru
          _
        // Predicated region
        $region177: #{tpu_custom_call.1} parent=115 // pred_check
          %p2568 = pneg %p640
        $region178: #{tpu_custom_call.1} parent=115 // pred_check_branch
          %2570 = sbr.rel (%p2568) target = $region180
        $region179: #{tpu_custom_call.1} parent=115 // pred_region
          %s2572 = ssub.s32 256, 256
          %2573 = vsyncadd %s2527, %s2572
          %s2574 = smul.addr %s56, 2
          %s2575 = smul.addr %s2574, 128
          %s2576 = scalar_lea.hbm %s26, %s2575
          %s2577 = sshll.u32 %s2530, 4
          %s2578 = int_to_ptr.vmem [resolvable:$true] %s2577
          %2583 = dma.vmem_to_hbm [thread:$0]  %s2578, 256, %s2576, %s2527, 128, 128, 8
        $region180: #{tpu_custom_call.1} parent=115 // pred_fallthru
          _
        // Predicated region
        $region181: #{tpu_custom_call.1} parent=115 // pred_check
          %p2584 = pneg %p666
        $region182: #{tpu_custom_call.1} parent=115 // pred_check_branch
          %2586 = sbr.rel (%p2584) target = $region184
        $region183: #{tpu_custom_call.1} parent=115 // pred_region
          %s2588 = ssub.s32 256, 256
          %2589 = vsyncadd %s2532, %s2588
          %s2590 = smul.addr %s56, 2
          %s2591 = smul.addr %s2590, 128
          %s2592 = scalar_lea.hbm %s27, %s2591
          %s2593 = sshll.u32 %s2535, 4
          %s2594 = int_to_ptr.vmem [resolvable:$true] %s2593
          %2599 = dma.vmem_to_hbm [thread:$0]  %s2594, 256, %s2592, %s2532, 128, 128, 8
        $region184: #{tpu_custom_call.1} parent=115 // pred_fallthru
          _
      $region116: #{tpu_custom_call.1} parent=5 // pred_fallthru
        _
      %p2600 = scmp.le.s32.totalorder 2, %s51
      // Predicated region
      $region185: #{tpu_custom_call.1} parent=5 // pred_check
        %p2601 = pneg %p2600
      $region186: #{tpu_custom_call.1} parent=5 // pred_check_branch
        %2603 = sbr.rel (%p2601) target = $region188
      $region187: #{tpu_custom_call.1} parent=5 // pred_region
        %s2604 = ssub.s32 %s51, 2
        // Predicated region
        $region189: #{tpu_custom_call.1} parent=187 // pred_check
          %p2605 = pneg %p594
        $region190: #{tpu_custom_call.1} parent=187 // pred_check_branch
          %2607 = sbr.rel (%p2605) target = $region192
        $region191: #{tpu_custom_call.1} parent=187 // pred_region
          %s2608 = sand.u32 %s579, 1
          %s2609 = scalar_lea.sflag [#allocation7], %s2608
          %s2610 = sand.u32 %s579, 1
          %s2611 = smul.addr %s2610, 16
          %s2612 = scalar_lea.vmem [#allocation25], %s2611
          %2613 = dma.done %s2609, 256
        $region192: #{tpu_custom_call.1} parent=187 // pred_fallthru
          _
        // Predicated region
        $region193: #{tpu_custom_call.1} parent=187 // pred_check
          %p2614 = pneg %p620
        $region194: #{tpu_custom_call.1} parent=187 // pred_check_branch
          %2616 = sbr.rel (%p2614) target = $region196
        $region195: #{tpu_custom_call.1} parent=187 // pred_region
          %s2617 = sand.u32 %s57, 1
          %s2618 = scalar_lea.sflag [#allocation27], %s2617
          %s2619 = sand.u32 %s605, 1
          %s2620 = smul.addr %s2619, 32
          %s2621 = scalar_lea.vmem [#allocation26], %s2620
          %2622 = dma.done %s2618, 512
        $region196: #{tpu_custom_call.1} parent=187 // pred_fallthru
          _
        // Predicated region
        $region197: #{tpu_custom_call.1} parent=187 // pred_check
          %p2623 = pneg %p646
        $region198: #{tpu_custom_call.1} parent=187 // pred_check_branch
          %2625 = sbr.rel (%p2623) target = $region200
        $region199: #{tpu_custom_call.1} parent=187 // pred_region
          %s2626 = sand.u32 %s57, 1
          %s2627 = scalar_lea.sflag [#allocation27], %s2626
          %s2628 = sand.u32 %s631, 1
          %s2629 = smul.addr %s2628, 16
          %s2630 = scalar_lea.vmem [#allocation28], %s2629
          %2631 = dma.done %s2627, 256
        $region200: #{tpu_custom_call.1} parent=187 // pred_fallthru
          _
        // Predicated region
        $region201: #{tpu_custom_call.1} parent=187 // pred_check
          %p2632 = pneg %p672
        $region202: #{tpu_custom_call.1} parent=187 // pred_check_branch
          %2634 = sbr.rel (%p2632) target = $region204
        $region203: #{tpu_custom_call.1} parent=187 // pred_region
          %s2635 = sand.u32 %s657, 1
          %s2636 = scalar_lea.sflag [#allocation30], %s2635
          %s2637 = sand.u32 %s657, 1
          %s2638 = smul.addr %s2637, 16
          %s2639 = scalar_lea.vmem [#allocation29], %s2638
          %2640 = dma.done %s2636, 256
        $region204: #{tpu_custom_call.1} parent=187 // pred_fallthru
          _
      $region188: #{tpu_custom_call.1} parent=5 // pred_fallthru
        _
    $region6: #{tpu_custom_call.1} parent=1 // loop_footer
      %s55 = sadd.s32 1, %s51
    $region7: #{tpu_custom_call.1} parent=1 // loop_footer_branch
      %50 = sbr.rel target = $region3
    $region8: #{tpu_custom_call.1} parent=1 // loop_exit
      _
    %2641 = vsyncpa [#allocation6], 1
    %s2642 = scalar_lea.sflag [#allocation6], 1
    %2643 = vsyncpa %s2642, 1
    %2644 = vsyncpa [#allocation9], 1
    %2645 = vsyncpa [#allocation12], 1
    %2646 = vsyncpa [#allocation15], 1
    %2647 = vsyncpa [#allocation18], 1
    %2648 = vsyncpa [#allocation21], 1
    %2649 = vsyncpa [#allocation24], 1
    %2650 = vsyncpa [#allocation7], 1
    %s2651 = scalar_lea.sflag [#allocation7], 1
    %2652 = vsyncpa %s2651, 1
    %2653 = vsyncpa [#allocation27], 1
    %s2654 = scalar_lea.sflag [#allocation27], 1
    %2655 = vsyncpa %s2654, 1
    %2656 = vsyncpa [#allocation30], 1
    %s2657 = scalar_lea.sflag [#allocation30], 1
    %2658 = vsyncpa %s2657, 1

</llo_original>
